<compile_context>
chip_gen: v5e
topology: v5e:2x2
jax: 0.10.0
libtpu: 0.0.40
codegen_flags: <defaults>
</compile_context>

<pallas_src>
import math

import numpy as np
import jax
import jax.numpy as jnp
from jax import lax
from jax.experimental import pallas as pl
from jax.experimental.pallas import tpu as pltpu

_BIG = 1e9             # additive penalty marking invalid points
_THRESH = 0.5 * _BIG   # anything >= this came from an invalid point
_INF = 3.0e9           # init value for running minima (> any valid distance)

_RS = 128              # inner row slab (predicted points per dot), multiple of 8
_CS = 256              # inner column slab (target points per dot), multiple of 128
_TN_MAX = 1024         # grid tile of predicted points (multiple of _RS)
_TM_MAX = 2048         # grid tile of target points (multiple of _CS)


def _round_up(x, m):
    return ((x + m - 1) // m) * m


def _tree_min(vals):
    """Pairwise-tree elementwise minimum (short dependency chain on the VPU)."""
    while len(vals) > 1:
        nxt = [jnp.minimum(vals[k], vals[k + 1])
               for k in range(0, len(vals) - 1, 2)]
        if len(vals) % 2:
            nxt.append(vals[-1])
        vals = nxt
    return vals[0]


# ---------------------------------------------------------------------------
# Pallas kernel: masked Chamfer partial sums, one (step, batch) pair per p.
# ---------------------------------------------------------------------------
def _chamfer_kernel(a_ref, b_ref, d1_ref, d2_ref, rmin_ref, qmin_ref):
    i = pl.program_id(1)              # tile over predicted points (rows)
    j = pl.program_id(2)              # tile over target points    (cols)
    ni = pl.num_programs(1)
    nj = pl.num_programs(2)

    tn = a_ref.shape[2]               # rows handled by this grid step
    tm = b_ref.shape[2]               # cols handled by this grid step

    @pl.when((i == 0) & (j == 0))
    def _():
        d1_ref[...] = jnp.zeros_like(d1_ref)

    # New row tile: reset the lane-chunk row-minimum scratch.
    @pl.when(j == 0)
    def _():
        rmin_ref[...] = jnp.full(rmin_ref.shape, _INF, rmin_ref.dtype)

    # First visit of this column tile: reset its slice of the column minima.
    @pl.when(i == 0)
    def _():
        qmin_ref[:, pl.ds(pl.multiple_of(j * tm, _CS), tm)] = jnp.full(
            (8, tm), _INF, jnp.float32)

    for r in range(tn // _RS):
        a_r = a_ref[0, :, r * _RS:(r + 1) * _RS]            # (8, RS) from VMEM
        # Running per-row minima over 128-lane chunks, carried in registers
        # across the column-slab loop (scratch is touched once per row slab).
        rmin_acc = rmin_ref[r * _RS:(r + 1) * _RS, :]       # (RS, 128)

        for c in range(tm // _CS):
            b_c = b_ref[0, :, c * _CS:(c + 1) * _CS]        # (8, CS) from VMEM
            # d = |p - q|^2 + BIG*(1-valid_p) + BIG*(1-valid_q), (RS, CS)
            d = lax.dot_general(
                a_r, b_c,
                dimension_numbers=(((0,), (0,)), ((), ())),
                preferred_element_type=jnp.float32,
                precision=lax.Precision.HIGHEST)

            # dist1 direction: fold 128-lane chunks (pure VPU, vreg-aligned).
            chunk_min = _tree_min([d[:, k * 128:(k + 1) * 128]
                                   for k in range(_CS // 128)])
            rmin_acc = jnp.minimum(rmin_acc, chunk_min)

            # dist2 direction: fold 8-row groups (pure VPU, vreg-aligned),
            # then one small RMW on the persistent column-minimum scratch.
            grp_min = _tree_min([d[k * 8:(k + 1) * 8, :]
                                 for k in range(_RS // 8)])
            off = pl.multiple_of(j * tm + c * _CS, _CS)
            sl = pl.ds(off, _CS)
            qmin_ref[:, sl] = jnp.minimum(qmin_ref[:, sl], grp_min)

        @pl.when(j < nj - 1)
        def _():
            rmin_ref[r * _RS:(r + 1) * _RS, :] = rmin_acc

        # Finished all target tiles for this row slab: single deferred
        # cross-lane reduce, threshold away invalid / padded rows, accumulate
        # directly into the resident (1,1,1) output block.
        @pl.when(j == nj - 1)
        def _():
            rm = jnp.min(rmin_acc, axis=1, keepdims=True)   # (RS, 1)
            part = jnp.sum(jnp.where(rm < _THRESH, rm, 0.0))
            d1_ref[...] = d1_ref[...] + part

    # Very last tile of this pair: deferred cross-sublane reduce of the
    # column minima, threshold, and emit the dist2 partial sum.
    @pl.when((i == ni - 1) & (j == nj - 1))
    def _():
        q = qmin_ref[...]                                   # (8, nq_pad)
        qcol = jnp.min(q, axis=0, keepdims=True)            # (1, nq_pad)
        d2 = jnp.sum(jnp.where(qcol < _THRESH, qcol, 0.0))
        d2_ref[...] = jnp.reshape(d2, (1, 1, 1))


# ---------------------------------------------------------------------------
# Operand construction + pallas_call wrapper
# ---------------------------------------------------------------------------
def _augmented_features(xyz, val, n_pad, side):
    """8-feature augmentation, laid out (pairs, 8, n_pad): features on
    sublanes, points lane-dense (matches the native (8,128) tile).

    xyz: (P, 3, N) f32, val: (P, N) in {0, 1}.
    """
    pad = n_pad - xyz.shape[2]
    xyz = jnp.pad(xyz.astype(jnp.float32), ((0, 0), (0, 0), (0, pad)))
    val = jnp.pad(val.astype(jnp.float32), ((0, 0), (0, pad)))
    sq = jnp.sum(xyz * xyz, axis=1, keepdims=True)          # (P, 1, n_pad)
    ones = jnp.ones_like(sq)
    zeros = jnp.zeros_like(sq)
    pen = (_BIG * (1.0 - val))[:, None, :]                  # (P, 1, n_pad)
    if side == "lhs":
        # [ x, y, z, |p|^2, 1, BIG*(1-vp), 1, 0 ]
        feats = [xyz, sq, ones, pen, ones, zeros]
    else:
        # [ -2x, -2y, -2z, 1, |q|^2, 1, BIG*(1-vq), 0 ]
        feats = [-2.0 * xyz, ones, sq, ones, pen, zeros]
    return jnp.concatenate(feats, axis=1)                   # (P, 8, n_pad)


def _chamfer_partial_sums(p_xyz, p_val, q_xyz, q_val):
    """Per-pair sums of nearest-neighbour squared distances, both directions.

    p_xyz: (P, 3, Np), p_val: (P, Np); q_xyz: (P, 3, Nq), q_val: (P, Nq).
    Returns (d1_sum, d2_sum), each shape (P,) f32.
    """
    num_pairs, _, n_p = p_xyz.shape
    n_q = q_xyz.shape[2]

    tn = min(_TN_MAX, _round_up(n_p, _RS))
    tm = min(_TM_MAX, _round_up(n_q, _CS))
    np_pad = _round_up(n_p, tn)
    nq_pad = _round_up(n_q, tm)

    lhs = _augmented_features(p_xyz, p_val, np_pad, "lhs")   # (P, 8, np_pad)
    rhs = _augmented_features(q_xyz, q_val, nq_pad, "rhs")   # (P, 8, nq_pad)

    grid = (num_pairs, np_pad // tn, nq_pad // tm)
    d1, d2 = pl.pallas_call(
        _chamfer_kernel,
        out_shape=(jax.ShapeDtypeStruct((num_pairs, 1, 1), jnp.float32),
                   jax.ShapeDtypeStruct((num_pairs, 1, 1), jnp.float32)),
        grid_spec=pltpu.PrefetchScalarGridSpec(
            num_scalar_prefetch=0,
            grid=grid,
            in_specs=[
                pl.BlockSpec((1, 8, tn), lambda p, i, j: (p, 0, i)),
                pl.BlockSpec((1, 8, tm), lambda p, i, j: (p, 0, j)),
            ],
            out_specs=[
                pl.BlockSpec((1, 1, 1), lambda p, i, j: (p, 0, 0)),
                pl.BlockSpec((1, 1, 1), lambda p, i, j: (p, 0, 0)),
            ],
            scratch_shapes=[
                pltpu.VMEM((tn, 128), jnp.float32),     # row minima (lane chunks)
                pltpu.VMEM((8, nq_pad), jnp.float32),   # col minima (sublane groups)
            ]),
        compiler_params=pltpu.CompilerParams(
            dimension_semantics=("parallel", "arbitrary", "arbitrary"),
            vmem_limit_bytes=32 * 1024 * 1024),
    )(lhs, rhs)
    return d1[:, 0, 0], d2[:, 0, 0]


# ---------------------------------------------------------------------------
# Masking + back-projection (cheap elementwise; plain JAX wrapper)
# ---------------------------------------------------------------------------
def _scan_directions(h, w, fov_up_deg=3.0, fov_down_deg=-25.0):
    """Unit ray direction per range-image pixel (spherical back-projection).
    # TODO(synk): exact FOV / azimuth convention of the pcf `projection` class
    # is not in the spec; a standard Velodyne-style back-projection is used.
    """
    fov_up = math.radians(fov_up_deg)
    fov_down = math.radians(fov_down_deg)
    az = -math.pi + (jnp.arange(w, dtype=jnp.float32) + 0.5) * (2.0 * math.pi / w)
    el = fov_up - (jnp.arange(h, dtype=jnp.float32) + 0.5) * ((fov_up - fov_down) / h)
    az = az[None, :]
    el = el[:, None]
    x = jnp.cos(el) * jnp.cos(az)
    y = jnp.cos(el) * jnp.sin(az)
    z = jnp.sin(el) * jnp.ones_like(az)
    return jnp.stack([x, y, z], axis=0)                     # (3, H, W)


def _build_point_sets(output, target, cfg):
    """Returns pair-major point sets: p_xyz (T*B, 3, H*W), p_val (T*B, H*W),
    q_xyz (T*B, 3, H*W), q_val (T*B, H*W), plus (T, B)."""
    rv = output['rv'].astype(jnp.float32)
    logits = output['mask_logits'].astype(jnp.float32)
    target = target.astype(jnp.float32)
    b, t, h, w = rv.shape
    dirs = _scan_directions(h, w)

    # projection.get_masked_range_view: keep range where mask head is "valid".
    masked_rv = jnp.where(jax.nn.sigmoid(logits) > 0.5, rv, -1.0)

    sem = target[:, 4]                                      # (B, T, H, W)
    if cfg['TEST']['USE_OBJECT_MASK']:
        factor = sem
    elif cfg['TEST']['USE_GROUND_MASK']:
        factor = (sem == 0.0).astype(jnp.float32)           # logical_not
    else:
        factor = None
    if factor is not None:
        masked_rv = masked_rv * factor

    # projection.get_valid_points_from_range_view equivalent.
    p_xyz = masked_rv[:, :, None] * dirs[None, None]        # (B, T, 3, H, W)
    p_val = (masked_rv > 0.0).astype(jnp.float32)           # (B, T, H, W)

    q_xyz = target[:, 1:4]                                  # (B, 3, T, H, W)
    if factor is not None:
        q_xyz = q_xyz * factor[:, None]
    q_val = (target[:, 0] > 0.0).astype(jnp.float32)        # (B, T, H, W)

    p_xyz = p_xyz.transpose(1, 0, 2, 3, 4).reshape(t * b, 3, h * w)
    p_val = p_val.transpose(1, 0, 2, 3).reshape(t * b, h * w)
    q_xyz = q_xyz.transpose(2, 0, 1, 3, 4).reshape(t * b, 3, h * w)
    q_val = q_val.transpose(1, 0, 2, 3).reshape(t * b, h * w)
    return p_xyz, p_val, q_xyz, q_val, t, b


def semantic_chamfer_distance_forward(output, target, n_samples, cfg):
    """JAX/Pallas equivalent of semantic_chamfer_distance.forward.
    Returns (chamfer_distances dict, chamfer_distances_tensor of shape (T, B))."""
    if n_samples != -1:
        # TODO(synk): n_samples != -1 uses host-side random.sample (dynamic-size
        # random gather); no clean static-shape Pallas equivalent, only the full
        # (n_samples == -1) evaluation is implemented.
        raise NotImplementedError("n_samples != -1 (random subsampling) not supported")

    p_xyz, p_val, q_xyz, q_val, t, b = _build_point_sets(output, target, cfg)
    n_p = jnp.sum(p_val, axis=1)
    n_q = jnp.sum(q_val, axis=1)
    d1_sum, d2_sum = _chamfer_partial_sums(p_xyz, p_val, q_xyz, q_val)
    combined = d1_sum / jnp.maximum(n_p, 1.0) + d2_sum / jnp.maximum(n_q, 1.0)
    chamfer_distances_tensor = combined.reshape(t, b)
    chamfer_distances = {s: jnp.mean(chamfer_distances_tensor[s]) for s in range(t)}
    return chamfer_distances, chamfer_distances_tensor


# ---------------------------------------------------------------------------
# Pure numpy reference (direct pairwise differences, f64)
# ---------------------------------------------------------------------------
def _reference_chamfer(output, target, cfg):
    p_xyz, p_val, q_xyz, q_val, t, b = _build_point_sets(output, target, cfg)
    p_xyz = np.asarray(p_xyz, np.float64)
    q_xyz = np.asarray(q_xyz, np.float64)
    p_val = np.asarray(p_val)
    q_val = np.asarray(q_val)
    res = np.zeros(p_xyz.shape[0], np.float64)
    for p in range(p_xyz.shape[0]):
        po = p_xyz[p].T[p_val[p] > 0.5]                     # (n_p, 3)
        ta = q_xyz[p].T[q_val[p] > 0.5]                     # (n_q, 3)
        d = ((po[:, None, :] - ta[None, :, :]) ** 2).sum(-1)
        res[p] = d.min(axis=1).mean() + d.min(axis=0).mean()
    return res.reshape(t, b)


if __name__ == "__main__":
    key = jax.random.PRNGKey(0)
    ks = jax.random.split(key, 5)

    B, T, H, W = 2, 4, 16, 16
    cfg = {'TEST': {'USE_OBJECT_MASK': False, 'USE_GROUND_MASK': False}}

    # Predicted output: range view + mask logits.
    rv = jax.random.uniform(ks[0], (B, T, H, W), minval=1.0, maxval=50.0,
                            dtype=jnp.float32)
    mask_logits = jax.random.normal(ks[1], (B, T, H, W), dtype=jnp.float32)
    output = {'rv': rv, 'mask_logits': mask_logits}

    # Target tensor (B, 5, T, H, W): ch0 range, ch1:4 xyz, ch4 semantic mask.
    dirs = _scan_directions(H, W)
    t_range = jax.random.uniform(ks[2], (B, T, H, W), minval=2.0, maxval=50.0,
                                 dtype=jnp.float32)
    t_invalid = jax.random.uniform(ks[3], (B, T, H, W)) < 0.25
    t_range = jnp.where(t_invalid, 0.0, t_range)
    t_xyz = t_range[:, :, None] * dirs[None, None]          # (B, T, 3, H, W)
    sem_mask = (jax.random.uniform(ks[4], (B, T, H, W)) < 0.5).astype(jnp.float32)
    target = jnp.concatenate([t_range[:, None],
                              jnp.moveaxis(t_xyz, 2, 1),
                              sem_mask[:, None]], axis=1)   # (B, 5, T, H, W)

    cd_dict, cd_tensor = semantic_chamfer_distance_forward(
        output, target, n_samples=-1, cfg=cfg)
    jax.block_until_ready(cd_tensor)

    ref_tensor = _reference_chamfer(output, target, cfg)
    assert cd_tensor.shape == (T, B)
    np.testing.assert_allclose(np.asarray(cd_tensor), ref_tensor,
                               rtol=2e-3, atol=1e-2)
    print("KERNEL_OK")
</pallas_src>

<mosaic_0001>
module attributes {stable_mosaic.version = 11 : i64} {
  func.func @_chamfer_kernel(%arg0: i32, %arg1: i32, %arg2: i32, %arg3: memref<1x8x256xf32, #tpu.memory_space<vmem>>, %arg4: memref<1x8x256xf32, #tpu.memory_space<vmem>>, %arg5: memref<1x1x1xf32, #tpu.memory_space<vmem>>, %arg6: memref<1x1x1xf32, #tpu.memory_space<vmem>>, %arg7: memref<256x128xf32, #tpu.memory_space<vmem>>, %arg8: memref<8x256xf32, #tpu.memory_space<vmem>>) attributes {dimension_semantics = [#tpu.dimension_semantics<parallel>, #tpu.dimension_semantics<arbitrary>, #tpu.dimension_semantics<arbitrary>], iteration_bounds = array<i64: 8, 1, 1>, scalar_prefetch = 0 : i64, scratch_operands = 2 : i64, tpu.core_type = #tpu.core_type<tc>, window_params = [{transform_indices = @transform_0, window_bounds = array<i64: 1, 8, 256>}, {transform_indices = @transform_1, window_bounds = array<i64: 1, 8, 256>}, {transform_indices = @transform_2, window_bounds = array<i64: 1, 1, 1>}, {transform_indices = @transform_3, window_bounds = array<i64: 1, 1, 1>}]} {
    %c0_i32 = arith.constant 0 : i32
    %0 = arith.cmpi eq, %arg1, %c0_i32 : i32
    %c0_i32_0 = arith.constant 0 : i32
    %1 = arith.cmpi eq, %arg2, %c0_i32_0 : i32
    %2 = arith.andi %0, %1 : i1
    %3 = arith.extui %2 : i1 to i32
    %c0_i32_1 = arith.constant 0 : i32
    %4 = arith.cmpi ne, %3, %c0_i32_1 : i32
    scf.if %4 {
      %cst_39 = arith.constant 0.000000e+00 : f32
      %126 = vector.broadcast %cst_39 : f32 to vector<1x1x1xf32>
      %c0_40 = arith.constant 0 : index
      %c0_41 = arith.constant 0 : index
      %c0_42 = arith.constant 0 : index
      %127 = vector.load %arg5[%c0_40, %c0_41, %c0_42] : memref<1x1x1xf32, #tpu.memory_space<vmem>>, vector<1x1x1xf32>
      tpu.vector_store %arg5[%c0_40, %c0_41, %c0_42], %126 {strides = array<i32>} : memref<1x1x1xf32, #tpu.memory_space<vmem>>, vector<1x1x1xf32>,
    } else {
    }
    %c0_i32_2 = arith.constant 0 : i32
    %5 = arith.cmpi eq, %arg2, %c0_i32_2 : i32
    %6 = arith.extui %5 : i1 to i32
    %c0_i32_3 = arith.constant 0 : i32
    %7 = arith.cmpi ne, %6, %c0_i32_3 : i32
    scf.if %7 {
      %cst_39 = arith.constant 3.000000e+09 : f32
      %126 = vector.broadcast %cst_39 : f32 to vector<256x128xf32>
      %c0_40 = arith.constant 0 : index
      %c0_41 = arith.constant 0 : index
      %127 = vector.load %arg7[%c0_40, %c0_41] : memref<256x128xf32, #tpu.memory_space<vmem>>, vector<256x128xf32>
      tpu.vector_store %arg7[%c0_40, %c0_41], %126 {strides = array<i32>} : memref<256x128xf32, #tpu.memory_space<vmem>>, vector<256x128xf32>,
    } else {
    }
    %c0_i32_4 = arith.constant 0 : i32
    %8 = arith.cmpi eq, %arg1, %c0_i32_4 : i32
    %9 = arith.extui %8 : i1 to i32
    %c0_i32_5 = arith.constant 0 : i32
    %10 = arith.cmpi ne, %9, %c0_i32_5 : i32
    scf.if %10 {
      %cst_39 = arith.constant 3.000000e+09 : f32
      %126 = vector.broadcast %cst_39 : f32 to vector<8x256xf32>
      %c256_i32_40 = arith.constant 256 : i32
      %127 = arith.muli %arg2, %c256_i32_40 : i32
      %128 = tpu.assume_multiple %127, 256 : i32
      %c0_41 = arith.constant 0 : index
      %129 = arith.index_cast %128 : i32 to index
      %130 = vector.load %arg8[%c0_41, %129] : memref<8x256xf32, #tpu.memory_space<vmem>>, vector<8x256xf32>
      tpu.vector_store %arg8[%c0_41, %129], %126 {strides = array<i32>} : memref<8x256xf32, #tpu.memory_space<vmem>>, vector<8x256xf32>,
    } else {
    }
    %c0 = arith.constant 0 : index
    %c0_6 = arith.constant 0 : index
    %c0_7 = arith.constant 0 : index
    %11 = vector.load %arg3[%c0, %c0_6, %c0_7] : memref<1x8x256xf32, #tpu.memory_space<vmem>>, vector<1x8x128xf32>
    %12 = vector.shape_cast %11 : vector<1x8x128xf32> to vector<8x128xf32>
    %c0_8 = arith.constant 0 : index
    %c0_9 = arith.constant 0 : index
    %13 = vector.load %arg7[%c0_8, %c0_9] : memref<256x128xf32, #tpu.memory_space<vmem>>, vector<128x128xf32>
    %c0_10 = arith.constant 0 : index
    %c0_11 = arith.constant 0 : index
    %c0_12 = arith.constant 0 : index
    %14 = vector.load %arg4[%c0_10, %c0_11, %c0_12] : memref<1x8x256xf32, #tpu.memory_space<vmem>>, vector<1x8x256xf32>
    %15 = vector.shape_cast %14 : vector<1x8x256xf32> to vector<8x256xf32>
    %cst = arith.constant dense<0.000000e+00> : vector<128x256xf32>
    %16 = tpu.matmul %12, %15, %cst {dimension_numbers = #tpu.dot_dimension_numbers<[0], [0], [1], [1], [0, 1, 1, 1], [], []>, precision = #tpu.contract_precision<fp32>} : vector<8x128xf32>, vector<8x256xf32>, vector<128x256xf32> -> vector<128x256xf32>
    %17 = vector.extract_strided_slice %16 {offsets = [0, 0], sizes = [128, 128], strides = [1, 1]} : vector<128x256xf32> to vector<128x128xf32>
    %18 = vector.extract_strided_slice %16 {offsets = [0, 128], sizes = [128, 128], strides = [1, 1]} : vector<128x256xf32> to vector<128x128xf32>
    %19 = arith.minimumf %17, %18 : vector<128x128xf32>
    %20 = arith.minimumf %13, %19 : vector<128x128xf32>
    %21 = vector.extract_strided_slice %16 {offsets = [0, 0], sizes = [8, 256], strides = [1, 1]} : vector<128x256xf32> to vector<8x256xf32>
    %22 = vector.extract_strided_slice %16 {offsets = [8, 0], sizes = [8, 256], strides = [1, 1]} : vector<128x256xf32> to vector<8x256xf32>
    %23 = vector.extract_strided_slice %16 {offsets = [16, 0], sizes = [8, 256], strides = [1, 1]} : vector<128x256xf32> to vector<8x256xf32>
    %24 = vector.extract_strided_slice %16 {offsets = [24, 0], sizes = [8, 256], strides = [1, 1]} : vector<128x256xf32> to vector<8x256xf32>
    %25 = vector.extract_strided_slice %16 {offsets = [32, 0], sizes = [8, 256], strides = [1, 1]} : vector<128x256xf32> to vector<8x256xf32>
    %26 = vector.extract_strided_slice %16 {offsets = [40, 0], sizes = [8, 256], strides = [1, 1]} : vector<128x256xf32> to vector<8x256xf32>
    %27 = vector.extract_strided_slice %16 {offsets = [48, 0], sizes = [8, 256], strides = [1, 1]} : vector<128x256xf32> to vector<8x256xf32>
    %28 = vector.extract_strided_slice %16 {offsets = [56, 0], sizes = [8, 256], strides = [1, 1]} : vector<128x256xf32> to vector<8x256xf32>
    %29 = vector.extract_strided_slice %16 {offsets = [64, 0], sizes = [8, 256], strides = [1, 1]} : vector<128x256xf32> to vector<8x256xf32>
    %30 = vector.extract_strided_slice %16 {offsets = [72, 0], sizes = [8, 256], strides = [1, 1]} : vector<128x256xf32> to vector<8x256xf32>
    %31 = vector.extract_strided_slice %16 {offsets = [80, 0], sizes = [8, 256], strides = [1, 1]} : vector<128x256xf32> to vector<8x256xf32>
    %32 = vector.extract_strided_slice %16 {offsets = [88, 0], sizes = [8, 256], strides = [1, 1]} : vector<128x256xf32> to vector<8x256xf32>
    %33 = vector.extract_strided_slice %16 {offsets = [96, 0], sizes = [8, 256], strides = [1, 1]} : vector<128x256xf32> to vector<8x256xf32>
    %34 = vector.extract_strided_slice %16 {offsets = [104, 0], sizes = [8, 256], strides = [1, 1]} : vector<128x256xf32> to vector<8x256xf32>
    %35 = vector.extract_strided_slice %16 {offsets = [112, 0], sizes = [8, 256], strides = [1, 1]} : vector<128x256xf32> to vector<8x256xf32>
    %36 = vector.extract_strided_slice %16 {offsets = [120, 0], sizes = [8, 256], strides = [1, 1]} : vector<128x256xf32> to vector<8x256xf32>
    %37 = arith.minimumf %21, %22 : vector<8x256xf32>
    %38 = arith.minimumf %23, %24 : vector<8x256xf32>
    %39 = arith.minimumf %25, %26 : vector<8x256xf32>
    %40 = arith.minimumf %27, %28 : vector<8x256xf32>
    %41 = arith.minimumf %29, %30 : vector<8x256xf32>
    %42 = arith.minimumf %31, %32 : vector<8x256xf32>
    %43 = arith.minimumf %33, %34 : vector<8x256xf32>
    %44 = arith.minimumf %35, %36 : vector<8x256xf32>
    %45 = arith.minimumf %37, %38 : vector<8x256xf32>
    %46 = arith.minimumf %39, %40 : vector<8x256xf32>
    %47 = arith.minimumf %41, %42 : vector<8x256xf32>
    %48 = arith.minimumf %43, %44 : vector<8x256xf32>
    %49 = arith.minimumf %45, %46 : vector<8x256xf32>
    %50 = arith.minimumf %47, %48 : vector<8x256xf32>
    %51 = arith.minimumf %49, %50 : vector<8x256xf32>
    %c256_i32 = arith.constant 256 : i32
    %52 = arith.muli %arg2, %c256_i32 : i32
    %c0_i32_13 = arith.constant 0 : i32
    %53 = arith.addi %52, %c0_i32_13 : i32
    %54 = tpu.assume_multiple %53, 256 : i32
    %c0_14 = arith.constant 0 : index
    %55 = arith.index_cast %54 : i32 to index
    %56 = vector.load %arg8[%c0_14, %55] : memref<8x256xf32, #tpu.memory_space<vmem>>, vector<8x256xf32>
    %57 = arith.minimumf %56, %51 : vector<8x256xf32>
    %c0_15 = arith.constant 0 : index
    %58 = arith.index_cast %54 : i32 to index
    %59 = vector.load %arg8[%c0_15, %58] : memref<8x256xf32, #tpu.memory_space<vmem>>, vector<8x256xf32>
    tpu.vector_store %arg8[%c0_15, %58], %57 {strides = array<i32>} : memref<8x256xf32, #tpu.memory_space<vmem>>, vector<8x256xf32>,
    %c0_i32_16 = arith.constant 0 : i32
    %60 = arith.cmpi slt, %arg2, %c0_i32_16 : i32
    %61 = arith.extui %60 : i1 to i32
    %c0_i32_17 = arith.constant 0 : i32
    %62 = arith.cmpi ne, %61, %c0_i32_17 : i32
    scf.if %62 {
      %c0_39 = arith.constant 0 : index
      %c0_40 = arith.constant 0 : index
      %126 = vector.load %arg7[%c0_39, %c0_40] : memref<256x128xf32, #tpu.memory_space<vmem>>, vector<128x128xf32>
      tpu.vector_store %arg7[%c0_39, %c0_40], %20 {strides = array<i32>} : memref<256x128xf32, #tpu.memory_space<vmem>>, vector<128x128xf32>,
    } else {
    }
    %c0_i32_18 = arith.constant 0 : i32
    %63 = arith.cmpi eq, %arg2, %c0_i32_18 : i32
    %64 = arith.extui %63 : i1 to i32
    %c0_i32_19 = arith.constant 0 : i32
    %65 = arith.cmpi ne, %64, %c0_i32_19 : i32
    scf.if %65 {
      %cst_39 = arith.constant dense<0x7F800000> : vector<128xf32>
      %126 = vector.multi_reduction <minimumf>, %20, %cst_39 [1] : vector<128x128xf32> to vector<128xf32>
      %127 = vector.shape_cast %126 : vector<128xf32> to vector<128x1xf32>
      %cst_40 = arith.constant 5.000000e+08 : f32
      %128 = vector.broadcast %cst_40 : f32 to vector<128x1xf32>
      %129 = arith.cmpf olt, %127, %128 : vector<128x1xf32>
      %cst_41 = arith.constant 0.000000e+00 : f32
      %130 = vector.broadcast %cst_41 : f32 to vector<128x1xf32>
      %131 = arith.select %129, %127, %130 : vector<128x1xi1>, vector<128x1xf32>
      %132 = vector.shape_cast %131 : vector<128x1xf32> to vector<1x128x1xf32>
      %cst_42 = arith.constant dense<0.000000e+00> : vector<1xf32>
      %133 = vector.multi_reduction <add>, %132, %cst_42 [1, 2] : vector<1x128x1xf32> to vector<1xf32>
      %134 = vector.shape_cast %133 : vector<1xf32> to vector<1x1x1xf32>
      %135 = vector.extract %134[0, 0, 0] : f32 from vector<1x1x1xf32>
      %c0_43 = arith.constant 0 : index
      %c0_44 = arith.constant 0 : index
      %c0_45 = arith.constant 0 : index
      %136 = vector.load %arg5[%c0_43, %c0_44, %c0_45] : memref<1x1x1xf32, #tpu.memory_space<vmem>>, vector<1x1x1xf32>
      %137 = vector.broadcast %135 : f32 to vector<1x1x1xf32>
      %138 = arith.addf %136, %137 : vector<1x1x1xf32>
      %c0_46 = arith.constant 0 : index
      %c0_47 = arith.constant 0 : index
      %c0_48 = arith.constant 0 : index
      %139 = vector.load %arg5[%c0_46, %c0_47, %c0_48] : memref<1x1x1xf32, #tpu.memory_space<vmem>>, vector<1x1x1xf32>
      tpu.vector_store %arg5[%c0_46, %c0_47, %c0_48], %138 {strides = array<i32>} : memref<1x1x1xf32, #tpu.memory_space<vmem>>, vector<1x1x1xf32>,
    } else {
    }
    %c0_20 = arith.constant 0 : index
    %c0_21 = arith.constant 0 : index
    %c128 = arith.constant 128 : index
    %66 = vector.load %arg3[%c0_20, %c0_21, %c128] : memref<1x8x256xf32, #tpu.memory_space<vmem>>, vector<1x8x128xf32>
    %67 = vector.shape_cast %66 : vector<1x8x128xf32> to vector<8x128xf32>
    %c128_22 = arith.constant 128 : index
    %c0_23 = arith.constant 0 : index
    %68 = vector.load %arg7[%c128_22, %c0_23] : memref<256x128xf32, #tpu.memory_space<vmem>>, vector<128x128xf32>
    %c0_24 = arith.constant 0 : index
    %c0_25 = arith.constant 0 : index
    %c0_26 = arith.constant 0 : index
    %69 = vector.load %arg4[%c0_24, %c0_25, %c0_26] : memref<1x8x256xf32, #tpu.memory_space<vmem>>, vector<1x8x256xf32>
    %70 = vector.shape_cast %69 : vector<1x8x256xf32> to vector<8x256xf32>
    %cst_27 = arith.constant dense<0.000000e+00> : vector<128x256xf32>
    %71 = tpu.matmul %67, %70, %cst_27 {dimension_numbers = #tpu.dot_dimension_numbers<[0], [0], [1], [1], [0, 1, 1, 1], [], []>, precision = #tpu.contract_precision<fp32>} : vector<8x128xf32>, vector<8x256xf32>, vector<128x256xf32> -> vector<128x256xf32>
    %72 = vector.extract_strided_slice %71 {offsets = [0, 0], sizes = [128, 128], strides = [1, 1]} : vector<128x256xf32> to vector<128x128xf32>
    %73 = vector.extract_strided_slice %71 {offsets = [0, 128], sizes = [128, 128], strides = [1, 1]} : vector<128x256xf32> to vector<128x128xf32>
    %74 = arith.minimumf %72, %73 : vector<128x128xf32>
    %75 = arith.minimumf %68, %74 : vector<128x128xf32>
    %76 = vector.extract_strided_slice %71 {offsets = [0, 0], sizes = [8, 256], strides = [1, 1]} : vector<128x256xf32> to vector<8x256xf32>
    %77 = vector.extract_strided_slice %71 {offsets = [8, 0], sizes = [8, 256], strides = [1, 1]} : vector<128x256xf32> to vector<8x256xf32>
    %78 = vector.extract_strided_slice %71 {offsets = [16, 0], sizes = [8, 256], strides = [1, 1]} : vector<128x256xf32> to vector<8x256xf32>
    %79 = vector.extract_strided_slice %71 {offsets = [24, 0], sizes = [8, 256], strides = [1, 1]} : vector<128x256xf32> to vector<8x256xf32>
    %80 = vector.extract_strided_slice %71 {offsets = [32, 0], sizes = [8, 256], strides = [1, 1]} : vector<128x256xf32> to vector<8x256xf32>
    %81 = vector.extract_strided_slice %71 {offsets = [40, 0], sizes = [8, 256], strides = [1, 1]} : vector<128x256xf32> to vector<8x256xf32>
    %82 = vector.extract_strided_slice %71 {offsets = [48, 0], sizes = [8, 256], strides = [1, 1]} : vector<128x256xf32> to vector<8x256xf32>
    %83 = vector.extract_strided_slice %71 {offsets = [56, 0], sizes = [8, 256], strides = [1, 1]} : vector<128x256xf32> to vector<8x256xf32>
    %84 = vector.extract_strided_slice %71 {offsets = [64, 0], sizes = [8, 256], strides = [1, 1]} : vector<128x256xf32> to vector<8x256xf32>
    %85 = vector.extract_strided_slice %71 {offsets = [72, 0], sizes = [8, 256], strides = [1, 1]} : vector<128x256xf32> to vector<8x256xf32>
    %86 = vector.extract_strided_slice %71 {offsets = [80, 0], sizes = [8, 256], strides = [1, 1]} : vector<128x256xf32> to vector<8x256xf32>
    %87 = vector.extract_strided_slice %71 {offsets = [88, 0], sizes = [8, 256], strides = [1, 1]} : vector<128x256xf32> to vector<8x256xf32>
    %88 = vector.extract_strided_slice %71 {offsets = [96, 0], sizes = [8, 256], strides = [1, 1]} : vector<128x256xf32> to vector<8x256xf32>
    %89 = vector.extract_strided_slice %71 {offsets = [104, 0], sizes = [8, 256], strides = [1, 1]} : vector<128x256xf32> to vector<8x256xf32>
    %90 = vector.extract_strided_slice %71 {offsets = [112, 0], sizes = [8, 256], strides = [1, 1]} : vector<128x256xf32> to vector<8x256xf32>
    %91 = vector.extract_strided_slice %71 {offsets = [120, 0], sizes = [8, 256], strides = [1, 1]} : vector<128x256xf32> to vector<8x256xf32>
    %92 = arith.minimumf %76, %77 : vector<8x256xf32>
    %93 = arith.minimumf %78, %79 : vector<8x256xf32>
    %94 = arith.minimumf %80, %81 : vector<8x256xf32>
    %95 = arith.minimumf %82, %83 : vector<8x256xf32>
    %96 = arith.minimumf %84, %85 : vector<8x256xf32>
    %97 = arith.minimumf %86, %87 : vector<8x256xf32>
    %98 = arith.minimumf %88, %89 : vector<8x256xf32>
    %99 = arith.minimumf %90, %91 : vector<8x256xf32>
    %100 = arith.minimumf %92, %93 : vector<8x256xf32>
    %101 = arith.minimumf %94, %95 : vector<8x256xf32>
    %102 = arith.minimumf %96, %97 : vector<8x256xf32>
    %103 = arith.minimumf %98, %99 : vector<8x256xf32>
    %104 = arith.minimumf %100, %101 : vector<8x256xf32>
    %105 = arith.minimumf %102, %103 : vector<8x256xf32>
    %106 = arith.minimumf %104, %105 : vector<8x256xf32>
    %c256_i32_28 = arith.constant 256 : i32
    %107 = arith.muli %arg2, %c256_i32_28 : i32
    %c0_i32_29 = arith.constant 0 : i32
    %108 = arith.addi %107, %c0_i32_29 : i32
    %109 = tpu.assume_multiple %108, 256 : i32
    %c0_30 = arith.constant 0 : index
    %110 = arith.index_cast %109 : i32 to index
    %111 = vector.load %arg8[%c0_30, %110] : memref<8x256xf32, #tpu.memory_space<vmem>>, vector<8x256xf32>
    %112 = arith.minimumf %111, %106 : vector<8x256xf32>
    %c0_31 = arith.constant 0 : index
    %113 = arith.index_cast %109 : i32 to index
    %114 = vector.load %arg8[%c0_31, %113] : memref<8x256xf32, #tpu.memory_space<vmem>>, vector<8x256xf32>
    tpu.vector_store %arg8[%c0_31, %113], %112 {strides = array<i32>} : memref<8x256xf32, #tpu.memory_space<vmem>>, vector<8x256xf32>,
    %c0_i32_32 = arith.constant 0 : i32
    %115 = arith.cmpi slt, %arg2, %c0_i32_32 : i32
    %116 = arith.extui %115 : i1 to i32
    %c0_i32_33 = arith.constant 0 : i32
    %117 = arith.cmpi ne, %116, %c0_i32_33 : i32
    scf.if %117 {
      %c128_39 = arith.constant 128 : index
      %c0_40 = arith.constant 0 : index
      %126 = vector.load %arg7[%c128_39, %c0_40] : memref<256x128xf32, #tpu.memory_space<vmem>>, vector<128x128xf32>
      tpu.vector_store %arg7[%c128_39, %c0_40], %75 {strides = array<i32>} : memref<256x128xf32, #tpu.memory_space<vmem>>, vector<128x128xf32>,
    } else {
    }
    %c0_i32_34 = arith.constant 0 : i32
    %118 = arith.cmpi eq, %arg2, %c0_i32_34 : i32
    %119 = arith.extui %118 : i1 to i32
    %c0_i32_35 = arith.constant 0 : i32
    %120 = arith.cmpi ne, %119, %c0_i32_35 : i32
    scf.if %120 {
      %cst_39 = arith.constant dense<0x7F800000> : vector<128xf32>
      %126 = vector.multi_reduction <minimumf>, %75, %cst_39 [1] : vector<128x128xf32> to vector<128xf32>
      %127 = vector.shape_cast %126 : vector<128xf32> to vector<128x1xf32>
      %cst_40 = arith.constant 5.000000e+08 : f32
      %128 = vector.broadcast %cst_40 : f32 to vector<128x1xf32>
      %129 = arith.cmpf olt, %127, %128 : vector<128x1xf32>
      %cst_41 = arith.constant 0.000000e+00 : f32
      %130 = vector.broadcast %cst_41 : f32 to vector<128x1xf32>
      %131 = arith.select %129, %127, %130 : vector<128x1xi1>, vector<128x1xf32>
      %132 = vector.shape_cast %131 : vector<128x1xf32> to vector<1x128x1xf32>
      %cst_42 = arith.constant dense<0.000000e+00> : vector<1xf32>
      %133 = vector.multi_reduction <add>, %132, %cst_42 [1, 2] : vector<1x128x1xf32> to vector<1xf32>
      %134 = vector.shape_cast %133 : vector<1xf32> to vector<1x1x1xf32>
      %135 = vector.extract %134[0, 0, 0] : f32 from vector<1x1x1xf32>
      %c0_43 = arith.constant 0 : index
      %c0_44 = arith.constant 0 : index
      %c0_45 = arith.constant 0 : index
      %136 = vector.load %arg5[%c0_43, %c0_44, %c0_45] : memref<1x1x1xf32, #tpu.memory_space<vmem>>, vector<1x1x1xf32>
      %137 = vector.broadcast %135 : f32 to vector<1x1x1xf32>
      %138 = arith.addf %136, %137 : vector<1x1x1xf32>
      %c0_46 = arith.constant 0 : index
      %c0_47 = arith.constant 0 : index
      %c0_48 = arith.constant 0 : index
      %139 = vector.load %arg5[%c0_46, %c0_47, %c0_48] : memref<1x1x1xf32, #tpu.memory_space<vmem>>, vector<1x1x1xf32>
      tpu.vector_store %arg5[%c0_46, %c0_47, %c0_48], %138 {strides = array<i32>} : memref<1x1x1xf32, #tpu.memory_space<vmem>>, vector<1x1x1xf32>,
    } else {
    }
    %c0_i32_36 = arith.constant 0 : i32
    %121 = arith.cmpi eq, %arg1, %c0_i32_36 : i32
    %c0_i32_37 = arith.constant 0 : i32
    %122 = arith.cmpi eq, %arg2, %c0_i32_37 : i32
    %123 = arith.andi %121, %122 : i1
    %124 = arith.extui %123 : i1 to i32
    %c0_i32_38 = arith.constant 0 : i32
    %125 = arith.cmpi ne, %124, %c0_i32_38 : i32
    scf.if %125 {
      %c0_39 = arith.constant 0 : index
      %c0_40 = arith.constant 0 : index
      %126 = vector.load %arg8[%c0_39, %c0_40] : memref<8x256xf32, #tpu.memory_space<vmem>>, vector<8x256xf32>
      %cst_41 = arith.constant dense<0x7F800000> : vector<256xf32>
      %127 = vector.multi_reduction <minimumf>, %126, %cst_41 [0] : vector<8x256xf32> to vector<256xf32>
      %128 = vector.shape_cast %127 : vector<256xf32> to vector<1x256xf32>
      %cst_42 = arith.constant 5.000000e+08 : f32
      %129 = vector.broadcast %cst_42 : f32 to vector<1x256xf32>
      %130 = arith.cmpf olt, %128, %129 : vector<1x256xf32>
      %cst_43 = arith.constant 0.000000e+00 : f32
      %131 = vector.broadcast %cst_43 : f32 to vector<1x256xf32>
      %132 = arith.select %130, %128, %131 : vector<1x256xi1>, vector<1x256xf32>
      %133 = vector.shape_cast %132 : vector<1x256xf32> to vector<1x1x256xf32>
      %cst_44 = arith.constant dense<0.000000e+00> : vector<1xf32>
      %134 = vector.multi_reduction <add>, %133, %cst_44 [1, 2] : vector<1x1x256xf32> to vector<1xf32>
      %135 = vector.shape_cast %134 : vector<1xf32> to vector<1x1x1xf32>
      %136 = vector.extract %135[0, 0, 0] : f32 from vector<1x1x1xf32>
      %137 = vector.broadcast %136 : f32 to vector<1x1x1xf32>
      %c0_45 = arith.constant 0 : index
      %c0_46 = arith.constant 0 : index
      %c0_47 = arith.constant 0 : index
      %138 = vector.load %arg6[%c0_45, %c0_46, %c0_47] : memref<1x1x1xf32, #tpu.memory_space<vmem>>, vector<1x1x1xf32>
      tpu.vector_store %arg6[%c0_45, %c0_46, %c0_47], %137 {strides = array<i32>} : memref<1x1x1xf32, #tpu.memory_space<vmem>>, vector<1x1x1xf32>,
    } else {
    }
    return
  }
  func.func @transform_0(%arg0: i32, %arg1: i32, %arg2: i32) -> (i32, i32, i32) {
    %c0_i32 = arith.constant 0 : i32
    %c0_i32_0 = arith.constant 0 : i32
    return %arg0, %c0_i32, %arg1 : i32, i32, i32
  }
  func.func @transform_1(%arg0: i32, %arg1: i32, %arg2: i32) -> (i32, i32, i32) {
    %c0_i32 = arith.constant 0 : i32
    %c0_i32_0 = arith.constant 0 : i32
    return %arg0, %c0_i32, %arg2 : i32, i32, i32
  }
  func.func @transform_2(%arg0: i32, %arg1: i32, %arg2: i32) -> (i32, i32, i32) {
    %c0_i32 = arith.constant 0 : i32
    %c0_i32_0 = arith.constant 0 : i32
    %c0_i32_1 = arith.constant 0 : i32
    return %arg0, %c0_i32, %c0_i32_0 : i32, i32, i32
  }
  func.func @transform_3(%arg0: i32, %arg1: i32, %arg2: i32) -> (i32, i32, i32) {
    %c0_i32 = arith.constant 0 : i32
    %c0_i32_0 = arith.constant 0 : i32
    %c0_i32_1 = arith.constant 0 : i32
    return %arg0, %c0_i32, %c0_i32_0 : i32, i32, i32
  }
}

</mosaic_0001>

<llo_original>
// kernel: tpu_custom_call.1
$region0: #{tpu_custom_call.1}
  #allocation0 [shape = 'u32[]', space=smem, size = 0x4, offset = 0x4, fixed_abs, tag = 'smem constant byte address 0x4 - core index']
  #allocation1 [shape = 'u32[72,128]{1,0:T(1,128)}', space=vmem, size = 0x9000, scoped, tag = 'internal scratch']
  #allocation2 [shape = 'f32[256,128]{1,0:T(8,128)}', space=vmem, size = 0x20000, scoped, tag = 'scratch operand']
  #allocation3 [shape = 'f32[8,256]{1,0:T(8,128)}', space=vmem, size = 0x2000, scoped, tag = 'scratch operand']
  %s0 = inlined_call_operand.hbm [shape: f32[8,8,256], index: 0, kind: input, shape index: {}]
  %s1 = inlined_call_operand.hbm [shape: f32[8,8,256], index: 1, kind: input, shape index: {}]
  %s2 = inlined_call_operand.vmem [shape: f32[8,1,1], index: 2, kind: output, shape index: {0}]
  %s3 = inlined_call_operand.vmem [shape: f32[8,1,1], index: 3, kind: output, shape index: {1}]
  %4 = xla_tuple %s2, %s3
  %s5 = sld [smem:[#allocation0]]
  $region89: #{tpu_custom_call.1} parent=0
    _
  %s7 = ssub.s32 1, %s5
  %s8 = scalar_select 0, %s7, %s5
  $region1: #{tpu_custom_call.1} parent=0
    #allocation4 [shape = 'u8[16384]{0}', space=vmem, size = 0x4000, scoped, tag = 'input window, operand 0']
    #allocation5 [shape = 's32[2]{0}', space=sflag, size = 0x8, scoped, tag = 'scoped memory for tpu_custom_call.1']
    #allocation6 [shape = 'u8[16384]{0}', space=vmem, size = 0x4000, scoped, tag = 'input window, operand 1']
    #allocation7 [shape = 's32[2]{0}', space=sflag, size = 0x8, scoped, tag = 'scoped memory for tpu_custom_call.1']
    %9 = vsyncpa [#allocation5], 0
    %s10 = scalar_lea.sflag [#allocation5], 1
    %11 = vsyncpa %s10, 0
    %12 = vsyncpa [#allocation7], 0
    %s13 = scalar_lea.sflag [#allocation7], 1
    %14 = vsyncpa %s13, 0
    loop: start=0, step=1, limit=10
    $region2: #{tpu_custom_call.1} parent=1 // loop_pre_header
      _
    $region3: #{tpu_custom_call.1} parent=1 // loop_header
      %s16 = sphi 0, %s20
      %p17 = scmp.ge.s32.totalorder %s16, 10
      %s23 = sphi 0, %s42
      %s24 = sphi 0, %s38
      %s25 = sphi 0, %s34
      %s26 = sphi 0, %s23
      %s27 = sphi 0, %s24
      %s28 = sphi 0, %s25
      %s29 = sphi 0, %s26
      %s30 = sphi 0, %s27
      %s31 = sphi 0, %s28
      %s47 = sphi 0, %s49
      %s50 = sphi 0, %s47
      %s51 = sphi 0, %s50
      %s67 = sphi 0, %s51
      %s75 = sphi 0, %s77
      %s78 = sphi 0, %s75
      %s79 = sphi 0, %s78
      %s95 = sphi 0, %s79
      %s101 = sphi 0, %s103
      %s104 = sphi 0, %s101
      %s105 = sphi 0, %s104
      %s121 = sphi 0, %s105
      %s127 = sphi 0, %s129
      %s130 = sphi 0, %s127
      %s131 = sphi 0, %s130
      %s147 = sphi 0, %s131
    $region4: #{tpu_custom_call.1} parent=1 // loop_header_branch
      %19 = sbr.rel (%p17) target = $region8
    $region5: #{tpu_custom_call.1} parent=1 // loop_body
      %s21 = ssub.s32 %s16, 1
      %s22 = ssub.s32 %s16, 2
      %s32 = sadd.s32 1, %s25
      %p33 = scmp.ge.s32.totalorder %s32, 1
      %s34 = scalar_select %p33, 0, %s32
      %s35 = sadd.s32 1, %s24
      %s36 = scalar_select %p33, %s35, %s24
      %p37 = scmp.ge.s32.totalorder %s36, 1
      %s38 = scalar_select %p37, 0, %s36
      %s39 = sadd.s32 1, %s23
      %s40 = scalar_select %p37, %s39, %s23
      %p41 = scmp.ge.s32.totalorder %s40, 8
      %s42 = scalar_select %p41, 0, %s40
      %s43 = ssub.s32 %s23, %s42
      %s44 = ssub.s32 %s24, %s38
      %s45 = sor.u32 %s43, %s44
      %p46 = scmp.eq.s32.totalorder %s45, 0
      %s48 = sadd.s32 %s47, 1
      %s49 = scalar_select %p46, %s47, %s48
      %p52 = pneg %p46
      %p53 = scmp.eq.s32.totalorder %s16, 7
      %p54 = por %p52, %p53
      %p55 = scmp.ne.s32.totalorder %s47, %s50
      %p56 = scmp.eq.s32.totalorder %s16, 0
      %p57 = por %p55, %p56
      %p58 = scmp.ne.s32.totalorder %s47, %s50
      %p59 = scmp.eq.s32.totalorder %s21, 7
      %p60 = por %p58, %p59
      %p61 = scmp.ne.s32.totalorder %s50, %s51
      %p62 = scmp.eq.s32.totalorder %s21, 0
      %p63 = por %p61, %p62
      %p64 = scmp.ne.s32.totalorder %s50, %s51
      %p65 = scmp.eq.s32.totalorder %s22, 7
      %p66 = por %p64, %p65
      %p68 = scmp.ne.s32.totalorder %s51, %s67
      %p69 = scmp.eq.s32.totalorder %s22, 0
      %p70 = por %p68, %p69
      %s71 = ssub.s32 %s23, %s42
      %s72 = ssub.s32 %s25, %s34
      %s73 = sor.u32 %s71, %s72
      %p74 = scmp.eq.s32.totalorder %s73, 0
      %s76 = sadd.s32 %s75, 1
      %s77 = scalar_select %p74, %s75, %s76
      %p80 = pneg %p74
      %p81 = scmp.eq.s32.totalorder %s16, 7
      %p82 = por %p80, %p81
      %p83 = scmp.ne.s32.totalorder %s75, %s78
      %p84 = scmp.eq.s32.totalorder %s16, 0
      %p85 = por %p83, %p84
      %p86 = scmp.ne.s32.totalorder %s75, %s78
      %p87 = scmp.eq.s32.totalorder %s21, 7
      %p88 = por %p86, %p87
      %p89 = scmp.ne.s32.totalorder %s78, %s79
      %p90 = scmp.eq.s32.totalorder %s21, 0
      %p91 = por %p89, %p90
      %p92 = scmp.ne.s32.totalorder %s78, %s79
      %p93 = scmp.eq.s32.totalorder %s22, 7
      %p94 = por %p92, %p93
      %p96 = scmp.ne.s32.totalorder %s79, %s95
      %p97 = scmp.eq.s32.totalorder %s22, 0
      %p98 = por %p96, %p97
      %s99 = ssub.s32 %s23, %s42
      %p100 = scmp.eq.s32.totalorder %s99, 0
      %s102 = sadd.s32 %s101, 1
      %s103 = scalar_select %p100, %s101, %s102
      %p106 = pneg %p100
      %p107 = scmp.eq.s32.totalorder %s16, 7
      %p108 = por %p106, %p107
      %p109 = scmp.ne.s32.totalorder %s101, %s104
      %p110 = scmp.eq.s32.totalorder %s16, 0
      %p111 = por %p109, %p110
      %p112 = scmp.ne.s32.totalorder %s101, %s104
      %p113 = scmp.eq.s32.totalorder %s21, 7
      %p114 = por %p112, %p113
      %p115 = scmp.ne.s32.totalorder %s104, %s105
      %p116 = scmp.eq.s32.totalorder %s21, 0
      %p117 = por %p115, %p116
      %p118 = scmp.ne.s32.totalorder %s104, %s105
      %p119 = scmp.eq.s32.totalorder %s22, 7
      %p120 = por %p118, %p119
      %p122 = scmp.ne.s32.totalorder %s105, %s121
      %p123 = scmp.eq.s32.totalorder %s22, 0
      %p124 = por %p122, %p123
      %s125 = ssub.s32 %s23, %s42
      %p126 = scmp.eq.s32.totalorder %s125, 0
      %s128 = sadd.s32 %s127, 1
      %s129 = scalar_select %p126, %s127, %s128
      %p132 = pneg %p126
      %p133 = scmp.eq.s32.totalorder %s16, 7
      %p134 = por %p132, %p133
      %p135 = scmp.ne.s32.totalorder %s127, %s130
      %p136 = scmp.eq.s32.totalorder %s16, 0
      %p137 = por %p135, %p136
      %p138 = scmp.ne.s32.totalorder %s127, %s130
      %p139 = scmp.eq.s32.totalorder %s21, 7
      %p140 = por %p138, %p139
      %p141 = scmp.ne.s32.totalorder %s130, %s131
      %p142 = scmp.eq.s32.totalorder %s21, 0
      %p143 = por %p141, %p142
      %p144 = scmp.ne.s32.totalorder %s130, %s131
      %p145 = scmp.eq.s32.totalorder %s22, 7
      %p146 = por %p144, %p145
      %p148 = scmp.ne.s32.totalorder %s131, %s147
      %p149 = scmp.eq.s32.totalorder %s22, 0
      %p150 = por %p148, %p149
      %p151 = scmp.le.s32.totalorder 1, %s16
      %p152 = scmp.lt.s32.totalorder %s16, 9
      %p153 = pnand %p151, %p152
      %p154 = pneg %p153
      // Predicated region
      $region9: #{tpu_custom_call.1} parent=5 // pred_check
        _
      $region10: #{tpu_custom_call.1} parent=5 // pred_check_branch
        %156 = sbr.rel (%p153) target = $region12
      $region11: #{tpu_custom_call.1} parent=5 // pred_region
        %s157 = ssub.s32 %s16, 1
      $region12: #{tpu_custom_call.1} parent=5 // pred_fallthru
        _
      %p158 = scmp.lt.s32.totalorder %s16, 8
      // Predicated region
      $region13: #{tpu_custom_call.1} parent=5 // pred_check
        %p159 = pneg %p158
      $region14: #{tpu_custom_call.1} parent=5 // pred_check_branch
        %161 = sbr.rel (%p159) target = $region16
      $region15: #{tpu_custom_call.1} parent=5 // pred_region
        // Predicated region
        $region17: #{tpu_custom_call.1} parent=15 // pred_check
          %p162 = pneg %p57
        $region18: #{tpu_custom_call.1} parent=15 // pred_check_branch
          %164 = sbr.rel (%p162) target = $region20
        $region19: #{tpu_custom_call.1} parent=15 // pred_region
          %s165 = sand.u32 %s47, 1
          %s166 = scalar_lea.sflag [#allocation5], %s165
          %s167 = sand.u32 %s47, 1
          %s168 = smul.addr %s167, 16
          %s169 = scalar_lea.vmem [#allocation4], %s168
          %s170 = smul.u32 2, %s24
          %172 = vsyncadd %s166, 0
          %s173 = smul.addr %s23, 2
          %s174 = sadd.s32 %s170, %s173
          %s175 = smul.addr %s174, 8
          %s176 = scalar_lea.hbm %s0, %s175
          %s178 = sshll.u32 %s176, 4
          %s179 = int_to_ptr.hbm [resolvable:$true] %s178
          %s180 = sshll.u32 %s169, 4
          %s181 = int_to_ptr.vmem [resolvable:$true] %s180
          %183 = dma.hbm_to_vmem [thread:$0]  %s179, 256, %s181, %s166
        $region20: #{tpu_custom_call.1} parent=15 // pred_fallthru
          _
        // Predicated region
        $region21: #{tpu_custom_call.1} parent=15 // pred_check
          %p184 = pneg %p85
        $region22: #{tpu_custom_call.1} parent=15 // pred_check_branch
          %186 = sbr.rel (%p184) target = $region24
        $region23: #{tpu_custom_call.1} parent=15 // pred_region
          %s187 = sand.u32 %s75, 1
          %s188 = scalar_lea.sflag [#allocation7], %s187
          %s189 = sand.u32 %s75, 1
          %s190 = smul.addr %s189, 16
          %s191 = scalar_lea.vmem [#allocation6], %s190
          %s192 = smul.u32 2, %s25
          %194 = vsyncadd %s188, 0
          %s195 = smul.addr %s23, 2
          %s196 = sadd.s32 %s192, %s195
          %s197 = smul.addr %s196, 8
          %s198 = scalar_lea.hbm %s1, %s197
          %s200 = sshll.u32 %s198, 4
          %s201 = int_to_ptr.hbm [resolvable:$true] %s200
          %s202 = sshll.u32 %s191, 4
          %s203 = int_to_ptr.vmem [resolvable:$true] %s202
          %205 = dma.hbm_to_vmem [thread:$0]  %s201, 256, %s203, %s188
        $region24: #{tpu_custom_call.1} parent=15 // pred_fallthru
          _
      $region16: #{tpu_custom_call.1} parent=5 // pred_fallthru
        _
      %p206 = scmp.le.s32.totalorder 1, %s16
      %p207 = scmp.lt.s32.totalorder %s16, 9
      %p208 = pnand %p206, %p207
      %p209 = pneg %p208
      // Predicated region
      $region25: #{tpu_custom_call.1} parent=5 // pred_check
        _
      $region26: #{tpu_custom_call.1} parent=5 // pred_check_branch
        %211 = sbr.rel (%p208) target = $region28
      $region27: #{tpu_custom_call.1} parent=5 // pred_region
        %s212 = ssub.s32 %s16, 1
        %s213 = sand.u32 %s50, 1
        %s214 = scalar_lea.sflag [#allocation5], %s213
        %s215 = sand.u32 %s50, 1
        %s216 = smul.addr %s215, 16
        %s217 = scalar_lea.vmem [#allocation4], %s216
        // Predicated region
        $region29: #{tpu_custom_call.1} parent=27 // pred_check
          %p218 = pneg %p63
        $region30: #{tpu_custom_call.1} parent=27 // pred_check_branch
          %220 = sbr.rel (%p218) target = $region32
        $region31: #{tpu_custom_call.1} parent=27 // pred_region
          %222 = dma.done %s214, 256
        $region32: #{tpu_custom_call.1} parent=27 // pred_fallthru
          _
        %s223 = sand.u32 %s78, 1
        %s224 = scalar_lea.sflag [#allocation7], %s223
        %s225 = sand.u32 %s78, 1
        %s226 = smul.addr %s225, 16
        %s227 = scalar_lea.vmem [#allocation6], %s226
        // Predicated region
        $region33: #{tpu_custom_call.1} parent=27 // pred_check
          %p228 = pneg %p91
        $region34: #{tpu_custom_call.1} parent=27 // pred_check_branch
          %230 = sbr.rel (%p228) target = $region36
        $region35: #{tpu_custom_call.1} parent=27 // pred_region
          %232 = dma.done %s224, 256
        $region36: #{tpu_custom_call.1} parent=27 // pred_fallthru
          _
        %s233 = sand.u32 %s50, 1
        %s234 = scalar_lea.sflag [#allocation5], %s233
        %s235 = sand.u32 %s50, 1
        %s236 = smul.addr %s235, 16
        %s237 = scalar_lea.vmem [#allocation4], %s236
        %p238 = pneg %p63
        %p239 = pneg %p60
        %s240 = sand.u32 %s78, 1
        %s241 = scalar_lea.sflag [#allocation7], %s240
        %s242 = sand.u32 %s78, 1
        %s243 = smul.addr %s242, 16
        %s244 = scalar_lea.vmem [#allocation6], %s243
        %p245 = pneg %p91
        %p246 = pneg %p88
        %p247 = pneg %p117
        %p248 = pneg %p114
        %p249 = scmp.lt.s32.totalorder %s26, 7
        %s250 = scalar_select %p249, %s26, 7
        %s251 = scalar_lea.vmem %s2, %s250
        %p252 = pneg %p143
        %p253 = pneg %p140
        %p254 = scmp.lt.s32.totalorder %s26, 7
        %s255 = scalar_select %p254, %s26, 7
        %s256 = scalar_lea.vmem %s3, %s255
        %s257 = smul.u32 2, %s27
        %s258 = smul.u32 2, %s28
        %p259 = scmp.lt.s32.totalorder %s26, 7
        %s260 = scalar_select %p259, %s26, 7
        %s261 = scalar_lea.vmem %s2, %s260
        %p262 = scmp.lt.s32.totalorder %s26, 7
        %s263 = scalar_select %p262, %s26, 7
        %s264 = scalar_lea.vmem %s3, %s263
        %p265 = scmp.eq.s32.totalorder %s27, 0
        %p266 = scmp.eq.s32.totalorder %s28, 0
        %p267 = pnand %p265, %p266
        %p268 = pneg %p267
        // Predicated region
        $region37: #{tpu_custom_call.1} parent=27 // pred_check
          _
        $region38: #{tpu_custom_call.1} parent=27 // pred_check_branch
          %270 = sbr.rel (%p267) target = $region40
        $region39: #{tpu_custom_call.1} parent=27 // pred_region
          %vm271 = vcmask 0
          %272 = vst.msk [vmem:[%s261] sm:$0x1] %vm271, 0.0
        $region40: #{tpu_custom_call.1} parent=27 // pred_fallthru
          _
        // Predicated region
        $region41: #{tpu_custom_call.1} parent=27 // pred_check
          %p273 = pneg %p266
        $region42: #{tpu_custom_call.1} parent=27 // pred_check_branch
          %275 = sbr.rel (%p273) target = $region44
        $region43: #{tpu_custom_call.1} parent=27 // pred_region
          %276 = vst [vmem:[#allocation2] sm:$0xff] 3e+09
          %277 = vst [vmem:[#allocation2 + $0x8] sm:$0xff] 3e+09
          %278 = vst [vmem:[#allocation2 + $0x10] sm:$0xff] 3e+09
          %279 = vst [vmem:[#allocation2 + $0x18] sm:$0xff] 3e+09
          %280 = vst [vmem:[#allocation2 + $0x20] sm:$0xff] 3e+09
          %281 = vst [vmem:[#allocation2 + $0x28] sm:$0xff] 3e+09
          %282 = vst [vmem:[#allocation2 + $0x30] sm:$0xff] 3e+09
          %283 = vst [vmem:[#allocation2 + $0x38] sm:$0xff] 3e+09
          %284 = vst [vmem:[#allocation2 + $0x40] sm:$0xff] 3e+09
          %285 = vst [vmem:[#allocation2 + $0x48] sm:$0xff] 3e+09
          %286 = vst [vmem:[#allocation2 + $0x50] sm:$0xff] 3e+09
          %287 = vst [vmem:[#allocation2 + $0x58] sm:$0xff] 3e+09
          %288 = vst [vmem:[#allocation2 + $0x60] sm:$0xff] 3e+09
          %289 = vst [vmem:[#allocation2 + $0x68] sm:$0xff] 3e+09
          %290 = vst [vmem:[#allocation2 + $0x70] sm:$0xff] 3e+09
          %291 = vst [vmem:[#allocation2 + $0x78] sm:$0xff] 3e+09
          %292 = vst [vmem:[#allocation2 + $0x80] sm:$0xff] 3e+09
          %293 = vst [vmem:[#allocation2 + $0x88] sm:$0xff] 3e+09
          %294 = vst [vmem:[#allocation2 + $0x90] sm:$0xff] 3e+09
          %295 = vst [vmem:[#allocation2 + $0x98] sm:$0xff] 3e+09
          %296 = vst [vmem:[#allocation2 + $0xa0] sm:$0xff] 3e+09
          %297 = vst [vmem:[#allocation2 + $0xa8] sm:$0xff] 3e+09
          %298 = vst [vmem:[#allocation2 + $0xb0] sm:$0xff] 3e+09
          %299 = vst [vmem:[#allocation2 + $0xb8] sm:$0xff] 3e+09
          %300 = vst [vmem:[#allocation2 + $0xc0] sm:$0xff] 3e+09
          %301 = vst [vmem:[#allocation2 + $0xc8] sm:$0xff] 3e+09
          %302 = vst [vmem:[#allocation2 + $0xd0] sm:$0xff] 3e+09
          %303 = vst [vmem:[#allocation2 + $0xd8] sm:$0xff] 3e+09
          %304 = vst [vmem:[#allocation2 + $0xe0] sm:$0xff] 3e+09
          %305 = vst [vmem:[#allocation2 + $0xe8] sm:$0xff] 3e+09
          %306 = vst [vmem:[#allocation2 + $0xf0] sm:$0xff] 3e+09
          %307 = vst [vmem:[#allocation2 + $0xf8] sm:$0xff] 3e+09
        $region44: #{tpu_custom_call.1} parent=27 // pred_fallthru
          _
        // Predicated region
        $region45: #{tpu_custom_call.1} parent=27 // pred_check
          %p308 = pneg %p265
        $region46: #{tpu_custom_call.1} parent=27 // pred_check_branch
          %310 = sbr.rel (%p308) target = $region48
        $region47: #{tpu_custom_call.1} parent=27 // pred_region
          %s311 = smul.u32 %s28, 256
          %s312 = sshra.s32 %s311, 7
          %s313 = sand.u32 %s311, 127
          %s314 = smul.addr %s312, 8
          %s315 = scalar_lea.vmem [#allocation3], %s314
          %316 = vst [vmem:[%s315] sm:$0xff] 3e+09
          %317 = vst [vmem:[%s315 + $0x8] sm:$0xff] 3e+09
        $region48: #{tpu_custom_call.1} parent=27 // pred_fallthru
          _
        %v318 = vld [vmem:[%s217] sm:$0xff]
        %v319 = vld [vmem:[#allocation2] sm:$0xff]
        %v320 = vld [vmem:[#allocation2 + $0x8] sm:$0xff]
        %v321 = vld [vmem:[#allocation2 + $0x10] sm:$0xff]
        %v322 = vld [vmem:[#allocation2 + $0x18] sm:$0xff]
        %v323 = vld [vmem:[#allocation2 + $0x20] sm:$0xff]
        %v324 = vld [vmem:[#allocation2 + $0x28] sm:$0xff]
        %v325 = vld [vmem:[#allocation2 + $0x30] sm:$0xff]
        %v326 = vld [vmem:[#allocation2 + $0x38] sm:$0xff]
        %v327 = vld [vmem:[#allocation2 + $0x40] sm:$0xff]
        %v328 = vld [vmem:[#allocation2 + $0x48] sm:$0xff]
        %v329 = vld [vmem:[#allocation2 + $0x50] sm:$0xff]
        %v330 = vld [vmem:[#allocation2 + $0x58] sm:$0xff]
        %v331 = vld [vmem:[#allocation2 + $0x60] sm:$0xff]
        %v332 = vld [vmem:[#allocation2 + $0x68] sm:$0xff]
        %v333 = vld [vmem:[#allocation2 + $0x70] sm:$0xff]
        %v334 = vld [vmem:[#allocation2 + $0x78] sm:$0xff]
        %v335 = vld [vmem:[%s227] sm:$0xff]
        %v336 = vld [vmem:[%s227 + $0x8] sm:$0xff]
        %337 = vxpose.xlu0.b32.start [1/16] %v318, 128
        %338 = vxpose.xlu0.b32.cont [2/16] 0.0, 128
        %339 = vxpose.xlu0.b32.cont [3/16] 0.0, 128
        %340 = vxpose.xlu0.b32.cont [4/16] 0.0, 128
        %341 = vxpose.xlu0.b32.cont [5/16] 0.0, 128
        %342 = vxpose.xlu0.b32.cont [6/16] 0.0, 128
        %343 = vxpose.xlu0.b32.cont [7/16] 0.0, 128
        %344 = vxpose.xlu0.b32.cont [8/16] 0.0, 128
        %345 = vxpose.xlu0.b32.cont [9/16] 0.0, 128
        %346 = vxpose.xlu0.b32.cont [10/16] 0.0, 128
        %347 = vxpose.xlu0.b32.cont [11/16] 0.0, 128
        %348 = vxpose.xlu0.b32.cont [12/16] 0.0, 128
        %349 = vxpose.xlu0.b32.cont [13/16] 0.0, 128
        %350 = vxpose.xlu0.b32.cont [14/16] 0.0, 128
        %351 = vxpose.xlu0.b32.cont [15/16] 0.0, 128
        %352 = vxpose.xlu0.b32.end [16/16] 0.0, 128
        %v353 = vpop.trf.xlu0
        %v354 = vpop.trf.xlu0
        %v355 = vpop.trf.xlu0
        %v356 = vpop.trf.xlu0
        %v357 = vpop.trf.xlu0
        %v358 = vpop.trf.xlu0
        %v359 = vpop.trf.xlu0
        %v360 = vpop.trf.xlu0
        %v361 = vpop.trf.xlu0
        %v362 = vpop.trf.xlu0
        %v363 = vpop.trf.xlu0
        %v364 = vpop.trf.xlu0
        %v365 = vpop.trf.xlu0
        %v366 = vpop.trf.xlu0
        %v367 = vpop.trf.xlu0
        %v368 = vpop.trf.xlu0
        %vm369 = vcmask 64512
        %v371 = vsel %vm369, %v353, 0
        %v374 = vsel %vm369, %v354, 0
        %v377 = vsel %vm369, %v355, 0
        %v380 = vsel %vm369, %v356, 0
        %v383 = vsel %vm369, %v357, 0
        %v386 = vsel %vm369, %v358, 0
        %v389 = vsel %vm369, %v359, 0
        %v392 = vsel %vm369, %v360, 0
        %v395 = vsel %vm369, %v361, 0
        %v398 = vsel %vm369, %v362, 0
        %v401 = vsel %vm369, %v363, 0
        %v404 = vsel %vm369, %v364, 0
        %v407 = vsel %vm369, %v365, 0
        %v410 = vsel %vm369, %v366, 0
        %v413 = vsel %vm369, %v367, 0
        %v416 = vsel %vm369, %v368, 0
        %418 = vmatpush.msra.mxu0 0.0
        %419 = vmatpush.msra.mxu0 0.0
        %420 = vmatpush.msra.mxu0 0.0
        %421 = vmatpush.msra.mxu0 0.0
        %422 = vmatpush.msra.mxu0 0.0
        %423 = vmatpush.msra.mxu0 0.0
        %424 = vmatpush.msra.mxu0 0.0
        %425 = vmatpush.msra.mxu0 0.0
        %426 = vmatpush.msra.mxu0 0.0
        %427 = vmatpush.msra.mxu0 0.0
        %428 = vmatpush.msra.mxu0 0.0
        %429 = vmatpush.msra.mxu0 0.0
        %430 = vmatpush.msra.mxu0 0.0
        %431 = vmatpush.msra.mxu0 0.0
        %432 = vmatpush.msra.mxu0 0.0
        %v433 = vand.u32 %v335, 4294901760
        %434 = vmatpush.msra.mxu0 %v433
        %v435 = vand.u32 %v371, 4294901760
        %v436 = vsub.f32 %v371, %v435
        %v437 = vand.u32 %v436, 4294901760
        %v438 = vsub.f32 %v436, %v437
        %v439 = vand.u32 %v438, 4294901760
        %440 = vmatmul.f32.gmra.mxu0 %v439
        %v441 = vpop.f32.mrf.mxu0
        %v442 = vadd.f32 0.0, %v441
        %v443 = vand.u32 %v374, 4294901760
        %v444 = vsub.f32 %v374, %v443
        %v445 = vand.u32 %v444, 4294901760
        %v446 = vsub.f32 %v444, %v445
        %v447 = vand.u32 %v446, 4294901760
        %448 = vmatmul.f32.gmra.mxu0 %v447
        %v449 = vpop.f32.mrf.mxu0
        %v450 = vadd.f32 0.0, %v449
        %v451 = vand.u32 %v377, 4294901760
        %v452 = vsub.f32 %v377, %v451
        %v453 = vand.u32 %v452, 4294901760
        %v454 = vsub.f32 %v452, %v453
        %v455 = vand.u32 %v454, 4294901760
        %456 = vmatmul.f32.gmra.mxu0 %v455
        %v457 = vpop.f32.mrf.mxu0
        %v458 = vadd.f32 0.0, %v457
        %v459 = vand.u32 %v380, 4294901760
        %v460 = vsub.f32 %v380, %v459
        %v461 = vand.u32 %v460, 4294901760
        %v462 = vsub.f32 %v460, %v461
        %v463 = vand.u32 %v462, 4294901760
        %464 = vmatmul.f32.gmra.mxu0 %v463
        %v465 = vpop.f32.mrf.mxu0
        %v466 = vadd.f32 0.0, %v465
        %v467 = vand.u32 %v383, 4294901760
        %v468 = vsub.f32 %v383, %v467
        %v469 = vand.u32 %v468, 4294901760
        %v470 = vsub.f32 %v468, %v469
        %v471 = vand.u32 %v470, 4294901760
        %472 = vmatmul.f32.gmra.mxu0 %v471
        %v473 = vpop.f32.mrf.mxu0
        %v474 = vadd.f32 0.0, %v473
        %v475 = vand.u32 %v386, 4294901760
        %v476 = vsub.f32 %v386, %v475
        %v477 = vand.u32 %v476, 4294901760
        %v478 = vsub.f32 %v476, %v477
        %v479 = vand.u32 %v478, 4294901760
        %480 = vmatmul.f32.gmra.mxu0 %v479
        %v481 = vpop.f32.mrf.mxu0
        %v482 = vadd.f32 0.0, %v481
        %v483 = vand.u32 %v389, 4294901760
        %v484 = vsub.f32 %v389, %v483
        %v485 = vand.u32 %v484, 4294901760
        %v486 = vsub.f32 %v484, %v485
        %v487 = vand.u32 %v486, 4294901760
        %488 = vmatmul.f32.gmra.mxu0 %v487
        %v489 = vpop.f32.mrf.mxu0
        %v490 = vadd.f32 0.0, %v489
        %v491 = vand.u32 %v392, 4294901760
        %v492 = vsub.f32 %v392, %v491
        %v493 = vand.u32 %v492, 4294901760
        %v494 = vsub.f32 %v492, %v493
        %v495 = vand.u32 %v494, 4294901760
        %496 = vmatmul.f32.gmra.mxu0 %v495
        %v497 = vpop.f32.mrf.mxu0
        %v498 = vadd.f32 0.0, %v497
        %v499 = vand.u32 %v395, 4294901760
        %v500 = vsub.f32 %v395, %v499
        %v501 = vand.u32 %v500, 4294901760
        %v502 = vsub.f32 %v500, %v501
        %v503 = vand.u32 %v502, 4294901760
        %504 = vmatmul.f32.gmra.mxu0 %v503
        %v505 = vpop.f32.mrf.mxu0
        %v506 = vadd.f32 0.0, %v505
        %v507 = vand.u32 %v398, 4294901760
        %v508 = vsub.f32 %v398, %v507
        %v509 = vand.u32 %v508, 4294901760
        %v510 = vsub.f32 %v508, %v509
        %v511 = vand.u32 %v510, 4294901760
        %512 = vmatmul.f32.gmra.mxu0 %v511
        %v513 = vpop.f32.mrf.mxu0
        %v514 = vadd.f32 0.0, %v513
        %v515 = vand.u32 %v401, 4294901760
        %v516 = vsub.f32 %v401, %v515
        %v517 = vand.u32 %v516, 4294901760
        %v518 = vsub.f32 %v516, %v517
        %v519 = vand.u32 %v518, 4294901760
        %520 = vmatmul.f32.gmra.mxu0 %v519
        %v521 = vpop.f32.mrf.mxu0
        %v522 = vadd.f32 0.0, %v521
        %v523 = vand.u32 %v404, 4294901760
        %v524 = vsub.f32 %v404, %v523
        %v525 = vand.u32 %v524, 4294901760
        %v526 = vsub.f32 %v524, %v525
        %v527 = vand.u32 %v526, 4294901760
        %528 = vmatmul.f32.gmra.mxu0 %v527
        %v529 = vpop.f32.mrf.mxu0
        %v530 = vadd.f32 0.0, %v529
        %v531 = vand.u32 %v407, 4294901760
        %v532 = vsub.f32 %v407, %v531
        %v533 = vand.u32 %v532, 4294901760
        %v534 = vsub.f32 %v532, %v533
        %v535 = vand.u32 %v534, 4294901760
        %536 = vmatmul.f32.gmra.mxu0 %v535
        %v537 = vpop.f32.mrf.mxu0
        %v538 = vadd.f32 0.0, %v537
        %v539 = vand.u32 %v410, 4294901760
        %v540 = vsub.f32 %v410, %v539
        %v541 = vand.u32 %v540, 4294901760
        %v542 = vsub.f32 %v540, %v541
        %v543 = vand.u32 %v542, 4294901760
        %544 = vmatmul.f32.gmra.mxu0 %v543
        %v545 = vpop.f32.mrf.mxu0
        %v546 = vadd.f32 0.0, %v545
        %v547 = vand.u32 %v413, 4294901760
        %v548 = vsub.f32 %v413, %v547
        %v549 = vand.u32 %v548, 4294901760
        %v550 = vsub.f32 %v548, %v549
        %v551 = vand.u32 %v550, 4294901760
        %552 = vmatmul.f32.gmra.mxu0 %v551
        %v553 = vpop.f32.mrf.mxu0
        %v554 = vadd.f32 0.0, %v553
        %v555 = vand.u32 %v416, 4294901760
        %v556 = vsub.f32 %v416, %v555
        %v557 = vand.u32 %v556, 4294901760
        %v558 = vsub.f32 %v556, %v557
        %v559 = vand.u32 %v558, 4294901760
        %560 = vmatmul.f32.gmra.mxu0 %v559
        %v561 = vpop.f32.mrf.mxu0
        %v562 = vadd.f32 0.0, %v561
        %563 = vdwg.mxu0
        %564 = vmatpush.msra.mxu0 0.0
        %565 = vmatpush.msra.mxu0 0.0
        %566 = vmatpush.msra.mxu0 0.0
        %567 = vmatpush.msra.mxu0 0.0
        %568 = vmatpush.msra.mxu0 0.0
        %569 = vmatpush.msra.mxu0 0.0
        %570 = vmatpush.msra.mxu0 0.0
        %571 = vmatpush.msra.mxu0 0.0
        %572 = vmatpush.msra.mxu0 0.0
        %573 = vmatpush.msra.mxu0 0.0
        %574 = vmatpush.msra.mxu0 0.0
        %575 = vmatpush.msra.mxu0 0.0
        %576 = vmatpush.msra.mxu0 0.0
        %577 = vmatpush.msra.mxu0 0.0
        %578 = vmatpush.msra.mxu0 0.0
        %v579 = vand.u32 %v335, 4294901760
        %v580 = vsub.f32 %v335, %v579
        %v581 = vand.u32 %v580, 4294901760
        %v582 = vsub.f32 %v580, %v581
        %v583 = vand.u32 %v582, 4294901760
        %584 = vmatpush.msra.mxu0 %v583
        %v585 = vand.u32 %v371, 4294901760
        %586 = vmatmul.f32.gmra.mxu0 %v585
        %v587 = vpop.f32.mrf.mxu0
        %v588 = vadd.f32 %v442, %v587
        %v589 = vand.u32 %v374, 4294901760
        %590 = vmatmul.f32.gmra.mxu0 %v589
        %v591 = vpop.f32.mrf.mxu0
        %v592 = vadd.f32 %v450, %v591
        %v593 = vand.u32 %v377, 4294901760
        %594 = vmatmul.f32.gmra.mxu0 %v593
        %v595 = vpop.f32.mrf.mxu0
        %v596 = vadd.f32 %v458, %v595
        %v597 = vand.u32 %v380, 4294901760
        %598 = vmatmul.f32.gmra.mxu0 %v597
        %v599 = vpop.f32.mrf.mxu0
        %v600 = vadd.f32 %v466, %v599
        %v601 = vand.u32 %v383, 4294901760
        %602 = vmatmul.f32.gmra.mxu0 %v601
        %v603 = vpop.f32.mrf.mxu0
        %v604 = vadd.f32 %v474, %v603
        %v605 = vand.u32 %v386, 4294901760
        %606 = vmatmul.f32.gmra.mxu0 %v605
        %v607 = vpop.f32.mrf.mxu0
        %v608 = vadd.f32 %v482, %v607
        %v609 = vand.u32 %v389, 4294901760
        %610 = vmatmul.f32.gmra.mxu0 %v609
        %v611 = vpop.f32.mrf.mxu0
        %v612 = vadd.f32 %v490, %v611
        %v613 = vand.u32 %v392, 4294901760
        %614 = vmatmul.f32.gmra.mxu0 %v613
        %v615 = vpop.f32.mrf.mxu0
        %v616 = vadd.f32 %v498, %v615
        %v617 = vand.u32 %v395, 4294901760
        %618 = vmatmul.f32.gmra.mxu0 %v617
        %v619 = vpop.f32.mrf.mxu0
        %v620 = vadd.f32 %v506, %v619
        %v621 = vand.u32 %v398, 4294901760
        %622 = vmatmul.f32.gmra.mxu0 %v621
        %v623 = vpop.f32.mrf.mxu0
        %v624 = vadd.f32 %v514, %v623
        %v625 = vand.u32 %v401, 4294901760
        %626 = vmatmul.f32.gmra.mxu0 %v625
        %v627 = vpop.f32.mrf.mxu0
        %v628 = vadd.f32 %v522, %v627
        %v629 = vand.u32 %v404, 4294901760
        %630 = vmatmul.f32.gmra.mxu0 %v629
        %v631 = vpop.f32.mrf.mxu0
        %v632 = vadd.f32 %v530, %v631
        %v633 = vand.u32 %v407, 4294901760
        %634 = vmatmul.f32.gmra.mxu0 %v633
        %v635 = vpop.f32.mrf.mxu0
        %v636 = vadd.f32 %v538, %v635
        %v637 = vand.u32 %v410, 4294901760
        %638 = vmatmul.f32.gmra.mxu0 %v637
        %v639 = vpop.f32.mrf.mxu0
        %v640 = vadd.f32 %v546, %v639
        %v641 = vand.u32 %v413, 4294901760
        %642 = vmatmul.f32.gmra.mxu0 %v641
        %v643 = vpop.f32.mrf.mxu0
        %v644 = vadd.f32 %v554, %v643
        %v645 = vand.u32 %v416, 4294901760
        %646 = vmatmul.f32.gmra.mxu0 %v645
        %v647 = vpop.f32.mrf.mxu0
        %v648 = vadd.f32 %v562, %v647
        %649 = vdwg.mxu0
        %650 = vmatpush.msra.mxu0 0.0
        %651 = vmatpush.msra.mxu0 0.0
        %652 = vmatpush.msra.mxu0 0.0
        %653 = vmatpush.msra.mxu0 0.0
        %654 = vmatpush.msra.mxu0 0.0
        %655 = vmatpush.msra.mxu0 0.0
        %656 = vmatpush.msra.mxu0 0.0
        %657 = vmatpush.msra.mxu0 0.0
        %658 = vmatpush.msra.mxu0 0.0
        %659 = vmatpush.msra.mxu0 0.0
        %660 = vmatpush.msra.mxu0 0.0
        %661 = vmatpush.msra.mxu0 0.0
        %662 = vmatpush.msra.mxu0 0.0
        %663 = vmatpush.msra.mxu0 0.0
        %664 = vmatpush.msra.mxu0 0.0
        %v665 = vand.u32 %v335, 4294901760
        %v666 = vsub.f32 %v335, %v665
        %667 = vmatpush.msra.mxu0 %v666
        %v668 = vand.u32 %v371, 4294901760
        %v669 = vsub.f32 %v371, %v668
        %670 = vmatmul.f32.gmra.mxu0 %v669
        %v671 = vpop.f32.mrf.mxu0
        %v672 = vadd.f32 %v588, %v671
        %v673 = vand.u32 %v374, 4294901760
        %v674 = vsub.f32 %v374, %v673
        %675 = vmatmul.f32.gmra.mxu0 %v674
        %v676 = vpop.f32.mrf.mxu0
        %v677 = vadd.f32 %v592, %v676
        %v678 = vand.u32 %v377, 4294901760
        %v679 = vsub.f32 %v377, %v678
        %680 = vmatmul.f32.gmra.mxu0 %v679
        %v681 = vpop.f32.mrf.mxu0
        %v682 = vadd.f32 %v596, %v681
        %v683 = vand.u32 %v380, 4294901760
        %v684 = vsub.f32 %v380, %v683
        %685 = vmatmul.f32.gmra.mxu0 %v684
        %v686 = vpop.f32.mrf.mxu0
        %v687 = vadd.f32 %v600, %v686
        %v688 = vand.u32 %v383, 4294901760
        %v689 = vsub.f32 %v383, %v688
        %690 = vmatmul.f32.gmra.mxu0 %v689
        %v691 = vpop.f32.mrf.mxu0
        %v692 = vadd.f32 %v604, %v691
        %v693 = vand.u32 %v386, 4294901760
        %v694 = vsub.f32 %v386, %v693
        %695 = vmatmul.f32.gmra.mxu0 %v694
        %v696 = vpop.f32.mrf.mxu0
        %v697 = vadd.f32 %v608, %v696
        %v698 = vand.u32 %v389, 4294901760
        %v699 = vsub.f32 %v389, %v698
        %700 = vmatmul.f32.gmra.mxu0 %v699
        %v701 = vpop.f32.mrf.mxu0
        %v702 = vadd.f32 %v612, %v701
        %v703 = vand.u32 %v392, 4294901760
        %v704 = vsub.f32 %v392, %v703
        %705 = vmatmul.f32.gmra.mxu0 %v704
        %v706 = vpop.f32.mrf.mxu0
        %v707 = vadd.f32 %v616, %v706
        %v708 = vand.u32 %v395, 4294901760
        %v709 = vsub.f32 %v395, %v708
        %710 = vmatmul.f32.gmra.mxu0 %v709
        %v711 = vpop.f32.mrf.mxu0
        %v712 = vadd.f32 %v620, %v711
        %v713 = vand.u32 %v398, 4294901760
        %v714 = vsub.f32 %v398, %v713
        %715 = vmatmul.f32.gmra.mxu0 %v714
        %v716 = vpop.f32.mrf.mxu0
        %v717 = vadd.f32 %v624, %v716
        %v718 = vand.u32 %v401, 4294901760
        %v719 = vsub.f32 %v401, %v718
        %720 = vmatmul.f32.gmra.mxu0 %v719
        %v721 = vpop.f32.mrf.mxu0
        %v722 = vadd.f32 %v628, %v721
        %v723 = vand.u32 %v404, 4294901760
        %v724 = vsub.f32 %v404, %v723
        %725 = vmatmul.f32.gmra.mxu0 %v724
        %v726 = vpop.f32.mrf.mxu0
        %v727 = vadd.f32 %v632, %v726
        %v728 = vand.u32 %v407, 4294901760
        %v729 = vsub.f32 %v407, %v728
        %730 = vmatmul.f32.gmra.mxu0 %v729
        %v731 = vpop.f32.mrf.mxu0
        %v732 = vadd.f32 %v636, %v731
        %v733 = vand.u32 %v410, 4294901760
        %v734 = vsub.f32 %v410, %v733
        %735 = vmatmul.f32.gmra.mxu0 %v734
        %v736 = vpop.f32.mrf.mxu0
        %v737 = vadd.f32 %v640, %v736
        %v738 = vand.u32 %v413, 4294901760
        %v739 = vsub.f32 %v413, %v738
        %740 = vmatmul.f32.gmra.mxu0 %v739
        %v741 = vpop.f32.mrf.mxu0
        %v742 = vadd.f32 %v644, %v741
        %v743 = vand.u32 %v416, 4294901760
        %v744 = vsub.f32 %v416, %v743
        %745 = vmatmul.f32.gmra.mxu0 %v744
        %v746 = vpop.f32.mrf.mxu0
        %v747 = vadd.f32 %v648, %v746
        %748 = vdwg.mxu0
        %749 = vmatpush.msra.mxu0 0.0
        %750 = vmatpush.msra.mxu0 0.0
        %751 = vmatpush.msra.mxu0 0.0
        %752 = vmatpush.msra.mxu0 0.0
        %753 = vmatpush.msra.mxu0 0.0
        %754 = vmatpush.msra.mxu0 0.0
        %755 = vmatpush.msra.mxu0 0.0
        %756 = vmatpush.msra.mxu0 0.0
        %757 = vmatpush.msra.mxu0 0.0
        %758 = vmatpush.msra.mxu0 0.0
        %759 = vmatpush.msra.mxu0 0.0
        %760 = vmatpush.msra.mxu0 0.0
        %761 = vmatpush.msra.mxu0 0.0
        %762 = vmatpush.msra.mxu0 0.0
        %763 = vmatpush.msra.mxu0 0.0
        %v764 = vand.u32 %v335, 4294901760
        %765 = vmatpush.msra.mxu0 %v764
        %v766 = vand.u32 %v371, 4294901760
        %v767 = vsub.f32 %v371, %v766
        %v768 = vand.u32 %v767, 4294901760
        %769 = vmatmul.f32.gmra.mxu0 %v768
        %v770 = vpop.f32.mrf.mxu0
        %v771 = vadd.f32 %v672, %v770
        %v772 = vand.u32 %v374, 4294901760
        %v773 = vsub.f32 %v374, %v772
        %v774 = vand.u32 %v773, 4294901760
        %775 = vmatmul.f32.gmra.mxu0 %v774
        %v776 = vpop.f32.mrf.mxu0
        %v777 = vadd.f32 %v677, %v776
        %v778 = vand.u32 %v377, 4294901760
        %v779 = vsub.f32 %v377, %v778
        %v780 = vand.u32 %v779, 4294901760
        %781 = vmatmul.f32.gmra.mxu0 %v780
        %v782 = vpop.f32.mrf.mxu0
        %v783 = vadd.f32 %v682, %v782
        %v784 = vand.u32 %v380, 4294901760
        %v785 = vsub.f32 %v380, %v784
        %v786 = vand.u32 %v785, 4294901760
        %787 = vmatmul.f32.gmra.mxu0 %v786
        %v788 = vpop.f32.mrf.mxu0
        %v789 = vadd.f32 %v687, %v788
        %v790 = vand.u32 %v383, 4294901760
        %v791 = vsub.f32 %v383, %v790
        %v792 = vand.u32 %v791, 4294901760
        %793 = vmatmul.f32.gmra.mxu0 %v792
        %v794 = vpop.f32.mrf.mxu0
        %v795 = vadd.f32 %v692, %v794
        %v796 = vand.u32 %v386, 4294901760
        %v797 = vsub.f32 %v386, %v796
        %v798 = vand.u32 %v797, 4294901760
        %799 = vmatmul.f32.gmra.mxu0 %v798
        %v800 = vpop.f32.mrf.mxu0
        %v801 = vadd.f32 %v697, %v800
        %v802 = vand.u32 %v389, 4294901760
        %v803 = vsub.f32 %v389, %v802
        %v804 = vand.u32 %v803, 4294901760
        %805 = vmatmul.f32.gmra.mxu0 %v804
        %v806 = vpop.f32.mrf.mxu0
        %v807 = vadd.f32 %v702, %v806
        %v808 = vand.u32 %v392, 4294901760
        %v809 = vsub.f32 %v392, %v808
        %v810 = vand.u32 %v809, 4294901760
        %811 = vmatmul.f32.gmra.mxu0 %v810
        %v812 = vpop.f32.mrf.mxu0
        %v813 = vadd.f32 %v707, %v812
        %v814 = vand.u32 %v395, 4294901760
        %v815 = vsub.f32 %v395, %v814
        %v816 = vand.u32 %v815, 4294901760
        %817 = vmatmul.f32.gmra.mxu0 %v816
        %v818 = vpop.f32.mrf.mxu0
        %v819 = vadd.f32 %v712, %v818
        %v820 = vand.u32 %v398, 4294901760
        %v821 = vsub.f32 %v398, %v820
        %v822 = vand.u32 %v821, 4294901760
        %823 = vmatmul.f32.gmra.mxu0 %v822
        %v824 = vpop.f32.mrf.mxu0
        %v825 = vadd.f32 %v717, %v824
        %v826 = vand.u32 %v401, 4294901760
        %v827 = vsub.f32 %v401, %v826
        %v828 = vand.u32 %v827, 4294901760
        %829 = vmatmul.f32.gmra.mxu0 %v828
        %v830 = vpop.f32.mrf.mxu0
        %v831 = vadd.f32 %v722, %v830
        %v832 = vand.u32 %v404, 4294901760
        %v833 = vsub.f32 %v404, %v832
        %v834 = vand.u32 %v833, 4294901760
        %835 = vmatmul.f32.gmra.mxu0 %v834
        %v836 = vpop.f32.mrf.mxu0
        %v837 = vadd.f32 %v727, %v836
        %v838 = vand.u32 %v407, 4294901760
        %v839 = vsub.f32 %v407, %v838
        %v840 = vand.u32 %v839, 4294901760
        %841 = vmatmul.f32.gmra.mxu0 %v840
        %v842 = vpop.f32.mrf.mxu0
        %v843 = vadd.f32 %v732, %v842
        %v844 = vand.u32 %v410, 4294901760
        %v845 = vsub.f32 %v410, %v844
        %v846 = vand.u32 %v845, 4294901760
        %847 = vmatmul.f32.gmra.mxu0 %v846
        %v848 = vpop.f32.mrf.mxu0
        %v849 = vadd.f32 %v737, %v848
        %v850 = vand.u32 %v413, 4294901760
        %v851 = vsub.f32 %v413, %v850
        %v852 = vand.u32 %v851, 4294901760
        %853 = vmatmul.f32.gmra.mxu0 %v852
        %v854 = vpop.f32.mrf.mxu0
        %v855 = vadd.f32 %v742, %v854
        %v856 = vand.u32 %v416, 4294901760
        %v857 = vsub.f32 %v416, %v856
        %v858 = vand.u32 %v857, 4294901760
        %859 = vmatmul.f32.gmra.mxu0 %v858
        %v860 = vpop.f32.mrf.mxu0
        %v861 = vadd.f32 %v747, %v860
        %862 = vdwg.mxu0
        %863 = vmatpush.msra.mxu0 0.0
        %864 = vmatpush.msra.mxu0 0.0
        %865 = vmatpush.msra.mxu0 0.0
        %866 = vmatpush.msra.mxu0 0.0
        %867 = vmatpush.msra.mxu0 0.0
        %868 = vmatpush.msra.mxu0 0.0
        %869 = vmatpush.msra.mxu0 0.0
        %870 = vmatpush.msra.mxu0 0.0
        %871 = vmatpush.msra.mxu0 0.0
        %872 = vmatpush.msra.mxu0 0.0
        %873 = vmatpush.msra.mxu0 0.0
        %874 = vmatpush.msra.mxu0 0.0
        %875 = vmatpush.msra.mxu0 0.0
        %876 = vmatpush.msra.mxu0 0.0
        %877 = vmatpush.msra.mxu0 0.0
        %v878 = vand.u32 %v335, 4294901760
        %v879 = vsub.f32 %v335, %v878
        %v880 = vand.u32 %v879, 4294901760
        %881 = vmatpush.msra.mxu0 %v880
        %v882 = vand.u32 %v371, 4294901760
        %883 = vmatmul.f32.gmra.mxu0 %v882
        %v884 = vpop.f32.mrf.mxu0
        %v885 = vadd.f32 %v771, %v884
        %v886 = vand.u32 %v374, 4294901760
        %887 = vmatmul.f32.gmra.mxu0 %v886
        %v888 = vpop.f32.mrf.mxu0
        %v889 = vadd.f32 %v777, %v888
        %v890 = vand.u32 %v377, 4294901760
        %891 = vmatmul.f32.gmra.mxu0 %v890
        %v892 = vpop.f32.mrf.mxu0
        %v893 = vadd.f32 %v783, %v892
        %v894 = vand.u32 %v380, 4294901760
        %895 = vmatmul.f32.gmra.mxu0 %v894
        %v896 = vpop.f32.mrf.mxu0
        %v897 = vadd.f32 %v789, %v896
        %v898 = vand.u32 %v383, 4294901760
        %899 = vmatmul.f32.gmra.mxu0 %v898
        %v900 = vpop.f32.mrf.mxu0
        %v901 = vadd.f32 %v795, %v900
        %v902 = vand.u32 %v386, 4294901760
        %903 = vmatmul.f32.gmra.mxu0 %v902
        %v904 = vpop.f32.mrf.mxu0
        %v905 = vadd.f32 %v801, %v904
        %v906 = vand.u32 %v389, 4294901760
        %907 = vmatmul.f32.gmra.mxu0 %v906
        %v908 = vpop.f32.mrf.mxu0
        %v909 = vadd.f32 %v807, %v908
        %v910 = vand.u32 %v392, 4294901760
        %911 = vmatmul.f32.gmra.mxu0 %v910
        %v912 = vpop.f32.mrf.mxu0
        %v913 = vadd.f32 %v813, %v912
        %v914 = vand.u32 %v395, 4294901760
        %915 = vmatmul.f32.gmra.mxu0 %v914
        %v916 = vpop.f32.mrf.mxu0
        %v917 = vadd.f32 %v819, %v916
        %v918 = vand.u32 %v398, 4294901760
        %919 = vmatmul.f32.gmra.mxu0 %v918
        %v920 = vpop.f32.mrf.mxu0
        %v921 = vadd.f32 %v825, %v920
        %v922 = vand.u32 %v401, 4294901760
        %923 = vmatmul.f32.gmra.mxu0 %v922
        %v924 = vpop.f32.mrf.mxu0
        %v925 = vadd.f32 %v831, %v924
        %v926 = vand.u32 %v404, 4294901760
        %927 = vmatmul.f32.gmra.mxu0 %v926
        %v928 = vpop.f32.mrf.mxu0
        %v929 = vadd.f32 %v837, %v928
        %v930 = vand.u32 %v407, 4294901760
        %931 = vmatmul.f32.gmra.mxu0 %v930
        %v932 = vpop.f32.mrf.mxu0
        %v933 = vadd.f32 %v843, %v932
        %v934 = vand.u32 %v410, 4294901760
        %935 = vmatmul.f32.gmra.mxu0 %v934
        %v936 = vpop.f32.mrf.mxu0
        %v937 = vadd.f32 %v849, %v936
        %v938 = vand.u32 %v413, 4294901760
        %939 = vmatmul.f32.gmra.mxu0 %v938
        %v940 = vpop.f32.mrf.mxu0
        %v941 = vadd.f32 %v855, %v940
        %v942 = vand.u32 %v416, 4294901760
        %943 = vmatmul.f32.gmra.mxu0 %v942
        %v944 = vpop.f32.mrf.mxu0
        %v945 = vadd.f32 %v861, %v944
        %946 = vdwg.mxu0
        %947 = vmatpush.msra.mxu0 0.0
        %948 = vmatpush.msra.mxu0 0.0
        %949 = vmatpush.msra.mxu0 0.0
        %950 = vmatpush.msra.mxu0 0.0
        %951 = vmatpush.msra.mxu0 0.0
        %952 = vmatpush.msra.mxu0 0.0
        %953 = vmatpush.msra.mxu0 0.0
        %954 = vmatpush.msra.mxu0 0.0
        %955 = vmatpush.msra.mxu0 0.0
        %956 = vmatpush.msra.mxu0 0.0
        %957 = vmatpush.msra.mxu0 0.0
        %958 = vmatpush.msra.mxu0 0.0
        %959 = vmatpush.msra.mxu0 0.0
        %960 = vmatpush.msra.mxu0 0.0
        %961 = vmatpush.msra.mxu0 0.0
        %v962 = vand.u32 %v335, 4294901760
        %963 = vmatpush.msra.mxu0 %v962
        %v964 = vand.u32 %v371, 4294901760
        %965 = vmatmul.f32.gmra.mxu0 %v964
        %v966 = vpop.f32.mrf.mxu0
        %v967 = vadd.f32 %v885, %v966
        %v968 = vand.u32 %v374, 4294901760
        %969 = vmatmul.f32.gmra.mxu0 %v968
        %v970 = vpop.f32.mrf.mxu0
        %v971 = vadd.f32 %v889, %v970
        %v972 = vand.u32 %v377, 4294901760
        %973 = vmatmul.f32.gmra.mxu0 %v972
        %v974 = vpop.f32.mrf.mxu0
        %v975 = vadd.f32 %v893, %v974
        %v976 = vand.u32 %v380, 4294901760
        %977 = vmatmul.f32.gmra.mxu0 %v976
        %v978 = vpop.f32.mrf.mxu0
        %v979 = vadd.f32 %v897, %v978
        %v980 = vand.u32 %v383, 4294901760
        %981 = vmatmul.f32.gmra.mxu0 %v980
        %v982 = vpop.f32.mrf.mxu0
        %v983 = vadd.f32 %v901, %v982
        %v984 = vand.u32 %v386, 4294901760
        %985 = vmatmul.f32.gmra.mxu0 %v984
        %v986 = vpop.f32.mrf.mxu0
        %v987 = vadd.f32 %v905, %v986
        %v988 = vand.u32 %v389, 4294901760
        %989 = vmatmul.f32.gmra.mxu0 %v988
        %v990 = vpop.f32.mrf.mxu0
        %v991 = vadd.f32 %v909, %v990
        %v992 = vand.u32 %v392, 4294901760
        %993 = vmatmul.f32.gmra.mxu0 %v992
        %v994 = vpop.f32.mrf.mxu0
        %v995 = vadd.f32 %v913, %v994
        %v996 = vand.u32 %v395, 4294901760
        %997 = vmatmul.f32.gmra.mxu0 %v996
        %v998 = vpop.f32.mrf.mxu0
        %v999 = vadd.f32 %v917, %v998
        %v1000 = vand.u32 %v398, 4294901760
        %1001 = vmatmul.f32.gmra.mxu0 %v1000
        %v1002 = vpop.f32.mrf.mxu0
        %v1003 = vadd.f32 %v921, %v1002
        %v1004 = vand.u32 %v401, 4294901760
        %1005 = vmatmul.f32.gmra.mxu0 %v1004
        %v1006 = vpop.f32.mrf.mxu0
        %v1007 = vadd.f32 %v925, %v1006
        %v1008 = vand.u32 %v404, 4294901760
        %1009 = vmatmul.f32.gmra.mxu0 %v1008
        %v1010 = vpop.f32.mrf.mxu0
        %v1011 = vadd.f32 %v929, %v1010
        %v1012 = vand.u32 %v407, 4294901760
        %1013 = vmatmul.f32.gmra.mxu0 %v1012
        %v1014 = vpop.f32.mrf.mxu0
        %v1015 = vadd.f32 %v933, %v1014
        %v1016 = vand.u32 %v410, 4294901760
        %1017 = vmatmul.f32.gmra.mxu0 %v1016
        %v1018 = vpop.f32.mrf.mxu0
        %v1019 = vadd.f32 %v937, %v1018
        %v1020 = vand.u32 %v413, 4294901760
        %1021 = vmatmul.f32.gmra.mxu0 %v1020
        %v1022 = vpop.f32.mrf.mxu0
        %v1023 = vadd.f32 %v941, %v1022
        %v1024 = vand.u32 %v416, 4294901760
        %1025 = vmatmul.f32.gmra.mxu0 %v1024
        %v1026 = vpop.f32.mrf.mxu0
        %v1027 = vadd.f32 %v945, %v1026
        %1028 = vdwg.mxu0
        %1029 = vmatpush.msra.mxu0 0.0
        %1030 = vmatpush.msra.mxu0 0.0
        %1031 = vmatpush.msra.mxu0 0.0
        %1032 = vmatpush.msra.mxu0 0.0
        %1033 = vmatpush.msra.mxu0 0.0
        %1034 = vmatpush.msra.mxu0 0.0
        %1035 = vmatpush.msra.mxu0 0.0
        %1036 = vmatpush.msra.mxu0 0.0
        %1037 = vmatpush.msra.mxu0 0.0
        %1038 = vmatpush.msra.mxu0 0.0
        %1039 = vmatpush.msra.mxu0 0.0
        %1040 = vmatpush.msra.mxu0 0.0
        %1041 = vmatpush.msra.mxu0 0.0
        %1042 = vmatpush.msra.mxu0 0.0
        %1043 = vmatpush.msra.mxu0 0.0
        %v1044 = vand.u32 %v336, 4294901760
        %1045 = vmatpush.msra.mxu0 %v1044
        %v1046 = vand.u32 %v371, 4294901760
        %v1047 = vsub.f32 %v371, %v1046
        %v1048 = vand.u32 %v1047, 4294901760
        %v1049 = vsub.f32 %v1047, %v1048
        %v1050 = vand.u32 %v1049, 4294901760
        %1051 = vmatmul.f32.gmra.mxu0 %v1050
        %v1052 = vpop.f32.mrf.mxu0
        %v1053 = vadd.f32 0.0, %v1052
        %v1054 = vand.u32 %v374, 4294901760
        %v1055 = vsub.f32 %v374, %v1054
        %v1056 = vand.u32 %v1055, 4294901760
        %v1057 = vsub.f32 %v1055, %v1056
        %v1058 = vand.u32 %v1057, 4294901760
        %1059 = vmatmul.f32.gmra.mxu0 %v1058
        %v1060 = vpop.f32.mrf.mxu0
        %v1061 = vadd.f32 0.0, %v1060
        %v1062 = vand.u32 %v377, 4294901760
        %v1063 = vsub.f32 %v377, %v1062
        %v1064 = vand.u32 %v1063, 4294901760
        %v1065 = vsub.f32 %v1063, %v1064
        %v1066 = vand.u32 %v1065, 4294901760
        %1067 = vmatmul.f32.gmra.mxu0 %v1066
        %v1068 = vpop.f32.mrf.mxu0
        %v1069 = vadd.f32 0.0, %v1068
        %v1070 = vand.u32 %v380, 4294901760
        %v1071 = vsub.f32 %v380, %v1070
        %v1072 = vand.u32 %v1071, 4294901760
        %v1073 = vsub.f32 %v1071, %v1072
        %v1074 = vand.u32 %v1073, 4294901760
        %1075 = vmatmul.f32.gmra.mxu0 %v1074
        %v1076 = vpop.f32.mrf.mxu0
        %v1077 = vadd.f32 0.0, %v1076
        %v1078 = vand.u32 %v383, 4294901760
        %v1079 = vsub.f32 %v383, %v1078
        %v1080 = vand.u32 %v1079, 4294901760
        %v1081 = vsub.f32 %v1079, %v1080
        %v1082 = vand.u32 %v1081, 4294901760
        %1083 = vmatmul.f32.gmra.mxu0 %v1082
        %v1084 = vpop.f32.mrf.mxu0
        %v1085 = vadd.f32 0.0, %v1084
        %v1086 = vand.u32 %v386, 4294901760
        %v1087 = vsub.f32 %v386, %v1086
        %v1088 = vand.u32 %v1087, 4294901760
        %v1089 = vsub.f32 %v1087, %v1088
        %v1090 = vand.u32 %v1089, 4294901760
        %1091 = vmatmul.f32.gmra.mxu0 %v1090
        %v1092 = vpop.f32.mrf.mxu0
        %v1093 = vadd.f32 0.0, %v1092
        %v1094 = vand.u32 %v389, 4294901760
        %v1095 = vsub.f32 %v389, %v1094
        %v1096 = vand.u32 %v1095, 4294901760
        %v1097 = vsub.f32 %v1095, %v1096
        %v1098 = vand.u32 %v1097, 4294901760
        %1099 = vmatmul.f32.gmra.mxu0 %v1098
        %v1100 = vpop.f32.mrf.mxu0
        %v1101 = vadd.f32 0.0, %v1100
        %v1102 = vand.u32 %v392, 4294901760
        %v1103 = vsub.f32 %v392, %v1102
        %v1104 = vand.u32 %v1103, 4294901760
        %v1105 = vsub.f32 %v1103, %v1104
        %v1106 = vand.u32 %v1105, 4294901760
        %1107 = vmatmul.f32.gmra.mxu0 %v1106
        %v1108 = vpop.f32.mrf.mxu0
        %v1109 = vadd.f32 0.0, %v1108
        %v1110 = vand.u32 %v395, 4294901760
        %v1111 = vsub.f32 %v395, %v1110
        %v1112 = vand.u32 %v1111, 4294901760
        %v1113 = vsub.f32 %v1111, %v1112
        %v1114 = vand.u32 %v1113, 4294901760
        %1115 = vmatmul.f32.gmra.mxu0 %v1114
        %v1116 = vpop.f32.mrf.mxu0
        %v1117 = vadd.f32 0.0, %v1116
        %v1118 = vand.u32 %v398, 4294901760
        %v1119 = vsub.f32 %v398, %v1118
        %v1120 = vand.u32 %v1119, 4294901760
        %v1121 = vsub.f32 %v1119, %v1120
        %v1122 = vand.u32 %v1121, 4294901760
        %1123 = vmatmul.f32.gmra.mxu0 %v1122
        %v1124 = vpop.f32.mrf.mxu0
        %v1125 = vadd.f32 0.0, %v1124
        %v1126 = vand.u32 %v401, 4294901760
        %v1127 = vsub.f32 %v401, %v1126
        %v1128 = vand.u32 %v1127, 4294901760
        %v1129 = vsub.f32 %v1127, %v1128
        %v1130 = vand.u32 %v1129, 4294901760
        %1131 = vmatmul.f32.gmra.mxu0 %v1130
        %v1132 = vpop.f32.mrf.mxu0
        %v1133 = vadd.f32 0.0, %v1132
        %v1134 = vand.u32 %v404, 4294901760
        %v1135 = vsub.f32 %v404, %v1134
        %v1136 = vand.u32 %v1135, 4294901760
        %v1137 = vsub.f32 %v1135, %v1136
        %v1138 = vand.u32 %v1137, 4294901760
        %1139 = vmatmul.f32.gmra.mxu0 %v1138
        %v1140 = vpop.f32.mrf.mxu0
        %v1141 = vadd.f32 0.0, %v1140
        %v1142 = vand.u32 %v407, 4294901760
        %v1143 = vsub.f32 %v407, %v1142
        %v1144 = vand.u32 %v1143, 4294901760
        %v1145 = vsub.f32 %v1143, %v1144
        %v1146 = vand.u32 %v1145, 4294901760
        %1147 = vmatmul.f32.gmra.mxu0 %v1146
        %v1148 = vpop.f32.mrf.mxu0
        %v1149 = vadd.f32 0.0, %v1148
        %v1150 = vand.u32 %v410, 4294901760
        %v1151 = vsub.f32 %v410, %v1150
        %v1152 = vand.u32 %v1151, 4294901760
        %v1153 = vsub.f32 %v1151, %v1152
        %v1154 = vand.u32 %v1153, 4294901760
        %1155 = vmatmul.f32.gmra.mxu0 %v1154
        %v1156 = vpop.f32.mrf.mxu0
        %v1157 = vadd.f32 0.0, %v1156
        %v1158 = vand.u32 %v413, 4294901760
        %v1159 = vsub.f32 %v413, %v1158
        %v1160 = vand.u32 %v1159, 4294901760
        %v1161 = vsub.f32 %v1159, %v1160
        %v1162 = vand.u32 %v1161, 4294901760
        %1163 = vmatmul.f32.gmra.mxu0 %v1162
        %v1164 = vpop.f32.mrf.mxu0
        %v1165 = vadd.f32 0.0, %v1164
        %v1166 = vand.u32 %v416, 4294901760
        %v1167 = vsub.f32 %v416, %v1166
        %v1168 = vand.u32 %v1167, 4294901760
        %v1169 = vsub.f32 %v1167, %v1168
        %v1170 = vand.u32 %v1169, 4294901760
        %1171 = vmatmul.f32.gmra.mxu0 %v1170
        %v1172 = vpop.f32.mrf.mxu0
        %v1173 = vadd.f32 0.0, %v1172
        %1174 = vdwg.mxu0
        %1175 = vmatpush.msra.mxu0 0.0
        %1176 = vmatpush.msra.mxu0 0.0
        %1177 = vmatpush.msra.mxu0 0.0
        %1178 = vmatpush.msra.mxu0 0.0
        %1179 = vmatpush.msra.mxu0 0.0
        %1180 = vmatpush.msra.mxu0 0.0
        %1181 = vmatpush.msra.mxu0 0.0
        %1182 = vmatpush.msra.mxu0 0.0
        %1183 = vmatpush.msra.mxu0 0.0
        %1184 = vmatpush.msra.mxu0 0.0
        %1185 = vmatpush.msra.mxu0 0.0
        %1186 = vmatpush.msra.mxu0 0.0
        %1187 = vmatpush.msra.mxu0 0.0
        %1188 = vmatpush.msra.mxu0 0.0
        %1189 = vmatpush.msra.mxu0 0.0
        %v1190 = vand.u32 %v336, 4294901760
        %v1191 = vsub.f32 %v336, %v1190
        %v1192 = vand.u32 %v1191, 4294901760
        %v1193 = vsub.f32 %v1191, %v1192
        %v1194 = vand.u32 %v1193, 4294901760
        %1195 = vmatpush.msra.mxu0 %v1194
        %v1196 = vand.u32 %v371, 4294901760
        %1197 = vmatmul.f32.gmra.mxu0 %v1196
        %v1198 = vpop.f32.mrf.mxu0
        %v1199 = vadd.f32 %v1053, %v1198
        %v1200 = vand.u32 %v374, 4294901760
        %1201 = vmatmul.f32.gmra.mxu0 %v1200
        %v1202 = vpop.f32.mrf.mxu0
        %v1203 = vadd.f32 %v1061, %v1202
        %v1204 = vand.u32 %v377, 4294901760
        %1205 = vmatmul.f32.gmra.mxu0 %v1204
        %v1206 = vpop.f32.mrf.mxu0
        %v1207 = vadd.f32 %v1069, %v1206
        %v1208 = vand.u32 %v380, 4294901760
        %1209 = vmatmul.f32.gmra.mxu0 %v1208
        %v1210 = vpop.f32.mrf.mxu0
        %v1211 = vadd.f32 %v1077, %v1210
        %v1212 = vand.u32 %v383, 4294901760
        %1213 = vmatmul.f32.gmra.mxu0 %v1212
        %v1214 = vpop.f32.mrf.mxu0
        %v1215 = vadd.f32 %v1085, %v1214
        %v1216 = vand.u32 %v386, 4294901760
        %1217 = vmatmul.f32.gmra.mxu0 %v1216
        %v1218 = vpop.f32.mrf.mxu0
        %v1219 = vadd.f32 %v1093, %v1218
        %v1220 = vand.u32 %v389, 4294901760
        %1221 = vmatmul.f32.gmra.mxu0 %v1220
        %v1222 = vpop.f32.mrf.mxu0
        %v1223 = vadd.f32 %v1101, %v1222
        %v1224 = vand.u32 %v392, 4294901760
        %1225 = vmatmul.f32.gmra.mxu0 %v1224
        %v1226 = vpop.f32.mrf.mxu0
        %v1227 = vadd.f32 %v1109, %v1226
        %v1228 = vand.u32 %v395, 4294901760
        %1229 = vmatmul.f32.gmra.mxu0 %v1228
        %v1230 = vpop.f32.mrf.mxu0
        %v1231 = vadd.f32 %v1117, %v1230
        %v1232 = vand.u32 %v398, 4294901760
        %1233 = vmatmul.f32.gmra.mxu0 %v1232
        %v1234 = vpop.f32.mrf.mxu0
        %v1235 = vadd.f32 %v1125, %v1234
        %v1236 = vand.u32 %v401, 4294901760
        %1237 = vmatmul.f32.gmra.mxu0 %v1236
        %v1238 = vpop.f32.mrf.mxu0
        %v1239 = vadd.f32 %v1133, %v1238
        %v1240 = vand.u32 %v404, 4294901760
        %1241 = vmatmul.f32.gmra.mxu0 %v1240
        %v1242 = vpop.f32.mrf.mxu0
        %v1243 = vadd.f32 %v1141, %v1242
        %v1244 = vand.u32 %v407, 4294901760
        %1245 = vmatmul.f32.gmra.mxu0 %v1244
        %v1246 = vpop.f32.mrf.mxu0
        %v1247 = vadd.f32 %v1149, %v1246
        %v1248 = vand.u32 %v410, 4294901760
        %1249 = vmatmul.f32.gmra.mxu0 %v1248
        %v1250 = vpop.f32.mrf.mxu0
        %v1251 = vadd.f32 %v1157, %v1250
        %v1252 = vand.u32 %v413, 4294901760
        %1253 = vmatmul.f32.gmra.mxu0 %v1252
        %v1254 = vpop.f32.mrf.mxu0
        %v1255 = vadd.f32 %v1165, %v1254
        %v1256 = vand.u32 %v416, 4294901760
        %1257 = vmatmul.f32.gmra.mxu0 %v1256
        %v1258 = vpop.f32.mrf.mxu0
        %v1259 = vadd.f32 %v1173, %v1258
        %1260 = vdwg.mxu0
        %1261 = vmatpush.msra.mxu0 0.0
        %1262 = vmatpush.msra.mxu0 0.0
        %1263 = vmatpush.msra.mxu0 0.0
        %1264 = vmatpush.msra.mxu0 0.0
        %1265 = vmatpush.msra.mxu0 0.0
        %1266 = vmatpush.msra.mxu0 0.0
        %1267 = vmatpush.msra.mxu0 0.0
        %1268 = vmatpush.msra.mxu0 0.0
        %1269 = vmatpush.msra.mxu0 0.0
        %1270 = vmatpush.msra.mxu0 0.0
        %1271 = vmatpush.msra.mxu0 0.0
        %1272 = vmatpush.msra.mxu0 0.0
        %1273 = vmatpush.msra.mxu0 0.0
        %1274 = vmatpush.msra.mxu0 0.0
        %1275 = vmatpush.msra.mxu0 0.0
        %v1276 = vand.u32 %v336, 4294901760
        %v1277 = vsub.f32 %v336, %v1276
        %1278 = vmatpush.msra.mxu0 %v1277
        %v1279 = vand.u32 %v371, 4294901760
        %v1280 = vsub.f32 %v371, %v1279
        %1281 = vmatmul.f32.gmra.mxu0 %v1280
        %v1282 = vpop.f32.mrf.mxu0
        %v1283 = vadd.f32 %v1199, %v1282
        %v1284 = vand.u32 %v374, 4294901760
        %v1285 = vsub.f32 %v374, %v1284
        %1286 = vmatmul.f32.gmra.mxu0 %v1285
        %v1287 = vpop.f32.mrf.mxu0
        %v1288 = vadd.f32 %v1203, %v1287
        %v1289 = vand.u32 %v377, 4294901760
        %v1290 = vsub.f32 %v377, %v1289
        %1291 = vmatmul.f32.gmra.mxu0 %v1290
        %v1292 = vpop.f32.mrf.mxu0
        %v1293 = vadd.f32 %v1207, %v1292
        %v1294 = vand.u32 %v380, 4294901760
        %v1295 = vsub.f32 %v380, %v1294
        %1296 = vmatmul.f32.gmra.mxu0 %v1295
        %v1297 = vpop.f32.mrf.mxu0
        %v1298 = vadd.f32 %v1211, %v1297
        %v1299 = vand.u32 %v383, 4294901760
        %v1300 = vsub.f32 %v383, %v1299
        %1301 = vmatmul.f32.gmra.mxu0 %v1300
        %v1302 = vpop.f32.mrf.mxu0
        %v1303 = vadd.f32 %v1215, %v1302
        %v1304 = vand.u32 %v386, 4294901760
        %v1305 = vsub.f32 %v386, %v1304
        %1306 = vmatmul.f32.gmra.mxu0 %v1305
        %v1307 = vpop.f32.mrf.mxu0
        %v1308 = vadd.f32 %v1219, %v1307
        %v1309 = vand.u32 %v389, 4294901760
        %v1310 = vsub.f32 %v389, %v1309
        %1311 = vmatmul.f32.gmra.mxu0 %v1310
        %v1312 = vpop.f32.mrf.mxu0
        %v1313 = vadd.f32 %v1223, %v1312
        %v1314 = vand.u32 %v392, 4294901760
        %v1315 = vsub.f32 %v392, %v1314
        %1316 = vmatmul.f32.gmra.mxu0 %v1315
        %v1317 = vpop.f32.mrf.mxu0
        %v1318 = vadd.f32 %v1227, %v1317
        %v1319 = vand.u32 %v395, 4294901760
        %v1320 = vsub.f32 %v395, %v1319
        %1321 = vmatmul.f32.gmra.mxu0 %v1320
        %v1322 = vpop.f32.mrf.mxu0
        %v1323 = vadd.f32 %v1231, %v1322
        %v1324 = vand.u32 %v398, 4294901760
        %v1325 = vsub.f32 %v398, %v1324
        %1326 = vmatmul.f32.gmra.mxu0 %v1325
        %v1327 = vpop.f32.mrf.mxu0
        %v1328 = vadd.f32 %v1235, %v1327
        %v1329 = vand.u32 %v401, 4294901760
        %v1330 = vsub.f32 %v401, %v1329
        %1331 = vmatmul.f32.gmra.mxu0 %v1330
        %v1332 = vpop.f32.mrf.mxu0
        %v1333 = vadd.f32 %v1239, %v1332
        %v1334 = vand.u32 %v404, 4294901760
        %v1335 = vsub.f32 %v404, %v1334
        %1336 = vmatmul.f32.gmra.mxu0 %v1335
        %v1337 = vpop.f32.mrf.mxu0
        %v1338 = vadd.f32 %v1243, %v1337
        %v1339 = vand.u32 %v407, 4294901760
        %v1340 = vsub.f32 %v407, %v1339
        %1341 = vmatmul.f32.gmra.mxu0 %v1340
        %v1342 = vpop.f32.mrf.mxu0
        %v1343 = vadd.f32 %v1247, %v1342
        %v1344 = vand.u32 %v410, 4294901760
        %v1345 = vsub.f32 %v410, %v1344
        %1346 = vmatmul.f32.gmra.mxu0 %v1345
        %v1347 = vpop.f32.mrf.mxu0
        %v1348 = vadd.f32 %v1251, %v1347
        %v1349 = vand.u32 %v413, 4294901760
        %v1350 = vsub.f32 %v413, %v1349
        %1351 = vmatmul.f32.gmra.mxu0 %v1350
        %v1352 = vpop.f32.mrf.mxu0
        %v1353 = vadd.f32 %v1255, %v1352
        %v1354 = vand.u32 %v416, 4294901760
        %v1355 = vsub.f32 %v416, %v1354
        %1356 = vmatmul.f32.gmra.mxu0 %v1355
        %v1357 = vpop.f32.mrf.mxu0
        %v1358 = vadd.f32 %v1259, %v1357
        %1359 = vdwg.mxu0
        %1360 = vmatpush.msra.mxu0 0.0
        %1361 = vmatpush.msra.mxu0 0.0
        %1362 = vmatpush.msra.mxu0 0.0
        %1363 = vmatpush.msra.mxu0 0.0
        %1364 = vmatpush.msra.mxu0 0.0
        %1365 = vmatpush.msra.mxu0 0.0
        %1366 = vmatpush.msra.mxu0 0.0
        %1367 = vmatpush.msra.mxu0 0.0
        %1368 = vmatpush.msra.mxu0 0.0
        %1369 = vmatpush.msra.mxu0 0.0
        %1370 = vmatpush.msra.mxu0 0.0
        %1371 = vmatpush.msra.mxu0 0.0
        %1372 = vmatpush.msra.mxu0 0.0
        %1373 = vmatpush.msra.mxu0 0.0
        %1374 = vmatpush.msra.mxu0 0.0
        %v1375 = vand.u32 %v336, 4294901760
        %1376 = vmatpush.msra.mxu0 %v1375
        %v1377 = vand.u32 %v371, 4294901760
        %v1378 = vsub.f32 %v371, %v1377
        %v1379 = vand.u32 %v1378, 4294901760
        %1380 = vmatmul.f32.gmra.mxu0 %v1379
        %v1381 = vpop.f32.mrf.mxu0
        %v1382 = vadd.f32 %v1283, %v1381
        %v1383 = vand.u32 %v374, 4294901760
        %v1384 = vsub.f32 %v374, %v1383
        %v1385 = vand.u32 %v1384, 4294901760
        %1386 = vmatmul.f32.gmra.mxu0 %v1385
        %v1387 = vpop.f32.mrf.mxu0
        %v1388 = vadd.f32 %v1288, %v1387
        %v1389 = vand.u32 %v377, 4294901760
        %v1390 = vsub.f32 %v377, %v1389
        %v1391 = vand.u32 %v1390, 4294901760
        %1392 = vmatmul.f32.gmra.mxu0 %v1391
        %v1393 = vpop.f32.mrf.mxu0
        %v1394 = vadd.f32 %v1293, %v1393
        %v1395 = vand.u32 %v380, 4294901760
        %v1396 = vsub.f32 %v380, %v1395
        %v1397 = vand.u32 %v1396, 4294901760
        %1398 = vmatmul.f32.gmra.mxu0 %v1397
        %v1399 = vpop.f32.mrf.mxu0
        %v1400 = vadd.f32 %v1298, %v1399
        %v1401 = vand.u32 %v383, 4294901760
        %v1402 = vsub.f32 %v383, %v1401
        %v1403 = vand.u32 %v1402, 4294901760
        %1404 = vmatmul.f32.gmra.mxu0 %v1403
        %v1405 = vpop.f32.mrf.mxu0
        %v1406 = vadd.f32 %v1303, %v1405
        %v1407 = vand.u32 %v386, 4294901760
        %v1408 = vsub.f32 %v386, %v1407
        %v1409 = vand.u32 %v1408, 4294901760
        %1410 = vmatmul.f32.gmra.mxu0 %v1409
        %v1411 = vpop.f32.mrf.mxu0
        %v1412 = vadd.f32 %v1308, %v1411
        %v1413 = vand.u32 %v389, 4294901760
        %v1414 = vsub.f32 %v389, %v1413
        %v1415 = vand.u32 %v1414, 4294901760
        %1416 = vmatmul.f32.gmra.mxu0 %v1415
        %v1417 = vpop.f32.mrf.mxu0
        %v1418 = vadd.f32 %v1313, %v1417
        %v1419 = vand.u32 %v392, 4294901760
        %v1420 = vsub.f32 %v392, %v1419
        %v1421 = vand.u32 %v1420, 4294901760
        %1422 = vmatmul.f32.gmra.mxu0 %v1421
        %v1423 = vpop.f32.mrf.mxu0
        %v1424 = vadd.f32 %v1318, %v1423
        %v1425 = vand.u32 %v395, 4294901760
        %v1426 = vsub.f32 %v395, %v1425
        %v1427 = vand.u32 %v1426, 4294901760
        %1428 = vmatmul.f32.gmra.mxu0 %v1427
        %v1429 = vpop.f32.mrf.mxu0
        %v1430 = vadd.f32 %v1323, %v1429
        %v1431 = vand.u32 %v398, 4294901760
        %v1432 = vsub.f32 %v398, %v1431
        %v1433 = vand.u32 %v1432, 4294901760
        %1434 = vmatmul.f32.gmra.mxu0 %v1433
        %v1435 = vpop.f32.mrf.mxu0
        %v1436 = vadd.f32 %v1328, %v1435
        %v1437 = vand.u32 %v401, 4294901760
        %v1438 = vsub.f32 %v401, %v1437
        %v1439 = vand.u32 %v1438, 4294901760
        %1440 = vmatmul.f32.gmra.mxu0 %v1439
        %v1441 = vpop.f32.mrf.mxu0
        %v1442 = vadd.f32 %v1333, %v1441
        %v1443 = vand.u32 %v404, 4294901760
        %v1444 = vsub.f32 %v404, %v1443
        %v1445 = vand.u32 %v1444, 4294901760
        %1446 = vmatmul.f32.gmra.mxu0 %v1445
        %v1447 = vpop.f32.mrf.mxu0
        %v1448 = vadd.f32 %v1338, %v1447
        %v1449 = vand.u32 %v407, 4294901760
        %v1450 = vsub.f32 %v407, %v1449
        %v1451 = vand.u32 %v1450, 4294901760
        %1452 = vmatmul.f32.gmra.mxu0 %v1451
        %v1453 = vpop.f32.mrf.mxu0
        %v1454 = vadd.f32 %v1343, %v1453
        %v1455 = vand.u32 %v410, 4294901760
        %v1456 = vsub.f32 %v410, %v1455
        %v1457 = vand.u32 %v1456, 4294901760
        %1458 = vmatmul.f32.gmra.mxu0 %v1457
        %v1459 = vpop.f32.mrf.mxu0
        %v1460 = vadd.f32 %v1348, %v1459
        %v1461 = vand.u32 %v413, 4294901760
        %v1462 = vsub.f32 %v413, %v1461
        %v1463 = vand.u32 %v1462, 4294901760
        %1464 = vmatmul.f32.gmra.mxu0 %v1463
        %v1465 = vpop.f32.mrf.mxu0
        %v1466 = vadd.f32 %v1353, %v1465
        %v1467 = vand.u32 %v416, 4294901760
        %v1468 = vsub.f32 %v416, %v1467
        %v1469 = vand.u32 %v1468, 4294901760
        %1470 = vmatmul.f32.gmra.mxu0 %v1469
        %v1471 = vpop.f32.mrf.mxu0
        %v1472 = vadd.f32 %v1358, %v1471
        %1473 = vdwg.mxu0
        %1474 = vmatpush.msra.mxu0 0.0
        %1475 = vmatpush.msra.mxu0 0.0
        %1476 = vmatpush.msra.mxu0 0.0
        %1477 = vmatpush.msra.mxu0 0.0
        %1478 = vmatpush.msra.mxu0 0.0
        %1479 = vmatpush.msra.mxu0 0.0
        %1480 = vmatpush.msra.mxu0 0.0
        %1481 = vmatpush.msra.mxu0 0.0
        %1482 = vmatpush.msra.mxu0 0.0
        %1483 = vmatpush.msra.mxu0 0.0
        %1484 = vmatpush.msra.mxu0 0.0
        %1485 = vmatpush.msra.mxu0 0.0
        %1486 = vmatpush.msra.mxu0 0.0
        %1487 = vmatpush.msra.mxu0 0.0
        %1488 = vmatpush.msra.mxu0 0.0
        %v1489 = vand.u32 %v336, 4294901760
        %v1490 = vsub.f32 %v336, %v1489
        %v1491 = vand.u32 %v1490, 4294901760
        %1492 = vmatpush.msra.mxu0 %v1491
        %v1493 = vand.u32 %v371, 4294901760
        %1494 = vmatmul.f32.gmra.mxu0 %v1493
        %v1495 = vpop.f32.mrf.mxu0
        %v1496 = vadd.f32 %v1382, %v1495
        %v1497 = vand.u32 %v374, 4294901760
        %1498 = vmatmul.f32.gmra.mxu0 %v1497
        %v1499 = vpop.f32.mrf.mxu0
        %v1500 = vadd.f32 %v1388, %v1499
        %v1501 = vand.u32 %v377, 4294901760
        %1502 = vmatmul.f32.gmra.mxu0 %v1501
        %v1503 = vpop.f32.mrf.mxu0
        %v1504 = vadd.f32 %v1394, %v1503
        %v1505 = vand.u32 %v380, 4294901760
        %1506 = vmatmul.f32.gmra.mxu0 %v1505
        %v1507 = vpop.f32.mrf.mxu0
        %v1508 = vadd.f32 %v1400, %v1507
        %v1509 = vand.u32 %v383, 4294901760
        %1510 = vmatmul.f32.gmra.mxu0 %v1509
        %v1511 = vpop.f32.mrf.mxu0
        %v1512 = vadd.f32 %v1406, %v1511
        %v1513 = vand.u32 %v386, 4294901760
        %1514 = vmatmul.f32.gmra.mxu0 %v1513
        %v1515 = vpop.f32.mrf.mxu0
        %v1516 = vadd.f32 %v1412, %v1515
        %v1517 = vand.u32 %v389, 4294901760
        %1518 = vmatmul.f32.gmra.mxu0 %v1517
        %v1519 = vpop.f32.mrf.mxu0
        %v1520 = vadd.f32 %v1418, %v1519
        %v1521 = vand.u32 %v392, 4294901760
        %1522 = vmatmul.f32.gmra.mxu0 %v1521
        %v1523 = vpop.f32.mrf.mxu0
        %v1524 = vadd.f32 %v1424, %v1523
        %v1525 = vand.u32 %v395, 4294901760
        %1526 = vmatmul.f32.gmra.mxu0 %v1525
        %v1527 = vpop.f32.mrf.mxu0
        %v1528 = vadd.f32 %v1430, %v1527
        %v1529 = vand.u32 %v398, 4294901760
        %1530 = vmatmul.f32.gmra.mxu0 %v1529
        %v1531 = vpop.f32.mrf.mxu0
        %v1532 = vadd.f32 %v1436, %v1531
        %v1533 = vand.u32 %v401, 4294901760
        %1534 = vmatmul.f32.gmra.mxu0 %v1533
        %v1535 = vpop.f32.mrf.mxu0
        %v1536 = vadd.f32 %v1442, %v1535
        %v1537 = vand.u32 %v404, 4294901760
        %1538 = vmatmul.f32.gmra.mxu0 %v1537
        %v1539 = vpop.f32.mrf.mxu0
        %v1540 = vadd.f32 %v1448, %v1539
        %v1541 = vand.u32 %v407, 4294901760
        %1542 = vmatmul.f32.gmra.mxu0 %v1541
        %v1543 = vpop.f32.mrf.mxu0
        %v1544 = vadd.f32 %v1454, %v1543
        %v1545 = vand.u32 %v410, 4294901760
        %1546 = vmatmul.f32.gmra.mxu0 %v1545
        %v1547 = vpop.f32.mrf.mxu0
        %v1548 = vadd.f32 %v1460, %v1547
        %v1549 = vand.u32 %v413, 4294901760
        %1550 = vmatmul.f32.gmra.mxu0 %v1549
        %v1551 = vpop.f32.mrf.mxu0
        %v1552 = vadd.f32 %v1466, %v1551
        %v1553 = vand.u32 %v416, 4294901760
        %1554 = vmatmul.f32.gmra.mxu0 %v1553
        %v1555 = vpop.f32.mrf.mxu0
        %v1556 = vadd.f32 %v1472, %v1555
        %1557 = vdwg.mxu0
        %1558 = vmatpush.msra.mxu0 0.0
        %1559 = vmatpush.msra.mxu0 0.0
        %1560 = vmatpush.msra.mxu0 0.0
        %1561 = vmatpush.msra.mxu0 0.0
        %1562 = vmatpush.msra.mxu0 0.0
        %1563 = vmatpush.msra.mxu0 0.0
        %1564 = vmatpush.msra.mxu0 0.0
        %1565 = vmatpush.msra.mxu0 0.0
        %1566 = vmatpush.msra.mxu0 0.0
        %1567 = vmatpush.msra.mxu0 0.0
        %1568 = vmatpush.msra.mxu0 0.0
        %1569 = vmatpush.msra.mxu0 0.0
        %1570 = vmatpush.msra.mxu0 0.0
        %1571 = vmatpush.msra.mxu0 0.0
        %1572 = vmatpush.msra.mxu0 0.0
        %v1573 = vand.u32 %v336, 4294901760
        %1574 = vmatpush.msra.mxu0 %v1573
        %v1575 = vand.u32 %v371, 4294901760
        %1576 = vmatmul.f32.gmra.mxu0 %v1575
        %v1577 = vpop.f32.mrf.mxu0
        %v1578 = vadd.f32 %v1496, %v1577
        %v1579 = vand.u32 %v374, 4294901760
        %1580 = vmatmul.f32.gmra.mxu0 %v1579
        %v1581 = vpop.f32.mrf.mxu0
        %v1582 = vadd.f32 %v1500, %v1581
        %v1583 = vand.u32 %v377, 4294901760
        %1584 = vmatmul.f32.gmra.mxu0 %v1583
        %v1585 = vpop.f32.mrf.mxu0
        %v1586 = vadd.f32 %v1504, %v1585
        %v1587 = vand.u32 %v380, 4294901760
        %1588 = vmatmul.f32.gmra.mxu0 %v1587
        %v1589 = vpop.f32.mrf.mxu0
        %v1590 = vadd.f32 %v1508, %v1589
        %v1591 = vand.u32 %v383, 4294901760
        %1592 = vmatmul.f32.gmra.mxu0 %v1591
        %v1593 = vpop.f32.mrf.mxu0
        %v1594 = vadd.f32 %v1512, %v1593
        %v1595 = vand.u32 %v386, 4294901760
        %1596 = vmatmul.f32.gmra.mxu0 %v1595
        %v1597 = vpop.f32.mrf.mxu0
        %v1598 = vadd.f32 %v1516, %v1597
        %v1599 = vand.u32 %v389, 4294901760
        %1600 = vmatmul.f32.gmra.mxu0 %v1599
        %v1601 = vpop.f32.mrf.mxu0
        %v1602 = vadd.f32 %v1520, %v1601
        %v1603 = vand.u32 %v392, 4294901760
        %1604 = vmatmul.f32.gmra.mxu0 %v1603
        %v1605 = vpop.f32.mrf.mxu0
        %v1606 = vadd.f32 %v1524, %v1605
        %v1607 = vand.u32 %v395, 4294901760
        %1608 = vmatmul.f32.gmra.mxu0 %v1607
        %v1609 = vpop.f32.mrf.mxu0
        %v1610 = vadd.f32 %v1528, %v1609
        %v1611 = vand.u32 %v398, 4294901760
        %1612 = vmatmul.f32.gmra.mxu0 %v1611
        %v1613 = vpop.f32.mrf.mxu0
        %v1614 = vadd.f32 %v1532, %v1613
        %v1615 = vand.u32 %v401, 4294901760
        %1616 = vmatmul.f32.gmra.mxu0 %v1615
        %v1617 = vpop.f32.mrf.mxu0
        %v1618 = vadd.f32 %v1536, %v1617
        %v1619 = vand.u32 %v404, 4294901760
        %1620 = vmatmul.f32.gmra.mxu0 %v1619
        %v1621 = vpop.f32.mrf.mxu0
        %v1622 = vadd.f32 %v1540, %v1621
        %v1623 = vand.u32 %v407, 4294901760
        %1624 = vmatmul.f32.gmra.mxu0 %v1623
        %v1625 = vpop.f32.mrf.mxu0
        %v1626 = vadd.f32 %v1544, %v1625
        %v1627 = vand.u32 %v410, 4294901760
        %1628 = vmatmul.f32.gmra.mxu0 %v1627
        %v1629 = vpop.f32.mrf.mxu0
        %v1630 = vadd.f32 %v1548, %v1629
        %v1631 = vand.u32 %v413, 4294901760
        %1632 = vmatmul.f32.gmra.mxu0 %v1631
        %v1633 = vpop.f32.mrf.mxu0
        %v1634 = vadd.f32 %v1552, %v1633
        %v1635 = vand.u32 %v416, 4294901760
        %1636 = vmatmul.f32.gmra.mxu0 %v1635
        %v1637 = vpop.f32.mrf.mxu0
        %v1638 = vadd.f32 %v1556, %v1637
        %1639 = vdwg.mxu0
        %v1640 = vmin.f32 %v967, %v1578
        %v1641 = vmin.f32 %v971, %v1582
        %v1642 = vmin.f32 %v975, %v1586
        %v1643 = vmin.f32 %v979, %v1590
        %v1644 = vmin.f32 %v983, %v1594
        %v1645 = vmin.f32 %v987, %v1598
        %v1646 = vmin.f32 %v991, %v1602
        %v1647 = vmin.f32 %v995, %v1606
        %v1648 = vmin.f32 %v999, %v1610
        %v1649 = vmin.f32 %v1003, %v1614
        %v1650 = vmin.f32 %v1007, %v1618
        %v1651 = vmin.f32 %v1011, %v1622
        %v1652 = vmin.f32 %v1015, %v1626
        %v1653 = vmin.f32 %v1019, %v1630
        %v1654 = vmin.f32 %v1023, %v1634
        %v1655 = vmin.f32 %v1027, %v1638
        %v1656 = vmin.f32 %v319, %v1640
        %v1657 = vmin.f32 %v320, %v1641
        %v1658 = vmin.f32 %v321, %v1642
        %v1659 = vmin.f32 %v322, %v1643
        %v1660 = vmin.f32 %v323, %v1644
        %v1661 = vmin.f32 %v324, %v1645
        %v1662 = vmin.f32 %v325, %v1646
        %v1663 = vmin.f32 %v326, %v1647
        %v1664 = vmin.f32 %v327, %v1648
        %v1665 = vmin.f32 %v328, %v1649
        %v1666 = vmin.f32 %v329, %v1650
        %v1667 = vmin.f32 %v330, %v1651
        %v1668 = vmin.f32 %v331, %v1652
        %v1669 = vmin.f32 %v332, %v1653
        %v1670 = vmin.f32 %v333, %v1654
        %v1671 = vmin.f32 %v334, %v1655
        %v1672 = vmin.f32 %v967, %v971
        %v1673 = vmin.f32 %v1578, %v1582
        %v1674 = vmin.f32 %v975, %v979
        %v1675 = vmin.f32 %v1586, %v1590
        %v1676 = vmin.f32 %v983, %v987
        %v1677 = vmin.f32 %v1594, %v1598
        %v1678 = vmin.f32 %v991, %v995
        %v1679 = vmin.f32 %v1602, %v1606
        %v1680 = vmin.f32 %v999, %v1003
        %v1681 = vmin.f32 %v1610, %v1614
        %v1682 = vmin.f32 %v1007, %v1011
        %v1683 = vmin.f32 %v1618, %v1622
        %v1684 = vmin.f32 %v1015, %v1019
        %v1685 = vmin.f32 %v1626, %v1630
        %v1686 = vmin.f32 %v1023, %v1027
        %v1687 = vmin.f32 %v1634, %v1638
        %v1688 = vmin.f32 %v1672, %v1674
        %v1689 = vmin.f32 %v1673, %v1675
        %v1690 = vmin.f32 %v1676, %v1678
        %v1691 = vmin.f32 %v1677, %v1679
        %v1692 = vmin.f32 %v1680, %v1682
        %v1693 = vmin.f32 %v1681, %v1683
        %v1694 = vmin.f32 %v1684, %v1686
        %v1695 = vmin.f32 %v1685, %v1687
        %v1696 = vmin.f32 %v1688, %v1690
        %v1697 = vmin.f32 %v1689, %v1691
        %v1698 = vmin.f32 %v1692, %v1694
        %v1699 = vmin.f32 %v1693, %v1695
        %v1700 = vmin.f32 %v1696, %v1698
        %v1701 = vmin.f32 %v1697, %v1699
        %s1702 = smul.u32 %s28, 256
        %s1703 = sshra.s32 %s1702, 7
        %s1704 = sand.u32 %s1702, 127
        %s1705 = smul.addr %s1703, 8
        %s1706 = scalar_lea.vmem [#allocation3], %s1705
        %v1707 = vld [vmem:[%s1706] sm:$0xff]
        %v1708 = vld [vmem:[%s1706 + $0x8] sm:$0xff]
        %v1709 = vmin.f32 %v1707, %v1700
        %v1710 = vmin.f32 %v1708, %v1701
        %1711 = vst [vmem:[%s1706] sm:$0xff] %v1709
        %1712 = vst [vmem:[%s1706 + $0x8] sm:$0xff] %v1710
        %p1713 = scmp.lt.s32.totalorder %s28, 0
        // Predicated region
        $region49: #{tpu_custom_call.1} parent=27 // pred_check
          %p1714 = pneg %p1713
        $region50: #{tpu_custom_call.1} parent=27 // pred_check_branch
          %1716 = sbr.rel (%p1714) target = $region52
        $region51: #{tpu_custom_call.1} parent=27 // pred_region
          %1717 = vst [vmem:[#allocation2] sm:$0xff] %v1656
          %1718 = vst [vmem:[#allocation2 + $0x8] sm:$0xff] %v1657
          %1719 = vst [vmem:[#allocation2 + $0x10] sm:$0xff] %v1658
          %1720 = vst [vmem:[#allocation2 + $0x18] sm:$0xff] %v1659
          %1721 = vst [vmem:[#allocation2 + $0x20] sm:$0xff] %v1660
          %1722 = vst [vmem:[#allocation2 + $0x28] sm:$0xff] %v1661
          %1723 = vst [vmem:[#allocation2 + $0x30] sm:$0xff] %v1662
          %1724 = vst [vmem:[#allocation2 + $0x38] sm:$0xff] %v1663
          %1725 = vst [vmem:[#allocation2 + $0x40] sm:$0xff] %v1664
          %1726 = vst [vmem:[#allocation2 + $0x48] sm:$0xff] %v1665
          %1727 = vst [vmem:[#allocation2 + $0x50] sm:$0xff] %v1666
          %1728 = vst [vmem:[#allocation2 + $0x58] sm:$0xff] %v1667
          %1729 = vst [vmem:[#allocation2 + $0x60] sm:$0xff] %v1668
          %1730 = vst [vmem:[#allocation2 + $0x68] sm:$0xff] %v1669
          %1731 = vst [vmem:[#allocation2 + $0x70] sm:$0xff] %v1670
          %1732 = vst [vmem:[#allocation2 + $0x78] sm:$0xff] %v1671
        $region52: #{tpu_custom_call.1} parent=27 // pred_fallthru
          _
        // Predicated region
        $region53: #{tpu_custom_call.1} parent=27 // pred_check
          %p1733 = pneg %p266
        $region54: #{tpu_custom_call.1} parent=27 // pred_check_branch
          %1735 = sbr.rel (%p1733) target = $region56
        $region55: #{tpu_custom_call.1} parent=27 // pred_region
          %1736 = vmin.xlane.f32.xlu0 %v1656
          %v1737 = vpop.xlane.xlu0 %1736
          %1738 = vmin.xlane.f32.xlu0 %v1657
          %v1739 = vpop.xlane.xlu0 %1738
          %1740 = vmin.xlane.f32.xlu0 %v1658
          %v1741 = vpop.xlane.xlu0 %1740
          %1742 = vmin.xlane.f32.xlu0 %v1659
          %v1743 = vpop.xlane.xlu0 %1742
          %1744 = vmin.xlane.f32.xlu0 %v1660
          %v1745 = vpop.xlane.xlu0 %1744
          %1746 = vmin.xlane.f32.xlu0 %v1661
          %v1747 = vpop.xlane.xlu0 %1746
          %1748 = vmin.xlane.f32.xlu0 %v1662
          %v1749 = vpop.xlane.xlu0 %1748
          %1750 = vmin.xlane.f32.xlu0 %v1663
          %v1751 = vpop.xlane.xlu0 %1750
          %1752 = vmin.xlane.f32.xlu0 %v1664
          %v1753 = vpop.xlane.xlu0 %1752
          %1754 = vmin.xlane.f32.xlu0 %v1665
          %v1755 = vpop.xlane.xlu0 %1754
          %1756 = vmin.xlane.f32.xlu0 %v1666
          %v1757 = vpop.xlane.xlu0 %1756
          %1758 = vmin.xlane.f32.xlu0 %v1667
          %v1759 = vpop.xlane.xlu0 %1758
          %1760 = vmin.xlane.f32.xlu0 %v1668
          %v1761 = vpop.xlane.xlu0 %1760
          %1762 = vmin.xlane.f32.xlu0 %v1669
          %v1763 = vpop.xlane.xlu0 %1762
          %1764 = vmin.xlane.f32.xlu0 %v1670
          %v1765 = vpop.xlane.xlu0 %1764
          %1766 = vmin.xlane.f32.xlu0 %v1671
          %v1767 = vpop.xlane.xlu0 %1766
          %vm1768 = vcmp.lt.f32.partialorder %v1737, 5e+08
          %vm1769 = vcmp.lt.f32.partialorder %v1739, 5e+08
          %vm1770 = vcmp.lt.f32.partialorder %v1741, 5e+08
          %vm1771 = vcmp.lt.f32.partialorder %v1743, 5e+08
          %vm1772 = vcmp.lt.f32.partialorder %v1745, 5e+08
          %vm1773 = vcmp.lt.f32.partialorder %v1747, 5e+08
          %vm1774 = vcmp.lt.f32.partialorder %v1749, 5e+08
          %vm1775 = vcmp.lt.f32.partialorder %v1751, 5e+08
          %vm1776 = vcmp.lt.f32.partialorder %v1753, 5e+08
          %vm1777 = vcmp.lt.f32.partialorder %v1755, 5e+08
          %vm1778 = vcmp.lt.f32.partialorder %v1757, 5e+08
          %vm1779 = vcmp.lt.f32.partialorder %v1759, 5e+08
          %vm1780 = vcmp.lt.f32.partialorder %v1761, 5e+08
          %vm1781 = vcmp.lt.f32.partialorder %v1763, 5e+08
          %vm1782 = vcmp.lt.f32.partialorder %v1765, 5e+08
          %vm1783 = vcmp.lt.f32.partialorder %v1767, 5e+08
          %v1784 = vsel %vm1768, %v1737, 0.0
          %v1785 = vsel %vm1769, %v1739, 0.0
          %v1786 = vsel %vm1770, %v1741, 0.0
          %v1787 = vsel %vm1771, %v1743, 0.0
          %v1788 = vsel %vm1772, %v1745, 0.0
          %v1789 = vsel %vm1773, %v1747, 0.0
          %v1790 = vsel %vm1774, %v1749, 0.0
          %v1791 = vsel %vm1775, %v1751, 0.0
          %v1792 = vsel %vm1776, %v1753, 0.0
          %v1793 = vsel %vm1777, %v1755, 0.0
          %v1794 = vsel %vm1778, %v1757, 0.0
          %v1795 = vsel %vm1779, %v1759, 0.0
          %v1796 = vsel %vm1780, %v1761, 0.0
          %v1797 = vsel %vm1781, %v1763, 0.0
          %v1798 = vsel %vm1782, %v1765, 0.0
          %v1799 = vsel %vm1783, %v1767, 0.0
          %vm1800 = vcmask 7168
          %v1801 = vsel %vm1800, %v1784, 0.0
          %v1802 = vsel %vm1800, %v1785, 0.0
          %v1803 = vadd.f32 %v1801, %v1802
          %v1804 = vsel %vm1800, %v1786, 0.0
          %v1805 = vadd.f32 %v1803, %v1804
          %v1806 = vsel %vm1800, %v1787, 0.0
          %v1807 = vadd.f32 %v1805, %v1806
          %v1808 = vsel %vm1800, %v1788, 0.0
          %v1809 = vadd.f32 %v1807, %v1808
          %v1810 = vsel %vm1800, %v1789, 0.0
          %v1811 = vadd.f32 %v1809, %v1810
          %v1812 = vsel %vm1800, %v1790, 0.0
          %v1813 = vadd.f32 %v1811, %v1812
          %v1814 = vsel %vm1800, %v1791, 0.0
          %v1815 = vadd.f32 %v1813, %v1814
          %v1816 = vsel %vm1800, %v1792, 0.0
          %v1817 = vadd.f32 %v1815, %v1816
          %v1818 = vsel %vm1800, %v1793, 0.0
          %v1819 = vadd.f32 %v1817, %v1818
          %v1820 = vsel %vm1800, %v1794, 0.0
          %v1821 = vadd.f32 %v1819, %v1820
          %v1822 = vsel %vm1800, %v1795, 0.0
          %v1823 = vadd.f32 %v1821, %v1822
          %v1824 = vsel %vm1800, %v1796, 0.0
          %v1825 = vadd.f32 %v1823, %v1824
          %v1826 = vsel %vm1800, %v1797, 0.0
          %v1827 = vadd.f32 %v1825, %v1826
          %v1828 = vsel %vm1800, %v1798, 0.0
          %v1829 = vadd.f32 %v1827, %v1828
          %v1830 = vsel %vm1800, %v1799, 0.0
          %v1831 = vadd.f32 %v1829, %v1830
          %1832 = vadd.xlane.f32.xlu0 %v1831
          %v1833 = vpop.xlane.xlu0 %1832
          %v1834 = vrot.slane %v1833, 4
          %v1835 = vadd.f32 %v1833, %v1834
          %v1836 = vrot.slane %v1835, 2
          %v1837 = vadd.f32 %v1835, %v1836
          %v1838 = vrot.slane %v1837, 1
          %v1839 = vadd.f32 %v1837, %v1838
          %s1840 = vtos %v1839
          %v1841 = vld [vmem:[%s261] sm:$0x1]
          %v1842 = vstv %s1840
          %v1843 = vadd.f32 %v1841, %v1842
          %vm1844 = vcmask 0
          %1845 = vst.msk [vmem:[%s261] sm:$0x1] %vm1844, %v1843
        $region56: #{tpu_custom_call.1} parent=27 // pred_fallthru
          _
        %v1846 = vld [vmem:[%s217 + $0x8] sm:$0xff]
        %v1847 = vld [vmem:[#allocation2 + $0x80] sm:$0xff]
        %v1848 = vld [vmem:[#allocation2 + $0x88] sm:$0xff]
        %v1849 = vld [vmem:[#allocation2 + $0x90] sm:$0xff]
        %v1850 = vld [vmem:[#allocation2 + $0x98] sm:$0xff]
        %v1851 = vld [vmem:[#allocation2 + $0xa0] sm:$0xff]
        %v1852 = vld [vmem:[#allocation2 + $0xa8] sm:$0xff]
        %v1853 = vld [vmem:[#allocation2 + $0xb0] sm:$0xff]
        %v1854 = vld [vmem:[#allocation2 + $0xb8] sm:$0xff]
        %v1855 = vld [vmem:[#allocation2 + $0xc0] sm:$0xff]
        %v1856 = vld [vmem:[#allocation2 + $0xc8] sm:$0xff]
        %v1857 = vld [vmem:[#allocation2 + $0xd0] sm:$0xff]
        %v1858 = vld [vmem:[#allocation2 + $0xd8] sm:$0xff]
        %v1859 = vld [vmem:[#allocation2 + $0xe0] sm:$0xff]
        %v1860 = vld [vmem:[#allocation2 + $0xe8] sm:$0xff]
        %v1861 = vld [vmem:[#allocation2 + $0xf0] sm:$0xff]
        %v1862 = vld [vmem:[#allocation2 + $0xf8] sm:$0xff]
        %v1863 = vld [vmem:[%s227] sm:$0xff]
        %v1864 = vld [vmem:[%s227 + $0x8] sm:$0xff]
        %1865 = vxpose.xlu0.b32.start [1/16] %v1846, 128
        %1866 = vxpose.xlu0.b32.cont [2/16] 0.0, 128
        %1867 = vxpose.xlu0.b32.cont [3/16] 0.0, 128
        %1868 = vxpose.xlu0.b32.cont [4/16] 0.0, 128
        %1869 = vxpose.xlu0.b32.cont [5/16] 0.0, 128
        %1870 = vxpose.xlu0.b32.cont [6/16] 0.0, 128
        %1871 = vxpose.xlu0.b32.cont [7/16] 0.0, 128
        %1872 = vxpose.xlu0.b32.cont [8/16] 0.0, 128
        %1873 = vxpose.xlu0.b32.cont [9/16] 0.0, 128
        %1874 = vxpose.xlu0.b32.cont [10/16] 0.0, 128
        %1875 = vxpose.xlu0.b32.cont [11/16] 0.0, 128
        %1876 = vxpose.xlu0.b32.cont [12/16] 0.0, 128
        %1877 = vxpose.xlu0.b32.cont [13/16] 0.0, 128
        %1878 = vxpose.xlu0.b32.cont [14/16] 0.0, 128
        %1879 = vxpose.xlu0.b32.cont [15/16] 0.0, 128
        %1880 = vxpose.xlu0.b32.end [16/16] 0.0, 128
        %v1881 = vpop.trf.xlu0
        %v1882 = vpop.trf.xlu0
        %v1883 = vpop.trf.xlu0
        %v1884 = vpop.trf.xlu0
        %v1885 = vpop.trf.xlu0
        %v1886 = vpop.trf.xlu0
        %v1887 = vpop.trf.xlu0
        %v1888 = vpop.trf.xlu0
        %v1889 = vpop.trf.xlu0
        %v1890 = vpop.trf.xlu0
        %v1891 = vpop.trf.xlu0
        %v1892 = vpop.trf.xlu0
        %v1893 = vpop.trf.xlu0
        %v1894 = vpop.trf.xlu0
        %v1895 = vpop.trf.xlu0
        %v1896 = vpop.trf.xlu0
        %v1898 = vsel %vm369, %v1881, 0
        %v1901 = vsel %vm369, %v1882, 0
        %v1904 = vsel %vm369, %v1883, 0
        %v1907 = vsel %vm369, %v1884, 0
        %v1910 = vsel %vm369, %v1885, 0
        %v1913 = vsel %vm369, %v1886, 0
        %v1916 = vsel %vm369, %v1887, 0
        %v1919 = vsel %vm369, %v1888, 0
        %v1922 = vsel %vm369, %v1889, 0
        %v1925 = vsel %vm369, %v1890, 0
        %v1928 = vsel %vm369, %v1891, 0
        %v1931 = vsel %vm369, %v1892, 0
        %v1934 = vsel %vm369, %v1893, 0
        %v1937 = vsel %vm369, %v1894, 0
        %v1940 = vsel %vm369, %v1895, 0
        %v1943 = vsel %vm369, %v1896, 0
        %1945 = vmatpush.msra.mxu0 0.0
        %1946 = vmatpush.msra.mxu0 0.0
        %1947 = vmatpush.msra.mxu0 0.0
        %1948 = vmatpush.msra.mxu0 0.0
        %1949 = vmatpush.msra.mxu0 0.0
        %1950 = vmatpush.msra.mxu0 0.0
        %1951 = vmatpush.msra.mxu0 0.0
        %1952 = vmatpush.msra.mxu0 0.0
        %1953 = vmatpush.msra.mxu0 0.0
        %1954 = vmatpush.msra.mxu0 0.0
        %1955 = vmatpush.msra.mxu0 0.0
        %1956 = vmatpush.msra.mxu0 0.0
        %1957 = vmatpush.msra.mxu0 0.0
        %1958 = vmatpush.msra.mxu0 0.0
        %1959 = vmatpush.msra.mxu0 0.0
        %v1960 = vand.u32 %v1863, 4294901760
        %1961 = vmatpush.msra.mxu0 %v1960
        %v1962 = vand.u32 %v1898, 4294901760
        %v1963 = vsub.f32 %v1898, %v1962
        %v1964 = vand.u32 %v1963, 4294901760
        %v1965 = vsub.f32 %v1963, %v1964
        %v1966 = vand.u32 %v1965, 4294901760
        %1967 = vmatmul.f32.gmra.mxu0 %v1966
        %v1968 = vpop.f32.mrf.mxu0
        %v1969 = vadd.f32 0.0, %v1968
        %v1970 = vand.u32 %v1901, 4294901760
        %v1971 = vsub.f32 %v1901, %v1970
        %v1972 = vand.u32 %v1971, 4294901760
        %v1973 = vsub.f32 %v1971, %v1972
        %v1974 = vand.u32 %v1973, 4294901760
        %1975 = vmatmul.f32.gmra.mxu0 %v1974
        %v1976 = vpop.f32.mrf.mxu0
        %v1977 = vadd.f32 0.0, %v1976
        %v1978 = vand.u32 %v1904, 4294901760
        %v1979 = vsub.f32 %v1904, %v1978
        %v1980 = vand.u32 %v1979, 4294901760
        %v1981 = vsub.f32 %v1979, %v1980
        %v1982 = vand.u32 %v1981, 4294901760
        %1983 = vmatmul.f32.gmra.mxu0 %v1982
        %v1984 = vpop.f32.mrf.mxu0
        %v1985 = vadd.f32 0.0, %v1984
        %v1986 = vand.u32 %v1907, 4294901760
        %v1987 = vsub.f32 %v1907, %v1986
        %v1988 = vand.u32 %v1987, 4294901760
        %v1989 = vsub.f32 %v1987, %v1988
        %v1990 = vand.u32 %v1989, 4294901760
        %1991 = vmatmul.f32.gmra.mxu0 %v1990
        %v1992 = vpop.f32.mrf.mxu0
        %v1993 = vadd.f32 0.0, %v1992
        %v1994 = vand.u32 %v1910, 4294901760
        %v1995 = vsub.f32 %v1910, %v1994
        %v1996 = vand.u32 %v1995, 4294901760
        %v1997 = vsub.f32 %v1995, %v1996
        %v1998 = vand.u32 %v1997, 4294901760
        %1999 = vmatmul.f32.gmra.mxu0 %v1998
        %v2000 = vpop.f32.mrf.mxu0
        %v2001 = vadd.f32 0.0, %v2000
        %v2002 = vand.u32 %v1913, 4294901760
        %v2003 = vsub.f32 %v1913, %v2002
        %v2004 = vand.u32 %v2003, 4294901760
        %v2005 = vsub.f32 %v2003, %v2004
        %v2006 = vand.u32 %v2005, 4294901760
        %2007 = vmatmul.f32.gmra.mxu0 %v2006
        %v2008 = vpop.f32.mrf.mxu0
        %v2009 = vadd.f32 0.0, %v2008
        %v2010 = vand.u32 %v1916, 4294901760
        %v2011 = vsub.f32 %v1916, %v2010
        %v2012 = vand.u32 %v2011, 4294901760
        %v2013 = vsub.f32 %v2011, %v2012
        %v2014 = vand.u32 %v2013, 4294901760
        %2015 = vmatmul.f32.gmra.mxu0 %v2014
        %v2016 = vpop.f32.mrf.mxu0
        %v2017 = vadd.f32 0.0, %v2016
        %v2018 = vand.u32 %v1919, 4294901760
        %v2019 = vsub.f32 %v1919, %v2018
        %v2020 = vand.u32 %v2019, 4294901760
        %v2021 = vsub.f32 %v2019, %v2020
        %v2022 = vand.u32 %v2021, 4294901760
        %2023 = vmatmul.f32.gmra.mxu0 %v2022
        %v2024 = vpop.f32.mrf.mxu0
        %v2025 = vadd.f32 0.0, %v2024
        %v2026 = vand.u32 %v1922, 4294901760
        %v2027 = vsub.f32 %v1922, %v2026
        %v2028 = vand.u32 %v2027, 4294901760
        %v2029 = vsub.f32 %v2027, %v2028
        %v2030 = vand.u32 %v2029, 4294901760
        %2031 = vmatmul.f32.gmra.mxu0 %v2030
        %v2032 = vpop.f32.mrf.mxu0
        %v2033 = vadd.f32 0.0, %v2032
        %v2034 = vand.u32 %v1925, 4294901760
        %v2035 = vsub.f32 %v1925, %v2034
        %v2036 = vand.u32 %v2035, 4294901760
        %v2037 = vsub.f32 %v2035, %v2036
        %v2038 = vand.u32 %v2037, 4294901760
        %2039 = vmatmul.f32.gmra.mxu0 %v2038
        %v2040 = vpop.f32.mrf.mxu0
        %v2041 = vadd.f32 0.0, %v2040
        %v2042 = vand.u32 %v1928, 4294901760
        %v2043 = vsub.f32 %v1928, %v2042
        %v2044 = vand.u32 %v2043, 4294901760
        %v2045 = vsub.f32 %v2043, %v2044
        %v2046 = vand.u32 %v2045, 4294901760
        %2047 = vmatmul.f32.gmra.mxu0 %v2046
        %v2048 = vpop.f32.mrf.mxu0
        %v2049 = vadd.f32 0.0, %v2048
        %v2050 = vand.u32 %v1931, 4294901760
        %v2051 = vsub.f32 %v1931, %v2050
        %v2052 = vand.u32 %v2051, 4294901760
        %v2053 = vsub.f32 %v2051, %v2052
        %v2054 = vand.u32 %v2053, 4294901760
        %2055 = vmatmul.f32.gmra.mxu0 %v2054
        %v2056 = vpop.f32.mrf.mxu0
        %v2057 = vadd.f32 0.0, %v2056
        %v2058 = vand.u32 %v1934, 4294901760
        %v2059 = vsub.f32 %v1934, %v2058
        %v2060 = vand.u32 %v2059, 4294901760
        %v2061 = vsub.f32 %v2059, %v2060
        %v2062 = vand.u32 %v2061, 4294901760
        %2063 = vmatmul.f32.gmra.mxu0 %v2062
        %v2064 = vpop.f32.mrf.mxu0
        %v2065 = vadd.f32 0.0, %v2064
        %v2066 = vand.u32 %v1937, 4294901760
        %v2067 = vsub.f32 %v1937, %v2066
        %v2068 = vand.u32 %v2067, 4294901760
        %v2069 = vsub.f32 %v2067, %v2068
        %v2070 = vand.u32 %v2069, 4294901760
        %2071 = vmatmul.f32.gmra.mxu0 %v2070
        %v2072 = vpop.f32.mrf.mxu0
        %v2073 = vadd.f32 0.0, %v2072
        %v2074 = vand.u32 %v1940, 4294901760
        %v2075 = vsub.f32 %v1940, %v2074
        %v2076 = vand.u32 %v2075, 4294901760
        %v2077 = vsub.f32 %v2075, %v2076
        %v2078 = vand.u32 %v2077, 4294901760
        %2079 = vmatmul.f32.gmra.mxu0 %v2078
        %v2080 = vpop.f32.mrf.mxu0
        %v2081 = vadd.f32 0.0, %v2080
        %v2082 = vand.u32 %v1943, 4294901760
        %v2083 = vsub.f32 %v1943, %v2082
        %v2084 = vand.u32 %v2083, 4294901760
        %v2085 = vsub.f32 %v2083, %v2084
        %v2086 = vand.u32 %v2085, 4294901760
        %2087 = vmatmul.f32.gmra.mxu0 %v2086
        %v2088 = vpop.f32.mrf.mxu0
        %v2089 = vadd.f32 0.0, %v2088
        %2090 = vdwg.mxu0
        %2091 = vmatpush.msra.mxu0 0.0
        %2092 = vmatpush.msra.mxu0 0.0
        %2093 = vmatpush.msra.mxu0 0.0
        %2094 = vmatpush.msra.mxu0 0.0
        %2095 = vmatpush.msra.mxu0 0.0
        %2096 = vmatpush.msra.mxu0 0.0
        %2097 = vmatpush.msra.mxu0 0.0
        %2098 = vmatpush.msra.mxu0 0.0
        %2099 = vmatpush.msra.mxu0 0.0
        %2100 = vmatpush.msra.mxu0 0.0
        %2101 = vmatpush.msra.mxu0 0.0
        %2102 = vmatpush.msra.mxu0 0.0
        %2103 = vmatpush.msra.mxu0 0.0
        %2104 = vmatpush.msra.mxu0 0.0
        %2105 = vmatpush.msra.mxu0 0.0
        %v2106 = vand.u32 %v1863, 4294901760
        %v2107 = vsub.f32 %v1863, %v2106
        %v2108 = vand.u32 %v2107, 4294901760
        %v2109 = vsub.f32 %v2107, %v2108
        %v2110 = vand.u32 %v2109, 4294901760
        %2111 = vmatpush.msra.mxu0 %v2110
        %v2112 = vand.u32 %v1898, 4294901760
        %2113 = vmatmul.f32.gmra.mxu0 %v2112
        %v2114 = vpop.f32.mrf.mxu0
        %v2115 = vadd.f32 %v1969, %v2114
        %v2116 = vand.u32 %v1901, 4294901760
        %2117 = vmatmul.f32.gmra.mxu0 %v2116
        %v2118 = vpop.f32.mrf.mxu0
        %v2119 = vadd.f32 %v1977, %v2118
        %v2120 = vand.u32 %v1904, 4294901760
        %2121 = vmatmul.f32.gmra.mxu0 %v2120
        %v2122 = vpop.f32.mrf.mxu0
        %v2123 = vadd.f32 %v1985, %v2122
        %v2124 = vand.u32 %v1907, 4294901760
        %2125 = vmatmul.f32.gmra.mxu0 %v2124
        %v2126 = vpop.f32.mrf.mxu0
        %v2127 = vadd.f32 %v1993, %v2126
        %v2128 = vand.u32 %v1910, 4294901760
        %2129 = vmatmul.f32.gmra.mxu0 %v2128
        %v2130 = vpop.f32.mrf.mxu0
        %v2131 = vadd.f32 %v2001, %v2130
        %v2132 = vand.u32 %v1913, 4294901760
        %2133 = vmatmul.f32.gmra.mxu0 %v2132
        %v2134 = vpop.f32.mrf.mxu0
        %v2135 = vadd.f32 %v2009, %v2134
        %v2136 = vand.u32 %v1916, 4294901760
        %2137 = vmatmul.f32.gmra.mxu0 %v2136
        %v2138 = vpop.f32.mrf.mxu0
        %v2139 = vadd.f32 %v2017, %v2138
        %v2140 = vand.u32 %v1919, 4294901760
        %2141 = vmatmul.f32.gmra.mxu0 %v2140
        %v2142 = vpop.f32.mrf.mxu0
        %v2143 = vadd.f32 %v2025, %v2142
        %v2144 = vand.u32 %v1922, 4294901760
        %2145 = vmatmul.f32.gmra.mxu0 %v2144
        %v2146 = vpop.f32.mrf.mxu0
        %v2147 = vadd.f32 %v2033, %v2146
        %v2148 = vand.u32 %v1925, 4294901760
        %2149 = vmatmul.f32.gmra.mxu0 %v2148
        %v2150 = vpop.f32.mrf.mxu0
        %v2151 = vadd.f32 %v2041, %v2150
        %v2152 = vand.u32 %v1928, 4294901760
        %2153 = vmatmul.f32.gmra.mxu0 %v2152
        %v2154 = vpop.f32.mrf.mxu0
        %v2155 = vadd.f32 %v2049, %v2154
        %v2156 = vand.u32 %v1931, 4294901760
        %2157 = vmatmul.f32.gmra.mxu0 %v2156
        %v2158 = vpop.f32.mrf.mxu0
        %v2159 = vadd.f32 %v2057, %v2158
        %v2160 = vand.u32 %v1934, 4294901760
        %2161 = vmatmul.f32.gmra.mxu0 %v2160
        %v2162 = vpop.f32.mrf.mxu0
        %v2163 = vadd.f32 %v2065, %v2162
        %v2164 = vand.u32 %v1937, 4294901760
        %2165 = vmatmul.f32.gmra.mxu0 %v2164
        %v2166 = vpop.f32.mrf.mxu0
        %v2167 = vadd.f32 %v2073, %v2166
        %v2168 = vand.u32 %v1940, 4294901760
        %2169 = vmatmul.f32.gmra.mxu0 %v2168
        %v2170 = vpop.f32.mrf.mxu0
        %v2171 = vadd.f32 %v2081, %v2170
        %v2172 = vand.u32 %v1943, 4294901760
        %2173 = vmatmul.f32.gmra.mxu0 %v2172
        %v2174 = vpop.f32.mrf.mxu0
        %v2175 = vadd.f32 %v2089, %v2174
        %2176 = vdwg.mxu0
        %2177 = vmatpush.msra.mxu0 0.0
        %2178 = vmatpush.msra.mxu0 0.0
        %2179 = vmatpush.msra.mxu0 0.0
        %2180 = vmatpush.msra.mxu0 0.0
        %2181 = vmatpush.msra.mxu0 0.0
        %2182 = vmatpush.msra.mxu0 0.0
        %2183 = vmatpush.msra.mxu0 0.0
        %2184 = vmatpush.msra.mxu0 0.0
        %2185 = vmatpush.msra.mxu0 0.0
        %2186 = vmatpush.msra.mxu0 0.0
        %2187 = vmatpush.msra.mxu0 0.0
        %2188 = vmatpush.msra.mxu0 0.0
        %2189 = vmatpush.msra.mxu0 0.0
        %2190 = vmatpush.msra.mxu0 0.0
        %2191 = vmatpush.msra.mxu0 0.0
        %v2192 = vand.u32 %v1863, 4294901760
        %v2193 = vsub.f32 %v1863, %v2192
        %2194 = vmatpush.msra.mxu0 %v2193
        %v2195 = vand.u32 %v1898, 4294901760
        %v2196 = vsub.f32 %v1898, %v2195
        %2197 = vmatmul.f32.gmra.mxu0 %v2196
        %v2198 = vpop.f32.mrf.mxu0
        %v2199 = vadd.f32 %v2115, %v2198
        %v2200 = vand.u32 %v1901, 4294901760
        %v2201 = vsub.f32 %v1901, %v2200
        %2202 = vmatmul.f32.gmra.mxu0 %v2201
        %v2203 = vpop.f32.mrf.mxu0
        %v2204 = vadd.f32 %v2119, %v2203
        %v2205 = vand.u32 %v1904, 4294901760
        %v2206 = vsub.f32 %v1904, %v2205
        %2207 = vmatmul.f32.gmra.mxu0 %v2206
        %v2208 = vpop.f32.mrf.mxu0
        %v2209 = vadd.f32 %v2123, %v2208
        %v2210 = vand.u32 %v1907, 4294901760
        %v2211 = vsub.f32 %v1907, %v2210
        %2212 = vmatmul.f32.gmra.mxu0 %v2211
        %v2213 = vpop.f32.mrf.mxu0
        %v2214 = vadd.f32 %v2127, %v2213
        %v2215 = vand.u32 %v1910, 4294901760
        %v2216 = vsub.f32 %v1910, %v2215
        %2217 = vmatmul.f32.gmra.mxu0 %v2216
        %v2218 = vpop.f32.mrf.mxu0
        %v2219 = vadd.f32 %v2131, %v2218
        %v2220 = vand.u32 %v1913, 4294901760
        %v2221 = vsub.f32 %v1913, %v2220
        %2222 = vmatmul.f32.gmra.mxu0 %v2221
        %v2223 = vpop.f32.mrf.mxu0
        %v2224 = vadd.f32 %v2135, %v2223
        %v2225 = vand.u32 %v1916, 4294901760
        %v2226 = vsub.f32 %v1916, %v2225
        %2227 = vmatmul.f32.gmra.mxu0 %v2226
        %v2228 = vpop.f32.mrf.mxu0
        %v2229 = vadd.f32 %v2139, %v2228
        %v2230 = vand.u32 %v1919, 4294901760
        %v2231 = vsub.f32 %v1919, %v2230
        %2232 = vmatmul.f32.gmra.mxu0 %v2231
        %v2233 = vpop.f32.mrf.mxu0
        %v2234 = vadd.f32 %v2143, %v2233
        %v2235 = vand.u32 %v1922, 4294901760
        %v2236 = vsub.f32 %v1922, %v2235
        %2237 = vmatmul.f32.gmra.mxu0 %v2236
        %v2238 = vpop.f32.mrf.mxu0
        %v2239 = vadd.f32 %v2147, %v2238
        %v2240 = vand.u32 %v1925, 4294901760
        %v2241 = vsub.f32 %v1925, %v2240
        %2242 = vmatmul.f32.gmra.mxu0 %v2241
        %v2243 = vpop.f32.mrf.mxu0
        %v2244 = vadd.f32 %v2151, %v2243
        %v2245 = vand.u32 %v1928, 4294901760
        %v2246 = vsub.f32 %v1928, %v2245
        %2247 = vmatmul.f32.gmra.mxu0 %v2246
        %v2248 = vpop.f32.mrf.mxu0
        %v2249 = vadd.f32 %v2155, %v2248
        %v2250 = vand.u32 %v1931, 4294901760
        %v2251 = vsub.f32 %v1931, %v2250
        %2252 = vmatmul.f32.gmra.mxu0 %v2251
        %v2253 = vpop.f32.mrf.mxu0
        %v2254 = vadd.f32 %v2159, %v2253
        %v2255 = vand.u32 %v1934, 4294901760
        %v2256 = vsub.f32 %v1934, %v2255
        %2257 = vmatmul.f32.gmra.mxu0 %v2256
        %v2258 = vpop.f32.mrf.mxu0
        %v2259 = vadd.f32 %v2163, %v2258
        %v2260 = vand.u32 %v1937, 4294901760
        %v2261 = vsub.f32 %v1937, %v2260
        %2262 = vmatmul.f32.gmra.mxu0 %v2261
        %v2263 = vpop.f32.mrf.mxu0
        %v2264 = vadd.f32 %v2167, %v2263
        %v2265 = vand.u32 %v1940, 4294901760
        %v2266 = vsub.f32 %v1940, %v2265
        %2267 = vmatmul.f32.gmra.mxu0 %v2266
        %v2268 = vpop.f32.mrf.mxu0
        %v2269 = vadd.f32 %v2171, %v2268
        %v2270 = vand.u32 %v1943, 4294901760
        %v2271 = vsub.f32 %v1943, %v2270
        %2272 = vmatmul.f32.gmra.mxu0 %v2271
        %v2273 = vpop.f32.mrf.mxu0
        %v2274 = vadd.f32 %v2175, %v2273
        %2275 = vdwg.mxu0
        %2276 = vmatpush.msra.mxu0 0.0
        %2277 = vmatpush.msra.mxu0 0.0
        %2278 = vmatpush.msra.mxu0 0.0
        %2279 = vmatpush.msra.mxu0 0.0
        %2280 = vmatpush.msra.mxu0 0.0
        %2281 = vmatpush.msra.mxu0 0.0
        %2282 = vmatpush.msra.mxu0 0.0
        %2283 = vmatpush.msra.mxu0 0.0
        %2284 = vmatpush.msra.mxu0 0.0
        %2285 = vmatpush.msra.mxu0 0.0
        %2286 = vmatpush.msra.mxu0 0.0
        %2287 = vmatpush.msra.mxu0 0.0
        %2288 = vmatpush.msra.mxu0 0.0
        %2289 = vmatpush.msra.mxu0 0.0
        %2290 = vmatpush.msra.mxu0 0.0
        %v2291 = vand.u32 %v1863, 4294901760
        %2292 = vmatpush.msra.mxu0 %v2291
        %v2293 = vand.u32 %v1898, 4294901760
        %v2294 = vsub.f32 %v1898, %v2293
        %v2295 = vand.u32 %v2294, 4294901760
        %2296 = vmatmul.f32.gmra.mxu0 %v2295
        %v2297 = vpop.f32.mrf.mxu0
        %v2298 = vadd.f32 %v2199, %v2297
        %v2299 = vand.u32 %v1901, 4294901760
        %v2300 = vsub.f32 %v1901, %v2299
        %v2301 = vand.u32 %v2300, 4294901760
        %2302 = vmatmul.f32.gmra.mxu0 %v2301
        %v2303 = vpop.f32.mrf.mxu0
        %v2304 = vadd.f32 %v2204, %v2303
        %v2305 = vand.u32 %v1904, 4294901760
        %v2306 = vsub.f32 %v1904, %v2305
        %v2307 = vand.u32 %v2306, 4294901760
        %2308 = vmatmul.f32.gmra.mxu0 %v2307
        %v2309 = vpop.f32.mrf.mxu0
        %v2310 = vadd.f32 %v2209, %v2309
        %v2311 = vand.u32 %v1907, 4294901760
        %v2312 = vsub.f32 %v1907, %v2311
        %v2313 = vand.u32 %v2312, 4294901760
        %2314 = vmatmul.f32.gmra.mxu0 %v2313
        %v2315 = vpop.f32.mrf.mxu0
        %v2316 = vadd.f32 %v2214, %v2315
        %v2317 = vand.u32 %v1910, 4294901760
        %v2318 = vsub.f32 %v1910, %v2317
        %v2319 = vand.u32 %v2318, 4294901760
        %2320 = vmatmul.f32.gmra.mxu0 %v2319
        %v2321 = vpop.f32.mrf.mxu0
        %v2322 = vadd.f32 %v2219, %v2321
        %v2323 = vand.u32 %v1913, 4294901760
        %v2324 = vsub.f32 %v1913, %v2323
        %v2325 = vand.u32 %v2324, 4294901760
        %2326 = vmatmul.f32.gmra.mxu0 %v2325
        %v2327 = vpop.f32.mrf.mxu0
        %v2328 = vadd.f32 %v2224, %v2327
        %v2329 = vand.u32 %v1916, 4294901760
        %v2330 = vsub.f32 %v1916, %v2329
        %v2331 = vand.u32 %v2330, 4294901760
        %2332 = vmatmul.f32.gmra.mxu0 %v2331
        %v2333 = vpop.f32.mrf.mxu0
        %v2334 = vadd.f32 %v2229, %v2333
        %v2335 = vand.u32 %v1919, 4294901760
        %v2336 = vsub.f32 %v1919, %v2335
        %v2337 = vand.u32 %v2336, 4294901760
        %2338 = vmatmul.f32.gmra.mxu0 %v2337
        %v2339 = vpop.f32.mrf.mxu0
        %v2340 = vadd.f32 %v2234, %v2339
        %v2341 = vand.u32 %v1922, 4294901760
        %v2342 = vsub.f32 %v1922, %v2341
        %v2343 = vand.u32 %v2342, 4294901760
        %2344 = vmatmul.f32.gmra.mxu0 %v2343
        %v2345 = vpop.f32.mrf.mxu0
        %v2346 = vadd.f32 %v2239, %v2345
        %v2347 = vand.u32 %v1925, 4294901760
        %v2348 = vsub.f32 %v1925, %v2347
        %v2349 = vand.u32 %v2348, 4294901760
        %2350 = vmatmul.f32.gmra.mxu0 %v2349
        %v2351 = vpop.f32.mrf.mxu0
        %v2352 = vadd.f32 %v2244, %v2351
        %v2353 = vand.u32 %v1928, 4294901760
        %v2354 = vsub.f32 %v1928, %v2353
        %v2355 = vand.u32 %v2354, 4294901760
        %2356 = vmatmul.f32.gmra.mxu0 %v2355
        %v2357 = vpop.f32.mrf.mxu0
        %v2358 = vadd.f32 %v2249, %v2357
        %v2359 = vand.u32 %v1931, 4294901760
        %v2360 = vsub.f32 %v1931, %v2359
        %v2361 = vand.u32 %v2360, 4294901760
        %2362 = vmatmul.f32.gmra.mxu0 %v2361
        %v2363 = vpop.f32.mrf.mxu0
        %v2364 = vadd.f32 %v2254, %v2363
        %v2365 = vand.u32 %v1934, 4294901760
        %v2366 = vsub.f32 %v1934, %v2365
        %v2367 = vand.u32 %v2366, 4294901760
        %2368 = vmatmul.f32.gmra.mxu0 %v2367
        %v2369 = vpop.f32.mrf.mxu0
        %v2370 = vadd.f32 %v2259, %v2369
        %v2371 = vand.u32 %v1937, 4294901760
        %v2372 = vsub.f32 %v1937, %v2371
        %v2373 = vand.u32 %v2372, 4294901760
        %2374 = vmatmul.f32.gmra.mxu0 %v2373
        %v2375 = vpop.f32.mrf.mxu0
        %v2376 = vadd.f32 %v2264, %v2375
        %v2377 = vand.u32 %v1940, 4294901760
        %v2378 = vsub.f32 %v1940, %v2377
        %v2379 = vand.u32 %v2378, 4294901760
        %2380 = vmatmul.f32.gmra.mxu0 %v2379
        %v2381 = vpop.f32.mrf.mxu0
        %v2382 = vadd.f32 %v2269, %v2381
        %v2383 = vand.u32 %v1943, 4294901760
        %v2384 = vsub.f32 %v1943, %v2383
        %v2385 = vand.u32 %v2384, 4294901760
        %2386 = vmatmul.f32.gmra.mxu0 %v2385
        %v2387 = vpop.f32.mrf.mxu0
        %v2388 = vadd.f32 %v2274, %v2387
        %2389 = vdwg.mxu0
        %2390 = vmatpush.msra.mxu0 0.0
        %2391 = vmatpush.msra.mxu0 0.0
        %2392 = vmatpush.msra.mxu0 0.0
        %2393 = vmatpush.msra.mxu0 0.0
        %2394 = vmatpush.msra.mxu0 0.0
        %2395 = vmatpush.msra.mxu0 0.0
        %2396 = vmatpush.msra.mxu0 0.0
        %2397 = vmatpush.msra.mxu0 0.0
        %2398 = vmatpush.msra.mxu0 0.0
        %2399 = vmatpush.msra.mxu0 0.0
        %2400 = vmatpush.msra.mxu0 0.0
        %2401 = vmatpush.msra.mxu0 0.0
        %2402 = vmatpush.msra.mxu0 0.0
        %2403 = vmatpush.msra.mxu0 0.0
        %2404 = vmatpush.msra.mxu0 0.0
        %v2405 = vand.u32 %v1863, 4294901760
        %v2406 = vsub.f32 %v1863, %v2405
        %v2407 = vand.u32 %v2406, 4294901760
        %2408 = vmatpush.msra.mxu0 %v2407
        %v2409 = vand.u32 %v1898, 4294901760
        %2410 = vmatmul.f32.gmra.mxu0 %v2409
        %v2411 = vpop.f32.mrf.mxu0
        %v2412 = vadd.f32 %v2298, %v2411
        %v2413 = vand.u32 %v1901, 4294901760
        %2414 = vmatmul.f32.gmra.mxu0 %v2413
        %v2415 = vpop.f32.mrf.mxu0
        %v2416 = vadd.f32 %v2304, %v2415
        %v2417 = vand.u32 %v1904, 4294901760
        %2418 = vmatmul.f32.gmra.mxu0 %v2417
        %v2419 = vpop.f32.mrf.mxu0
        %v2420 = vadd.f32 %v2310, %v2419
        %v2421 = vand.u32 %v1907, 4294901760
        %2422 = vmatmul.f32.gmra.mxu0 %v2421
        %v2423 = vpop.f32.mrf.mxu0
        %v2424 = vadd.f32 %v2316, %v2423
        %v2425 = vand.u32 %v1910, 4294901760
        %2426 = vmatmul.f32.gmra.mxu0 %v2425
        %v2427 = vpop.f32.mrf.mxu0
        %v2428 = vadd.f32 %v2322, %v2427
        %v2429 = vand.u32 %v1913, 4294901760
        %2430 = vmatmul.f32.gmra.mxu0 %v2429
        %v2431 = vpop.f32.mrf.mxu0
        %v2432 = vadd.f32 %v2328, %v2431
        %v2433 = vand.u32 %v1916, 4294901760
        %2434 = vmatmul.f32.gmra.mxu0 %v2433
        %v2435 = vpop.f32.mrf.mxu0
        %v2436 = vadd.f32 %v2334, %v2435
        %v2437 = vand.u32 %v1919, 4294901760
        %2438 = vmatmul.f32.gmra.mxu0 %v2437
        %v2439 = vpop.f32.mrf.mxu0
        %v2440 = vadd.f32 %v2340, %v2439
        %v2441 = vand.u32 %v1922, 4294901760
        %2442 = vmatmul.f32.gmra.mxu0 %v2441
        %v2443 = vpop.f32.mrf.mxu0
        %v2444 = vadd.f32 %v2346, %v2443
        %v2445 = vand.u32 %v1925, 4294901760
        %2446 = vmatmul.f32.gmra.mxu0 %v2445
        %v2447 = vpop.f32.mrf.mxu0
        %v2448 = vadd.f32 %v2352, %v2447
        %v2449 = vand.u32 %v1928, 4294901760
        %2450 = vmatmul.f32.gmra.mxu0 %v2449
        %v2451 = vpop.f32.mrf.mxu0
        %v2452 = vadd.f32 %v2358, %v2451
        %v2453 = vand.u32 %v1931, 4294901760
        %2454 = vmatmul.f32.gmra.mxu0 %v2453
        %v2455 = vpop.f32.mrf.mxu0
        %v2456 = vadd.f32 %v2364, %v2455
        %v2457 = vand.u32 %v1934, 4294901760
        %2458 = vmatmul.f32.gmra.mxu0 %v2457
        %v2459 = vpop.f32.mrf.mxu0
        %v2460 = vadd.f32 %v2370, %v2459
        %v2461 = vand.u32 %v1937, 4294901760
        %2462 = vmatmul.f32.gmra.mxu0 %v2461
        %v2463 = vpop.f32.mrf.mxu0
        %v2464 = vadd.f32 %v2376, %v2463
        %v2465 = vand.u32 %v1940, 4294901760
        %2466 = vmatmul.f32.gmra.mxu0 %v2465
        %v2467 = vpop.f32.mrf.mxu0
        %v2468 = vadd.f32 %v2382, %v2467
        %v2469 = vand.u32 %v1943, 4294901760
        %2470 = vmatmul.f32.gmra.mxu0 %v2469
        %v2471 = vpop.f32.mrf.mxu0
        %v2472 = vadd.f32 %v2388, %v2471
        %2473 = vdwg.mxu0
        %2474 = vmatpush.msra.mxu0 0.0
        %2475 = vmatpush.msra.mxu0 0.0
        %2476 = vmatpush.msra.mxu0 0.0
        %2477 = vmatpush.msra.mxu0 0.0
        %2478 = vmatpush.msra.mxu0 0.0
        %2479 = vmatpush.msra.mxu0 0.0
        %2480 = vmatpush.msra.mxu0 0.0
        %2481 = vmatpush.msra.mxu0 0.0
        %2482 = vmatpush.msra.mxu0 0.0
        %2483 = vmatpush.msra.mxu0 0.0
        %2484 = vmatpush.msra.mxu0 0.0
        %2485 = vmatpush.msra.mxu0 0.0
        %2486 = vmatpush.msra.mxu0 0.0
        %2487 = vmatpush.msra.mxu0 0.0
        %2488 = vmatpush.msra.mxu0 0.0
        %v2489 = vand.u32 %v1863, 4294901760
        %2490 = vmatpush.msra.mxu0 %v2489
        %v2491 = vand.u32 %v1898, 4294901760
        %2492 = vmatmul.f32.gmra.mxu0 %v2491
        %v2493 = vpop.f32.mrf.mxu0
        %v2494 = vadd.f32 %v2412, %v2493
        %v2495 = vand.u32 %v1901, 4294901760
        %2496 = vmatmul.f32.gmra.mxu0 %v2495
        %v2497 = vpop.f32.mrf.mxu0
        %v2498 = vadd.f32 %v2416, %v2497
        %v2499 = vand.u32 %v1904, 4294901760
        %2500 = vmatmul.f32.gmra.mxu0 %v2499
        %v2501 = vpop.f32.mrf.mxu0
        %v2502 = vadd.f32 %v2420, %v2501
        %v2503 = vand.u32 %v1907, 4294901760
        %2504 = vmatmul.f32.gmra.mxu0 %v2503
        %v2505 = vpop.f32.mrf.mxu0
        %v2506 = vadd.f32 %v2424, %v2505
        %v2507 = vand.u32 %v1910, 4294901760
        %2508 = vmatmul.f32.gmra.mxu0 %v2507
        %v2509 = vpop.f32.mrf.mxu0
        %v2510 = vadd.f32 %v2428, %v2509
        %v2511 = vand.u32 %v1913, 4294901760
        %2512 = vmatmul.f32.gmra.mxu0 %v2511
        %v2513 = vpop.f32.mrf.mxu0
        %v2514 = vadd.f32 %v2432, %v2513
        %v2515 = vand.u32 %v1916, 4294901760
        %2516 = vmatmul.f32.gmra.mxu0 %v2515
        %v2517 = vpop.f32.mrf.mxu0
        %v2518 = vadd.f32 %v2436, %v2517
        %v2519 = vand.u32 %v1919, 4294901760
        %2520 = vmatmul.f32.gmra.mxu0 %v2519
        %v2521 = vpop.f32.mrf.mxu0
        %v2522 = vadd.f32 %v2440, %v2521
        %v2523 = vand.u32 %v1922, 4294901760
        %2524 = vmatmul.f32.gmra.mxu0 %v2523
        %v2525 = vpop.f32.mrf.mxu0
        %v2526 = vadd.f32 %v2444, %v2525
        %v2527 = vand.u32 %v1925, 4294901760
        %2528 = vmatmul.f32.gmra.mxu0 %v2527
        %v2529 = vpop.f32.mrf.mxu0
        %v2530 = vadd.f32 %v2448, %v2529
        %v2531 = vand.u32 %v1928, 4294901760
        %2532 = vmatmul.f32.gmra.mxu0 %v2531
        %v2533 = vpop.f32.mrf.mxu0
        %v2534 = vadd.f32 %v2452, %v2533
        %v2535 = vand.u32 %v1931, 4294901760
        %2536 = vmatmul.f32.gmra.mxu0 %v2535
        %v2537 = vpop.f32.mrf.mxu0
        %v2538 = vadd.f32 %v2456, %v2537
        %v2539 = vand.u32 %v1934, 4294901760
        %2540 = vmatmul.f32.gmra.mxu0 %v2539
        %v2541 = vpop.f32.mrf.mxu0
        %v2542 = vadd.f32 %v2460, %v2541
        %v2543 = vand.u32 %v1937, 4294901760
        %2544 = vmatmul.f32.gmra.mxu0 %v2543
        %v2545 = vpop.f32.mrf.mxu0
        %v2546 = vadd.f32 %v2464, %v2545
        %v2547 = vand.u32 %v1940, 4294901760
        %2548 = vmatmul.f32.gmra.mxu0 %v2547
        %v2549 = vpop.f32.mrf.mxu0
        %v2550 = vadd.f32 %v2468, %v2549
        %v2551 = vand.u32 %v1943, 4294901760
        %2552 = vmatmul.f32.gmra.mxu0 %v2551
        %v2553 = vpop.f32.mrf.mxu0
        %v2554 = vadd.f32 %v2472, %v2553
        %2555 = vdwg.mxu0
        %2556 = vmatpush.msra.mxu0 0.0
        %2557 = vmatpush.msra.mxu0 0.0
        %2558 = vmatpush.msra.mxu0 0.0
        %2559 = vmatpush.msra.mxu0 0.0
        %2560 = vmatpush.msra.mxu0 0.0
        %2561 = vmatpush.msra.mxu0 0.0
        %2562 = vmatpush.msra.mxu0 0.0
        %2563 = vmatpush.msra.mxu0 0.0
        %2564 = vmatpush.msra.mxu0 0.0
        %2565 = vmatpush.msra.mxu0 0.0
        %2566 = vmatpush.msra.mxu0 0.0
        %2567 = vmatpush.msra.mxu0 0.0
        %2568 = vmatpush.msra.mxu0 0.0
        %2569 = vmatpush.msra.mxu0 0.0
        %2570 = vmatpush.msra.mxu0 0.0
        %v2571 = vand.u32 %v1864, 4294901760
        %2572 = vmatpush.msra.mxu0 %v2571
        %v2573 = vand.u32 %v1898, 4294901760
        %v2574 = vsub.f32 %v1898, %v2573
        %v2575 = vand.u32 %v2574, 4294901760
        %v2576 = vsub.f32 %v2574, %v2575
        %v2577 = vand.u32 %v2576, 4294901760
        %2578 = vmatmul.f32.gmra.mxu0 %v2577
        %v2579 = vpop.f32.mrf.mxu0
        %v2580 = vadd.f32 0.0, %v2579
        %v2581 = vand.u32 %v1901, 4294901760
        %v2582 = vsub.f32 %v1901, %v2581
        %v2583 = vand.u32 %v2582, 4294901760
        %v2584 = vsub.f32 %v2582, %v2583
        %v2585 = vand.u32 %v2584, 4294901760
        %2586 = vmatmul.f32.gmra.mxu0 %v2585
        %v2587 = vpop.f32.mrf.mxu0
        %v2588 = vadd.f32 0.0, %v2587
        %v2589 = vand.u32 %v1904, 4294901760
        %v2590 = vsub.f32 %v1904, %v2589
        %v2591 = vand.u32 %v2590, 4294901760
        %v2592 = vsub.f32 %v2590, %v2591
        %v2593 = vand.u32 %v2592, 4294901760
        %2594 = vmatmul.f32.gmra.mxu0 %v2593
        %v2595 = vpop.f32.mrf.mxu0
        %v2596 = vadd.f32 0.0, %v2595
        %v2597 = vand.u32 %v1907, 4294901760
        %v2598 = vsub.f32 %v1907, %v2597
        %v2599 = vand.u32 %v2598, 4294901760
        %v2600 = vsub.f32 %v2598, %v2599
        %v2601 = vand.u32 %v2600, 4294901760
        %2602 = vmatmul.f32.gmra.mxu0 %v2601
        %v2603 = vpop.f32.mrf.mxu0
        %v2604 = vadd.f32 0.0, %v2603
        %v2605 = vand.u32 %v1910, 4294901760
        %v2606 = vsub.f32 %v1910, %v2605
        %v2607 = vand.u32 %v2606, 4294901760
        %v2608 = vsub.f32 %v2606, %v2607
        %v2609 = vand.u32 %v2608, 4294901760
        %2610 = vmatmul.f32.gmra.mxu0 %v2609
        %v2611 = vpop.f32.mrf.mxu0
        %v2612 = vadd.f32 0.0, %v2611
        %v2613 = vand.u32 %v1913, 4294901760
        %v2614 = vsub.f32 %v1913, %v2613
        %v2615 = vand.u32 %v2614, 4294901760
        %v2616 = vsub.f32 %v2614, %v2615
        %v2617 = vand.u32 %v2616, 4294901760
        %2618 = vmatmul.f32.gmra.mxu0 %v2617
        %v2619 = vpop.f32.mrf.mxu0
        %v2620 = vadd.f32 0.0, %v2619
        %v2621 = vand.u32 %v1916, 4294901760
        %v2622 = vsub.f32 %v1916, %v2621
        %v2623 = vand.u32 %v2622, 4294901760
        %v2624 = vsub.f32 %v2622, %v2623
        %v2625 = vand.u32 %v2624, 4294901760
        %2626 = vmatmul.f32.gmra.mxu0 %v2625
        %v2627 = vpop.f32.mrf.mxu0
        %v2628 = vadd.f32 0.0, %v2627
        %v2629 = vand.u32 %v1919, 4294901760
        %v2630 = vsub.f32 %v1919, %v2629
        %v2631 = vand.u32 %v2630, 4294901760
        %v2632 = vsub.f32 %v2630, %v2631
        %v2633 = vand.u32 %v2632, 4294901760
        %2634 = vmatmul.f32.gmra.mxu0 %v2633
        %v2635 = vpop.f32.mrf.mxu0
        %v2636 = vadd.f32 0.0, %v2635
        %v2637 = vand.u32 %v1922, 4294901760
        %v2638 = vsub.f32 %v1922, %v2637
        %v2639 = vand.u32 %v2638, 4294901760
        %v2640 = vsub.f32 %v2638, %v2639
        %v2641 = vand.u32 %v2640, 4294901760
        %2642 = vmatmul.f32.gmra.mxu0 %v2641
        %v2643 = vpop.f32.mrf.mxu0
        %v2644 = vadd.f32 0.0, %v2643
        %v2645 = vand.u32 %v1925, 4294901760
        %v2646 = vsub.f32 %v1925, %v2645
        %v2647 = vand.u32 %v2646, 4294901760
        %v2648 = vsub.f32 %v2646, %v2647
        %v2649 = vand.u32 %v2648, 4294901760
        %2650 = vmatmul.f32.gmra.mxu0 %v2649
        %v2651 = vpop.f32.mrf.mxu0
        %v2652 = vadd.f32 0.0, %v2651
        %v2653 = vand.u32 %v1928, 4294901760
        %v2654 = vsub.f32 %v1928, %v2653
        %v2655 = vand.u32 %v2654, 4294901760
        %v2656 = vsub.f32 %v2654, %v2655
        %v2657 = vand.u32 %v2656, 4294901760
        %2658 = vmatmul.f32.gmra.mxu0 %v2657
        %v2659 = vpop.f32.mrf.mxu0
        %v2660 = vadd.f32 0.0, %v2659
        %v2661 = vand.u32 %v1931, 4294901760
        %v2662 = vsub.f32 %v1931, %v2661
        %v2663 = vand.u32 %v2662, 4294901760
        %v2664 = vsub.f32 %v2662, %v2663
        %v2665 = vand.u32 %v2664, 4294901760
        %2666 = vmatmul.f32.gmra.mxu0 %v2665
        %v2667 = vpop.f32.mrf.mxu0
        %v2668 = vadd.f32 0.0, %v2667
        %v2669 = vand.u32 %v1934, 4294901760
        %v2670 = vsub.f32 %v1934, %v2669
        %v2671 = vand.u32 %v2670, 4294901760
        %v2672 = vsub.f32 %v2670, %v2671
        %v2673 = vand.u32 %v2672, 4294901760
        %2674 = vmatmul.f32.gmra.mxu0 %v2673
        %v2675 = vpop.f32.mrf.mxu0
        %v2676 = vadd.f32 0.0, %v2675
        %v2677 = vand.u32 %v1937, 4294901760
        %v2678 = vsub.f32 %v1937, %v2677
        %v2679 = vand.u32 %v2678, 4294901760
        %v2680 = vsub.f32 %v2678, %v2679
        %v2681 = vand.u32 %v2680, 4294901760
        %2682 = vmatmul.f32.gmra.mxu0 %v2681
        %v2683 = vpop.f32.mrf.mxu0
        %v2684 = vadd.f32 0.0, %v2683
        %v2685 = vand.u32 %v1940, 4294901760
        %v2686 = vsub.f32 %v1940, %v2685
        %v2687 = vand.u32 %v2686, 4294901760
        %v2688 = vsub.f32 %v2686, %v2687
        %v2689 = vand.u32 %v2688, 4294901760
        %2690 = vmatmul.f32.gmra.mxu0 %v2689
        %v2691 = vpop.f32.mrf.mxu0
        %v2692 = vadd.f32 0.0, %v2691
        %v2693 = vand.u32 %v1943, 4294901760
        %v2694 = vsub.f32 %v1943, %v2693
        %v2695 = vand.u32 %v2694, 4294901760
        %v2696 = vsub.f32 %v2694, %v2695
        %v2697 = vand.u32 %v2696, 4294901760
        %2698 = vmatmul.f32.gmra.mxu0 %v2697
        %v2699 = vpop.f32.mrf.mxu0
        %v2700 = vadd.f32 0.0, %v2699
        %2701 = vdwg.mxu0
        %2702 = vmatpush.msra.mxu0 0.0
        %2703 = vmatpush.msra.mxu0 0.0
        %2704 = vmatpush.msra.mxu0 0.0
        %2705 = vmatpush.msra.mxu0 0.0
        %2706 = vmatpush.msra.mxu0 0.0
        %2707 = vmatpush.msra.mxu0 0.0
        %2708 = vmatpush.msra.mxu0 0.0
        %2709 = vmatpush.msra.mxu0 0.0
        %2710 = vmatpush.msra.mxu0 0.0
        %2711 = vmatpush.msra.mxu0 0.0
        %2712 = vmatpush.msra.mxu0 0.0
        %2713 = vmatpush.msra.mxu0 0.0
        %2714 = vmatpush.msra.mxu0 0.0
        %2715 = vmatpush.msra.mxu0 0.0
        %2716 = vmatpush.msra.mxu0 0.0
        %v2717 = vand.u32 %v1864, 4294901760
        %v2718 = vsub.f32 %v1864, %v2717
        %v2719 = vand.u32 %v2718, 4294901760
        %v2720 = vsub.f32 %v2718, %v2719
        %v2721 = vand.u32 %v2720, 4294901760
        %2722 = vmatpush.msra.mxu0 %v2721
        %v2723 = vand.u32 %v1898, 4294901760
        %2724 = vmatmul.f32.gmra.mxu0 %v2723
        %v2725 = vpop.f32.mrf.mxu0
        %v2726 = vadd.f32 %v2580, %v2725
        %v2727 = vand.u32 %v1901, 4294901760
        %2728 = vmatmul.f32.gmra.mxu0 %v2727
        %v2729 = vpop.f32.mrf.mxu0
        %v2730 = vadd.f32 %v2588, %v2729
        %v2731 = vand.u32 %v1904, 4294901760
        %2732 = vmatmul.f32.gmra.mxu0 %v2731
        %v2733 = vpop.f32.mrf.mxu0
        %v2734 = vadd.f32 %v2596, %v2733
        %v2735 = vand.u32 %v1907, 4294901760
        %2736 = vmatmul.f32.gmra.mxu0 %v2735
        %v2737 = vpop.f32.mrf.mxu0
        %v2738 = vadd.f32 %v2604, %v2737
        %v2739 = vand.u32 %v1910, 4294901760
        %2740 = vmatmul.f32.gmra.mxu0 %v2739
        %v2741 = vpop.f32.mrf.mxu0
        %v2742 = vadd.f32 %v2612, %v2741
        %v2743 = vand.u32 %v1913, 4294901760
        %2744 = vmatmul.f32.gmra.mxu0 %v2743
        %v2745 = vpop.f32.mrf.mxu0
        %v2746 = vadd.f32 %v2620, %v2745
        %v2747 = vand.u32 %v1916, 4294901760
        %2748 = vmatmul.f32.gmra.mxu0 %v2747
        %v2749 = vpop.f32.mrf.mxu0
        %v2750 = vadd.f32 %v2628, %v2749
        %v2751 = vand.u32 %v1919, 4294901760
        %2752 = vmatmul.f32.gmra.mxu0 %v2751
        %v2753 = vpop.f32.mrf.mxu0
        %v2754 = vadd.f32 %v2636, %v2753
        %v2755 = vand.u32 %v1922, 4294901760
        %2756 = vmatmul.f32.gmra.mxu0 %v2755
        %v2757 = vpop.f32.mrf.mxu0
        %v2758 = vadd.f32 %v2644, %v2757
        %v2759 = vand.u32 %v1925, 4294901760
        %2760 = vmatmul.f32.gmra.mxu0 %v2759
        %v2761 = vpop.f32.mrf.mxu0
        %v2762 = vadd.f32 %v2652, %v2761
        %v2763 = vand.u32 %v1928, 4294901760
        %2764 = vmatmul.f32.gmra.mxu0 %v2763
        %v2765 = vpop.f32.mrf.mxu0
        %v2766 = vadd.f32 %v2660, %v2765
        %v2767 = vand.u32 %v1931, 4294901760
        %2768 = vmatmul.f32.gmra.mxu0 %v2767
        %v2769 = vpop.f32.mrf.mxu0
        %v2770 = vadd.f32 %v2668, %v2769
        %v2771 = vand.u32 %v1934, 4294901760
        %2772 = vmatmul.f32.gmra.mxu0 %v2771
        %v2773 = vpop.f32.mrf.mxu0
        %v2774 = vadd.f32 %v2676, %v2773
        %v2775 = vand.u32 %v1937, 4294901760
        %2776 = vmatmul.f32.gmra.mxu0 %v2775
        %v2777 = vpop.f32.mrf.mxu0
        %v2778 = vadd.f32 %v2684, %v2777
        %v2779 = vand.u32 %v1940, 4294901760
        %2780 = vmatmul.f32.gmra.mxu0 %v2779
        %v2781 = vpop.f32.mrf.mxu0
        %v2782 = vadd.f32 %v2692, %v2781
        %v2783 = vand.u32 %v1943, 4294901760
        %2784 = vmatmul.f32.gmra.mxu0 %v2783
        %v2785 = vpop.f32.mrf.mxu0
        %v2786 = vadd.f32 %v2700, %v2785
        %2787 = vdwg.mxu0
        %2788 = vmatpush.msra.mxu0 0.0
        %2789 = vmatpush.msra.mxu0 0.0
        %2790 = vmatpush.msra.mxu0 0.0
        %2791 = vmatpush.msra.mxu0 0.0
        %2792 = vmatpush.msra.mxu0 0.0
        %2793 = vmatpush.msra.mxu0 0.0
        %2794 = vmatpush.msra.mxu0 0.0
        %2795 = vmatpush.msra.mxu0 0.0
        %2796 = vmatpush.msra.mxu0 0.0
        %2797 = vmatpush.msra.mxu0 0.0
        %2798 = vmatpush.msra.mxu0 0.0
        %2799 = vmatpush.msra.mxu0 0.0
        %2800 = vmatpush.msra.mxu0 0.0
        %2801 = vmatpush.msra.mxu0 0.0
        %2802 = vmatpush.msra.mxu0 0.0
        %v2803 = vand.u32 %v1864, 4294901760
        %v2804 = vsub.f32 %v1864, %v2803
        %2805 = vmatpush.msra.mxu0 %v2804
        %v2806 = vand.u32 %v1898, 4294901760
        %v2807 = vsub.f32 %v1898, %v2806
        %2808 = vmatmul.f32.gmra.mxu0 %v2807
        %v2809 = vpop.f32.mrf.mxu0
        %v2810 = vadd.f32 %v2726, %v2809
        %v2811 = vand.u32 %v1901, 4294901760
        %v2812 = vsub.f32 %v1901, %v2811
        %2813 = vmatmul.f32.gmra.mxu0 %v2812
        %v2814 = vpop.f32.mrf.mxu0
        %v2815 = vadd.f32 %v2730, %v2814
        %v2816 = vand.u32 %v1904, 4294901760
        %v2817 = vsub.f32 %v1904, %v2816
        %2818 = vmatmul.f32.gmra.mxu0 %v2817
        %v2819 = vpop.f32.mrf.mxu0
        %v2820 = vadd.f32 %v2734, %v2819
        %v2821 = vand.u32 %v1907, 4294901760
        %v2822 = vsub.f32 %v1907, %v2821
        %2823 = vmatmul.f32.gmra.mxu0 %v2822
        %v2824 = vpop.f32.mrf.mxu0
        %v2825 = vadd.f32 %v2738, %v2824
        %v2826 = vand.u32 %v1910, 4294901760
        %v2827 = vsub.f32 %v1910, %v2826
        %2828 = vmatmul.f32.gmra.mxu0 %v2827
        %v2829 = vpop.f32.mrf.mxu0
        %v2830 = vadd.f32 %v2742, %v2829
        %v2831 = vand.u32 %v1913, 4294901760
        %v2832 = vsub.f32 %v1913, %v2831
        %2833 = vmatmul.f32.gmra.mxu0 %v2832
        %v2834 = vpop.f32.mrf.mxu0
        %v2835 = vadd.f32 %v2746, %v2834
        %v2836 = vand.u32 %v1916, 4294901760
        %v2837 = vsub.f32 %v1916, %v2836
        %2838 = vmatmul.f32.gmra.mxu0 %v2837
        %v2839 = vpop.f32.mrf.mxu0
        %v2840 = vadd.f32 %v2750, %v2839
        %v2841 = vand.u32 %v1919, 4294901760
        %v2842 = vsub.f32 %v1919, %v2841
        %2843 = vmatmul.f32.gmra.mxu0 %v2842
        %v2844 = vpop.f32.mrf.mxu0
        %v2845 = vadd.f32 %v2754, %v2844
        %v2846 = vand.u32 %v1922, 4294901760
        %v2847 = vsub.f32 %v1922, %v2846
        %2848 = vmatmul.f32.gmra.mxu0 %v2847
        %v2849 = vpop.f32.mrf.mxu0
        %v2850 = vadd.f32 %v2758, %v2849
        %v2851 = vand.u32 %v1925, 4294901760
        %v2852 = vsub.f32 %v1925, %v2851
        %2853 = vmatmul.f32.gmra.mxu0 %v2852
        %v2854 = vpop.f32.mrf.mxu0
        %v2855 = vadd.f32 %v2762, %v2854
        %v2856 = vand.u32 %v1928, 4294901760
        %v2857 = vsub.f32 %v1928, %v2856
        %2858 = vmatmul.f32.gmra.mxu0 %v2857
        %v2859 = vpop.f32.mrf.mxu0
        %v2860 = vadd.f32 %v2766, %v2859
        %v2861 = vand.u32 %v1931, 4294901760
        %v2862 = vsub.f32 %v1931, %v2861
        %2863 = vmatmul.f32.gmra.mxu0 %v2862
        %v2864 = vpop.f32.mrf.mxu0
        %v2865 = vadd.f32 %v2770, %v2864
        %v2866 = vand.u32 %v1934, 4294901760
        %v2867 = vsub.f32 %v1934, %v2866
        %2868 = vmatmul.f32.gmra.mxu0 %v2867
        %v2869 = vpop.f32.mrf.mxu0
        %v2870 = vadd.f32 %v2774, %v2869
        %v2871 = vand.u32 %v1937, 4294901760
        %v2872 = vsub.f32 %v1937, %v2871
        %2873 = vmatmul.f32.gmra.mxu0 %v2872
        %v2874 = vpop.f32.mrf.mxu0
        %v2875 = vadd.f32 %v2778, %v2874
        %v2876 = vand.u32 %v1940, 4294901760
        %v2877 = vsub.f32 %v1940, %v2876
        %2878 = vmatmul.f32.gmra.mxu0 %v2877
        %v2879 = vpop.f32.mrf.mxu0
        %v2880 = vadd.f32 %v2782, %v2879
        %v2881 = vand.u32 %v1943, 4294901760
        %v2882 = vsub.f32 %v1943, %v2881
        %2883 = vmatmul.f32.gmra.mxu0 %v2882
        %v2884 = vpop.f32.mrf.mxu0
        %v2885 = vadd.f32 %v2786, %v2884
        %2886 = vdwg.mxu0
        %2887 = vmatpush.msra.mxu0 0.0
        %2888 = vmatpush.msra.mxu0 0.0
        %2889 = vmatpush.msra.mxu0 0.0
        %2890 = vmatpush.msra.mxu0 0.0
        %2891 = vmatpush.msra.mxu0 0.0
        %2892 = vmatpush.msra.mxu0 0.0
        %2893 = vmatpush.msra.mxu0 0.0
        %2894 = vmatpush.msra.mxu0 0.0
        %2895 = vmatpush.msra.mxu0 0.0
        %2896 = vmatpush.msra.mxu0 0.0
        %2897 = vmatpush.msra.mxu0 0.0
        %2898 = vmatpush.msra.mxu0 0.0
        %2899 = vmatpush.msra.mxu0 0.0
        %2900 = vmatpush.msra.mxu0 0.0
        %2901 = vmatpush.msra.mxu0 0.0
        %v2902 = vand.u32 %v1864, 4294901760
        %2903 = vmatpush.msra.mxu0 %v2902
        %v2904 = vand.u32 %v1898, 4294901760
        %v2905 = vsub.f32 %v1898, %v2904
        %v2906 = vand.u32 %v2905, 4294901760
        %2907 = vmatmul.f32.gmra.mxu0 %v2906
        %v2908 = vpop.f32.mrf.mxu0
        %v2909 = vadd.f32 %v2810, %v2908
        %v2910 = vand.u32 %v1901, 4294901760
        %v2911 = vsub.f32 %v1901, %v2910
        %v2912 = vand.u32 %v2911, 4294901760
        %2913 = vmatmul.f32.gmra.mxu0 %v2912
        %v2914 = vpop.f32.mrf.mxu0
        %v2915 = vadd.f32 %v2815, %v2914
        %v2916 = vand.u32 %v1904, 4294901760
        %v2917 = vsub.f32 %v1904, %v2916
        %v2918 = vand.u32 %v2917, 4294901760
        %2919 = vmatmul.f32.gmra.mxu0 %v2918
        %v2920 = vpop.f32.mrf.mxu0
        %v2921 = vadd.f32 %v2820, %v2920
        %v2922 = vand.u32 %v1907, 4294901760
        %v2923 = vsub.f32 %v1907, %v2922
        %v2924 = vand.u32 %v2923, 4294901760
        %2925 = vmatmul.f32.gmra.mxu0 %v2924
        %v2926 = vpop.f32.mrf.mxu0
        %v2927 = vadd.f32 %v2825, %v2926
        %v2928 = vand.u32 %v1910, 4294901760
        %v2929 = vsub.f32 %v1910, %v2928
        %v2930 = vand.u32 %v2929, 4294901760
        %2931 = vmatmul.f32.gmra.mxu0 %v2930
        %v2932 = vpop.f32.mrf.mxu0
        %v2933 = vadd.f32 %v2830, %v2932
        %v2934 = vand.u32 %v1913, 4294901760
        %v2935 = vsub.f32 %v1913, %v2934
        %v2936 = vand.u32 %v2935, 4294901760
        %2937 = vmatmul.f32.gmra.mxu0 %v2936
        %v2938 = vpop.f32.mrf.mxu0
        %v2939 = vadd.f32 %v2835, %v2938
        %v2940 = vand.u32 %v1916, 4294901760
        %v2941 = vsub.f32 %v1916, %v2940
        %v2942 = vand.u32 %v2941, 4294901760
        %2943 = vmatmul.f32.gmra.mxu0 %v2942
        %v2944 = vpop.f32.mrf.mxu0
        %v2945 = vadd.f32 %v2840, %v2944
        %v2946 = vand.u32 %v1919, 4294901760
        %v2947 = vsub.f32 %v1919, %v2946
        %v2948 = vand.u32 %v2947, 4294901760
        %2949 = vmatmul.f32.gmra.mxu0 %v2948
        %v2950 = vpop.f32.mrf.mxu0
        %v2951 = vadd.f32 %v2845, %v2950
        %v2952 = vand.u32 %v1922, 4294901760
        %v2953 = vsub.f32 %v1922, %v2952
        %v2954 = vand.u32 %v2953, 4294901760
        %2955 = vmatmul.f32.gmra.mxu0 %v2954
        %v2956 = vpop.f32.mrf.mxu0
        %v2957 = vadd.f32 %v2850, %v2956
        %v2958 = vand.u32 %v1925, 4294901760
        %v2959 = vsub.f32 %v1925, %v2958
        %v2960 = vand.u32 %v2959, 4294901760
        %2961 = vmatmul.f32.gmra.mxu0 %v2960
        %v2962 = vpop.f32.mrf.mxu0
        %v2963 = vadd.f32 %v2855, %v2962
        %v2964 = vand.u32 %v1928, 4294901760
        %v2965 = vsub.f32 %v1928, %v2964
        %v2966 = vand.u32 %v2965, 4294901760
        %2967 = vmatmul.f32.gmra.mxu0 %v2966
        %v2968 = vpop.f32.mrf.mxu0
        %v2969 = vadd.f32 %v2860, %v2968
        %v2970 = vand.u32 %v1931, 4294901760
        %v2971 = vsub.f32 %v1931, %v2970
        %v2972 = vand.u32 %v2971, 4294901760
        %2973 = vmatmul.f32.gmra.mxu0 %v2972
        %v2974 = vpop.f32.mrf.mxu0
        %v2975 = vadd.f32 %v2865, %v2974
        %v2976 = vand.u32 %v1934, 4294901760
        %v2977 = vsub.f32 %v1934, %v2976
        %v2978 = vand.u32 %v2977, 4294901760
        %2979 = vmatmul.f32.gmra.mxu0 %v2978
        %v2980 = vpop.f32.mrf.mxu0
        %v2981 = vadd.f32 %v2870, %v2980
        %v2982 = vand.u32 %v1937, 4294901760
        %v2983 = vsub.f32 %v1937, %v2982
        %v2984 = vand.u32 %v2983, 4294901760
        %2985 = vmatmul.f32.gmra.mxu0 %v2984
        %v2986 = vpop.f32.mrf.mxu0
        %v2987 = vadd.f32 %v2875, %v2986
        %v2988 = vand.u32 %v1940, 4294901760
        %v2989 = vsub.f32 %v1940, %v2988
        %v2990 = vand.u32 %v2989, 4294901760
        %2991 = vmatmul.f32.gmra.mxu0 %v2990
        %v2992 = vpop.f32.mrf.mxu0
        %v2993 = vadd.f32 %v2880, %v2992
        %v2994 = vand.u32 %v1943, 4294901760
        %v2995 = vsub.f32 %v1943, %v2994
        %v2996 = vand.u32 %v2995, 4294901760
        %2997 = vmatmul.f32.gmra.mxu0 %v2996
        %v2998 = vpop.f32.mrf.mxu0
        %v2999 = vadd.f32 %v2885, %v2998
        %3000 = vdwg.mxu0
        %3001 = vmatpush.msra.mxu0 0.0
        %3002 = vmatpush.msra.mxu0 0.0
        %3003 = vmatpush.msra.mxu0 0.0
        %3004 = vmatpush.msra.mxu0 0.0
        %3005 = vmatpush.msra.mxu0 0.0
        %3006 = vmatpush.msra.mxu0 0.0
        %3007 = vmatpush.msra.mxu0 0.0
        %3008 = vmatpush.msra.mxu0 0.0
        %3009 = vmatpush.msra.mxu0 0.0
        %3010 = vmatpush.msra.mxu0 0.0
        %3011 = vmatpush.msra.mxu0 0.0
        %3012 = vmatpush.msra.mxu0 0.0
        %3013 = vmatpush.msra.mxu0 0.0
        %3014 = vmatpush.msra.mxu0 0.0
        %3015 = vmatpush.msra.mxu0 0.0
        %v3016 = vand.u32 %v1864, 4294901760
        %v3017 = vsub.f32 %v1864, %v3016
        %v3018 = vand.u32 %v3017, 4294901760
        %3019 = vmatpush.msra.mxu0 %v3018
        %v3020 = vand.u32 %v1898, 4294901760
        %3021 = vmatmul.f32.gmra.mxu0 %v3020
        %v3022 = vpop.f32.mrf.mxu0
        %v3023 = vadd.f32 %v2909, %v3022
        %v3024 = vand.u32 %v1901, 4294901760
        %3025 = vmatmul.f32.gmra.mxu0 %v3024
        %v3026 = vpop.f32.mrf.mxu0
        %v3027 = vadd.f32 %v2915, %v3026
        %v3028 = vand.u32 %v1904, 4294901760
        %3029 = vmatmul.f32.gmra.mxu0 %v3028
        %v3030 = vpop.f32.mrf.mxu0
        %v3031 = vadd.f32 %v2921, %v3030
        %v3032 = vand.u32 %v1907, 4294901760
        %3033 = vmatmul.f32.gmra.mxu0 %v3032
        %v3034 = vpop.f32.mrf.mxu0
        %v3035 = vadd.f32 %v2927, %v3034
        %v3036 = vand.u32 %v1910, 4294901760
        %3037 = vmatmul.f32.gmra.mxu0 %v3036
        %v3038 = vpop.f32.mrf.mxu0
        %v3039 = vadd.f32 %v2933, %v3038
        %v3040 = vand.u32 %v1913, 4294901760
        %3041 = vmatmul.f32.gmra.mxu0 %v3040
        %v3042 = vpop.f32.mrf.mxu0
        %v3043 = vadd.f32 %v2939, %v3042
        %v3044 = vand.u32 %v1916, 4294901760
        %3045 = vmatmul.f32.gmra.mxu0 %v3044
        %v3046 = vpop.f32.mrf.mxu0
        %v3047 = vadd.f32 %v2945, %v3046
        %v3048 = vand.u32 %v1919, 4294901760
        %3049 = vmatmul.f32.gmra.mxu0 %v3048
        %v3050 = vpop.f32.mrf.mxu0
        %v3051 = vadd.f32 %v2951, %v3050
        %v3052 = vand.u32 %v1922, 4294901760
        %3053 = vmatmul.f32.gmra.mxu0 %v3052
        %v3054 = vpop.f32.mrf.mxu0
        %v3055 = vadd.f32 %v2957, %v3054
        %v3056 = vand.u32 %v1925, 4294901760
        %3057 = vmatmul.f32.gmra.mxu0 %v3056
        %v3058 = vpop.f32.mrf.mxu0
        %v3059 = vadd.f32 %v2963, %v3058
        %v3060 = vand.u32 %v1928, 4294901760
        %3061 = vmatmul.f32.gmra.mxu0 %v3060
        %v3062 = vpop.f32.mrf.mxu0
        %v3063 = vadd.f32 %v2969, %v3062
        %v3064 = vand.u32 %v1931, 4294901760
        %3065 = vmatmul.f32.gmra.mxu0 %v3064
        %v3066 = vpop.f32.mrf.mxu0
        %v3067 = vadd.f32 %v2975, %v3066
        %v3068 = vand.u32 %v1934, 4294901760
        %3069 = vmatmul.f32.gmra.mxu0 %v3068
        %v3070 = vpop.f32.mrf.mxu0
        %v3071 = vadd.f32 %v2981, %v3070
        %v3072 = vand.u32 %v1937, 4294901760
        %3073 = vmatmul.f32.gmra.mxu0 %v3072
        %v3074 = vpop.f32.mrf.mxu0
        %v3075 = vadd.f32 %v2987, %v3074
        %v3076 = vand.u32 %v1940, 4294901760
        %3077 = vmatmul.f32.gmra.mxu0 %v3076
        %v3078 = vpop.f32.mrf.mxu0
        %v3079 = vadd.f32 %v2993, %v3078
        %v3080 = vand.u32 %v1943, 4294901760
        %3081 = vmatmul.f32.gmra.mxu0 %v3080
        %v3082 = vpop.f32.mrf.mxu0
        %v3083 = vadd.f32 %v2999, %v3082
        %3084 = vdwg.mxu0
        %3085 = vmatpush.msra.mxu0 0.0
        %3086 = vmatpush.msra.mxu0 0.0
        %3087 = vmatpush.msra.mxu0 0.0
        %3088 = vmatpush.msra.mxu0 0.0
        %3089 = vmatpush.msra.mxu0 0.0
        %3090 = vmatpush.msra.mxu0 0.0
        %3091 = vmatpush.msra.mxu0 0.0
        %3092 = vmatpush.msra.mxu0 0.0
        %3093 = vmatpush.msra.mxu0 0.0
        %3094 = vmatpush.msra.mxu0 0.0
        %3095 = vmatpush.msra.mxu0 0.0
        %3096 = vmatpush.msra.mxu0 0.0
        %3097 = vmatpush.msra.mxu0 0.0
        %3098 = vmatpush.msra.mxu0 0.0
        %3099 = vmatpush.msra.mxu0 0.0
        %v3100 = vand.u32 %v1864, 4294901760
        %3101 = vmatpush.msra.mxu0 %v3100
        %v3102 = vand.u32 %v1898, 4294901760
        %3103 = vmatmul.f32.gmra.mxu0 %v3102
        %v3104 = vpop.f32.mrf.mxu0
        %v3105 = vadd.f32 %v3023, %v3104
        %v3106 = vand.u32 %v1901, 4294901760
        %3107 = vmatmul.f32.gmra.mxu0 %v3106
        %v3108 = vpop.f32.mrf.mxu0
        %v3109 = vadd.f32 %v3027, %v3108
        %v3110 = vand.u32 %v1904, 4294901760
        %3111 = vmatmul.f32.gmra.mxu0 %v3110
        %v3112 = vpop.f32.mrf.mxu0
        %v3113 = vadd.f32 %v3031, %v3112
        %v3114 = vand.u32 %v1907, 4294901760
        %3115 = vmatmul.f32.gmra.mxu0 %v3114
        %v3116 = vpop.f32.mrf.mxu0
        %v3117 = vadd.f32 %v3035, %v3116
        %v3118 = vand.u32 %v1910, 4294901760
        %3119 = vmatmul.f32.gmra.mxu0 %v3118
        %v3120 = vpop.f32.mrf.mxu0
        %v3121 = vadd.f32 %v3039, %v3120
        %v3122 = vand.u32 %v1913, 4294901760
        %3123 = vmatmul.f32.gmra.mxu0 %v3122
        %v3124 = vpop.f32.mrf.mxu0
        %v3125 = vadd.f32 %v3043, %v3124
        %v3126 = vand.u32 %v1916, 4294901760
        %3127 = vmatmul.f32.gmra.mxu0 %v3126
        %v3128 = vpop.f32.mrf.mxu0
        %v3129 = vadd.f32 %v3047, %v3128
        %v3130 = vand.u32 %v1919, 4294901760
        %3131 = vmatmul.f32.gmra.mxu0 %v3130
        %v3132 = vpop.f32.mrf.mxu0
        %v3133 = vadd.f32 %v3051, %v3132
        %v3134 = vand.u32 %v1922, 4294901760
        %3135 = vmatmul.f32.gmra.mxu0 %v3134
        %v3136 = vpop.f32.mrf.mxu0
        %v3137 = vadd.f32 %v3055, %v3136
        %v3138 = vand.u32 %v1925, 4294901760
        %3139 = vmatmul.f32.gmra.mxu0 %v3138
        %v3140 = vpop.f32.mrf.mxu0
        %v3141 = vadd.f32 %v3059, %v3140
        %v3142 = vand.u32 %v1928, 4294901760
        %3143 = vmatmul.f32.gmra.mxu0 %v3142
        %v3144 = vpop.f32.mrf.mxu0
        %v3145 = vadd.f32 %v3063, %v3144
        %v3146 = vand.u32 %v1931, 4294901760
        %3147 = vmatmul.f32.gmra.mxu0 %v3146
        %v3148 = vpop.f32.mrf.mxu0
        %v3149 = vadd.f32 %v3067, %v3148
        %v3150 = vand.u32 %v1934, 4294901760
        %3151 = vmatmul.f32.gmra.mxu0 %v3150
        %v3152 = vpop.f32.mrf.mxu0
        %v3153 = vadd.f32 %v3071, %v3152
        %v3154 = vand.u32 %v1937, 4294901760
        %3155 = vmatmul.f32.gmra.mxu0 %v3154
        %v3156 = vpop.f32.mrf.mxu0
        %v3157 = vadd.f32 %v3075, %v3156
        %v3158 = vand.u32 %v1940, 4294901760
        %3159 = vmatmul.f32.gmra.mxu0 %v3158
        %v3160 = vpop.f32.mrf.mxu0
        %v3161 = vadd.f32 %v3079, %v3160
        %v3162 = vand.u32 %v1943, 4294901760
        %3163 = vmatmul.f32.gmra.mxu0 %v3162
        %v3164 = vpop.f32.mrf.mxu0
        %v3165 = vadd.f32 %v3083, %v3164
        %3166 = vdwg.mxu0
        %v3167 = vmin.f32 %v2494, %v3105
        %v3168 = vmin.f32 %v2498, %v3109
        %v3169 = vmin.f32 %v2502, %v3113
        %v3170 = vmin.f32 %v2506, %v3117
        %v3171 = vmin.f32 %v2510, %v3121
        %v3172 = vmin.f32 %v2514, %v3125
        %v3173 = vmin.f32 %v2518, %v3129
        %v3174 = vmin.f32 %v2522, %v3133
        %v3175 = vmin.f32 %v2526, %v3137
        %v3176 = vmin.f32 %v2530, %v3141
        %v3177 = vmin.f32 %v2534, %v3145
        %v3178 = vmin.f32 %v2538, %v3149
        %v3179 = vmin.f32 %v2542, %v3153
        %v3180 = vmin.f32 %v2546, %v3157
        %v3181 = vmin.f32 %v2550, %v3161
        %v3182 = vmin.f32 %v2554, %v3165
        %v3183 = vmin.f32 %v1847, %v3167
        %v3184 = vmin.f32 %v1848, %v3168
        %v3185 = vmin.f32 %v1849, %v3169
        %v3186 = vmin.f32 %v1850, %v3170
        %v3187 = vmin.f32 %v1851, %v3171
        %v3188 = vmin.f32 %v1852, %v3172
        %v3189 = vmin.f32 %v1853, %v3173
        %v3190 = vmin.f32 %v1854, %v3174
        %v3191 = vmin.f32 %v1855, %v3175
        %v3192 = vmin.f32 %v1856, %v3176
        %v3193 = vmin.f32 %v1857, %v3177
        %v3194 = vmin.f32 %v1858, %v3178
        %v3195 = vmin.f32 %v1859, %v3179
        %v3196 = vmin.f32 %v1860, %v3180
        %v3197 = vmin.f32 %v1861, %v3181
        %v3198 = vmin.f32 %v1862, %v3182
        %v3199 = vmin.f32 %v2494, %v2498
        %v3200 = vmin.f32 %v3105, %v3109
        %v3201 = vmin.f32 %v2502, %v2506
        %v3202 = vmin.f32 %v3113, %v3117
        %v3203 = vmin.f32 %v2510, %v2514
        %v3204 = vmin.f32 %v3121, %v3125
        %v3205 = vmin.f32 %v2518, %v2522
        %v3206 = vmin.f32 %v3129, %v3133
        %v3207 = vmin.f32 %v2526, %v2530
        %v3208 = vmin.f32 %v3137, %v3141
        %v3209 = vmin.f32 %v2534, %v2538
        %v3210 = vmin.f32 %v3145, %v3149
        %v3211 = vmin.f32 %v2542, %v2546
        %v3212 = vmin.f32 %v3153, %v3157
        %v3213 = vmin.f32 %v2550, %v2554
        %v3214 = vmin.f32 %v3161, %v3165
        %v3215 = vmin.f32 %v3199, %v3201
        %v3216 = vmin.f32 %v3200, %v3202
        %v3217 = vmin.f32 %v3203, %v3205
        %v3218 = vmin.f32 %v3204, %v3206
        %v3219 = vmin.f32 %v3207, %v3209
        %v3220 = vmin.f32 %v3208, %v3210
        %v3221 = vmin.f32 %v3211, %v3213
        %v3222 = vmin.f32 %v3212, %v3214
        %v3223 = vmin.f32 %v3215, %v3217
        %v3224 = vmin.f32 %v3216, %v3218
        %v3225 = vmin.f32 %v3219, %v3221
        %v3226 = vmin.f32 %v3220, %v3222
        %v3227 = vmin.f32 %v3223, %v3225
        %v3228 = vmin.f32 %v3224, %v3226
        %v3229 = vld [vmem:[%s1706] sm:$0xff]
        %v3230 = vld [vmem:[%s1706 + $0x8] sm:$0xff]
        %v3231 = vmin.f32 %v3229, %v3227
        %v3232 = vmin.f32 %v3230, %v3228
        %3233 = vst [vmem:[%s1706] sm:$0xff] %v3231
        %3234 = vst [vmem:[%s1706 + $0x8] sm:$0xff] %v3232
        // Predicated region
        $region57: #{tpu_custom_call.1} parent=27 // pred_check
          %p3235 = pneg %p1713
        $region58: #{tpu_custom_call.1} parent=27 // pred_check_branch
          %3237 = sbr.rel (%p3235) target = $region60
        $region59: #{tpu_custom_call.1} parent=27 // pred_region
          %3238 = vst [vmem:[#allocation2 + $0x80] sm:$0xff] %v3183
          %3239 = vst [vmem:[#allocation2 + $0x88] sm:$0xff] %v3184
          %3240 = vst [vmem:[#allocation2 + $0x90] sm:$0xff] %v3185
          %3241 = vst [vmem:[#allocation2 + $0x98] sm:$0xff] %v3186
          %3242 = vst [vmem:[#allocation2 + $0xa0] sm:$0xff] %v3187
          %3243 = vst [vmem:[#allocation2 + $0xa8] sm:$0xff] %v3188
          %3244 = vst [vmem:[#allocation2 + $0xb0] sm:$0xff] %v3189
          %3245 = vst [vmem:[#allocation2 + $0xb8] sm:$0xff] %v3190
          %3246 = vst [vmem:[#allocation2 + $0xc0] sm:$0xff] %v3191
          %3247 = vst [vmem:[#allocation2 + $0xc8] sm:$0xff] %v3192
          %3248 = vst [vmem:[#allocation2 + $0xd0] sm:$0xff] %v3193
          %3249 = vst [vmem:[#allocation2 + $0xd8] sm:$0xff] %v3194
          %3250 = vst [vmem:[#allocation2 + $0xe0] sm:$0xff] %v3195
          %3251 = vst [vmem:[#allocation2 + $0xe8] sm:$0xff] %v3196
          %3252 = vst [vmem:[#allocation2 + $0xf0] sm:$0xff] %v3197
          %3253 = vst [vmem:[#allocation2 + $0xf8] sm:$0xff] %v3198
        $region60: #{tpu_custom_call.1} parent=27 // pred_fallthru
          _
        // Predicated region
        $region61: #{tpu_custom_call.1} parent=27 // pred_check
          %p3254 = pneg %p266
        $region62: #{tpu_custom_call.1} parent=27 // pred_check_branch
          %3256 = sbr.rel (%p3254) target = $region64
        $region63: #{tpu_custom_call.1} parent=27 // pred_region
          %3257 = vmin.xlane.f32.xlu0 %v3183
          %v3258 = vpop.xlane.xlu0 %3257
          %3259 = vmin.xlane.f32.xlu0 %v3184
          %v3260 = vpop.xlane.xlu0 %3259
          %3261 = vmin.xlane.f32.xlu0 %v3185
          %v3262 = vpop.xlane.xlu0 %3261
          %3263 = vmin.xlane.f32.xlu0 %v3186
          %v3264 = vpop.xlane.xlu0 %3263
          %3265 = vmin.xlane.f32.xlu0 %v3187
          %v3266 = vpop.xlane.xlu0 %3265
          %3267 = vmin.xlane.f32.xlu0 %v3188
          %v3268 = vpop.xlane.xlu0 %3267
          %3269 = vmin.xlane.f32.xlu0 %v3189
          %v3270 = vpop.xlane.xlu0 %3269
          %3271 = vmin.xlane.f32.xlu0 %v3190
          %v3272 = vpop.xlane.xlu0 %3271
          %3273 = vmin.xlane.f32.xlu0 %v3191
          %v3274 = vpop.xlane.xlu0 %3273
          %3275 = vmin.xlane.f32.xlu0 %v3192
          %v3276 = vpop.xlane.xlu0 %3275
          %3277 = vmin.xlane.f32.xlu0 %v3193
          %v3278 = vpop.xlane.xlu0 %3277
          %3279 = vmin.xlane.f32.xlu0 %v3194
          %v3280 = vpop.xlane.xlu0 %3279
          %3281 = vmin.xlane.f32.xlu0 %v3195
          %v3282 = vpop.xlane.xlu0 %3281
          %3283 = vmin.xlane.f32.xlu0 %v3196
          %v3284 = vpop.xlane.xlu0 %3283
          %3285 = vmin.xlane.f32.xlu0 %v3197
          %v3286 = vpop.xlane.xlu0 %3285
          %3287 = vmin.xlane.f32.xlu0 %v3198
          %v3288 = vpop.xlane.xlu0 %3287
          %vm3289 = vcmp.lt.f32.partialorder %v3258, 5e+08
          %vm3290 = vcmp.lt.f32.partialorder %v3260, 5e+08
          %vm3291 = vcmp.lt.f32.partialorder %v3262, 5e+08
          %vm3292 = vcmp.lt.f32.partialorder %v3264, 5e+08
          %vm3293 = vcmp.lt.f32.partialorder %v3266, 5e+08
          %vm3294 = vcmp.lt.f32.partialorder %v3268, 5e+08
          %vm3295 = vcmp.lt.f32.partialorder %v3270, 5e+08
          %vm3296 = vcmp.lt.f32.partialorder %v3272, 5e+08
          %vm3297 = vcmp.lt.f32.partialorder %v3274, 5e+08
          %vm3298 = vcmp.lt.f32.partialorder %v3276, 5e+08
          %vm3299 = vcmp.lt.f32.partialorder %v3278, 5e+08
          %vm3300 = vcmp.lt.f32.partialorder %v3280, 5e+08
          %vm3301 = vcmp.lt.f32.partialorder %v3282, 5e+08
          %vm3302 = vcmp.lt.f32.partialorder %v3284, 5e+08
          %vm3303 = vcmp.lt.f32.partialorder %v3286, 5e+08
          %vm3304 = vcmp.lt.f32.partialorder %v3288, 5e+08
          %v3305 = vsel %vm3289, %v3258, 0.0
          %v3306 = vsel %vm3290, %v3260, 0.0
          %v3307 = vsel %vm3291, %v3262, 0.0
          %v3308 = vsel %vm3292, %v3264, 0.0
          %v3309 = vsel %vm3293, %v3266, 0.0
          %v3310 = vsel %vm3294, %v3268, 0.0
          %v3311 = vsel %vm3295, %v3270, 0.0
          %v3312 = vsel %vm3296, %v3272, 0.0
          %v3313 = vsel %vm3297, %v3274, 0.0
          %v3314 = vsel %vm3298, %v3276, 0.0
          %v3315 = vsel %vm3299, %v3278, 0.0
          %v3316 = vsel %vm3300, %v3280, 0.0
          %v3317 = vsel %vm3301, %v3282, 0.0
          %v3318 = vsel %vm3302, %v3284, 0.0
          %v3319 = vsel %vm3303, %v3286, 0.0
          %v3320 = vsel %vm3304, %v3288, 0.0
          %vm3321 = vcmask 7168
          %v3322 = vsel %vm3321, %v3305, 0.0
          %v3323 = vsel %vm3321, %v3306, 0.0
          %v3324 = vadd.f32 %v3322, %v3323
          %v3325 = vsel %vm3321, %v3307, 0.0
          %v3326 = vadd.f32 %v3324, %v3325
          %v3327 = vsel %vm3321, %v3308, 0.0
          %v3328 = vadd.f32 %v3326, %v3327
          %v3329 = vsel %vm3321, %v3309, 0.0
          %v3330 = vadd.f32 %v3328, %v3329
          %v3331 = vsel %vm3321, %v3310, 0.0
          %v3332 = vadd.f32 %v3330, %v3331
          %v3333 = vsel %vm3321, %v3311, 0.0
          %v3334 = vadd.f32 %v3332, %v3333
          %v3335 = vsel %vm3321, %v3312, 0.0
          %v3336 = vadd.f32 %v3334, %v3335
          %v3337 = vsel %vm3321, %v3313, 0.0
          %v3338 = vadd.f32 %v3336, %v3337
          %v3339 = vsel %vm3321, %v3314, 0.0
          %v3340 = vadd.f32 %v3338, %v3339
          %v3341 = vsel %vm3321, %v3315, 0.0
          %v3342 = vadd.f32 %v3340, %v3341
          %v3343 = vsel %vm3321, %v3316, 0.0
          %v3344 = vadd.f32 %v3342, %v3343
          %v3345 = vsel %vm3321, %v3317, 0.0
          %v3346 = vadd.f32 %v3344, %v3345
          %v3347 = vsel %vm3321, %v3318, 0.0
          %v3348 = vadd.f32 %v3346, %v3347
          %v3349 = vsel %vm3321, %v3319, 0.0
          %v3350 = vadd.f32 %v3348, %v3349
          %v3351 = vsel %vm3321, %v3320, 0.0
          %v3352 = vadd.f32 %v3350, %v3351
          %3353 = vadd.xlane.f32.xlu0 %v3352
          %v3354 = vpop.xlane.xlu0 %3353
          %v3355 = vrot.slane %v3354, 4
          %v3356 = vadd.f32 %v3354, %v3355
          %v3357 = vrot.slane %v3356, 2
          %v3358 = vadd.f32 %v3356, %v3357
          %v3359 = vrot.slane %v3358, 1
          %v3360 = vadd.f32 %v3358, %v3359
          %s3361 = vtos %v3360
          %v3362 = vld [vmem:[%s261] sm:$0x1]
          %v3363 = vstv %s3361
          %v3364 = vadd.f32 %v3362, %v3363
          %vm3365 = vcmask 0
          %3366 = vst.msk [vmem:[%s261] sm:$0x1] %vm3365, %v3364
        $region64: #{tpu_custom_call.1} parent=27 // pred_fallthru
          _
        // Predicated region
        $region65: #{tpu_custom_call.1} parent=27 // pred_check
          _
        $region66: #{tpu_custom_call.1} parent=27 // pred_check_branch
          %3368 = sbr.rel (%p267) target = $region68
        $region67: #{tpu_custom_call.1} parent=27 // pred_region
          %v3369 = vld [vmem:[#allocation3] sm:$0xff]
          %v3370 = vld [vmem:[#allocation3 + $0x8] sm:$0xff]
          %v3371 = vrot.slane %v3369, 4
          %v3372 = vmin.f32 %v3369, %v3371
          %v3373 = vrot.slane %v3372, 2
          %v3374 = vmin.f32 %v3372, %v3373
          %v3375 = vrot.slane %v3374, 1
          %v3376 = vmin.f32 %v3374, %v3375
          %v3377 = vrot.slane %v3370, 4
          %v3378 = vmin.f32 %v3370, %v3377
          %v3379 = vrot.slane %v3378, 2
          %v3380 = vmin.f32 %v3378, %v3379
          %v3381 = vrot.slane %v3380, 1
          %v3382 = vmin.f32 %v3380, %v3381
          %vm3383 = vcmp.lt.f32.partialorder %v3376, 5e+08
          %vm3384 = vcmp.lt.f32.partialorder %v3382, 5e+08
          %v3385 = vsel %vm3383, %v3376, 0.0
          %v3386 = vsel %vm3384, %v3382, 0.0
          %vm3387 = vcmask 1040384
          %v3388 = vsel %vm3387, %v3385, 0.0
          %v3389 = vsel %vm3387, %v3386, 0.0
          %v3390 = vadd.f32 %v3388, %v3389
          %3391 = vadd.xlane.f32.xlu0 %v3390
          %v3392 = vpop.xlane.xlu0 %3391
          %v3393 = vrot.slane %v3392, 4
          %v3394 = vadd.f32 %v3392, %v3393
          %v3395 = vrot.slane %v3394, 2
          %v3396 = vadd.f32 %v3394, %v3395
          %v3397 = vrot.slane %v3396, 1
          %v3398 = vadd.f32 %v3396, %v3397
          %s3399 = vtos %v3398
          %v3400 = vstv %s3399
          %vm3401 = vcmask 0
          %3402 = vst.msk [vmem:[%s264] sm:$0x1] %vm3401, %v3400
        $region68: #{tpu_custom_call.1} parent=27 // pred_fallthru
          _
        %p3403 = scmp.lt.s32.totalorder %s26, 7
        %s3404 = scalar_select %p3403, %s26, 7
        %s3405 = scalar_lea.vmem %s2, %s3404
        %p3406 = scmp.lt.s32.totalorder %s26, 7
        %s3407 = scalar_select %p3406, %s26, 7
        %s3408 = scalar_lea.vmem %s3, %s3407
        // Predicated region
        $region69: #{tpu_custom_call.1} parent=27 // pred_check
          %p3409 = pneg %p114
        $region70: #{tpu_custom_call.1} parent=27 // pred_check_branch
          %3411 = sbr.rel (%p3409) target = $region72
        $region71: #{tpu_custom_call.1} parent=27 // pred_region
          _
        $region72: #{tpu_custom_call.1} parent=27 // pred_fallthru
          _
        // Predicated region
        $region73: #{tpu_custom_call.1} parent=27 // pred_check
          %p3412 = pneg %p140
        $region74: #{tpu_custom_call.1} parent=27 // pred_check_branch
          %3414 = sbr.rel (%p3412) target = $region76
        $region75: #{tpu_custom_call.1} parent=27 // pred_region
          _
        $region76: #{tpu_custom_call.1} parent=27 // pred_fallthru
          _
      $region28: #{tpu_custom_call.1} parent=5 // pred_fallthru
        _
      %p3415 = scmp.le.s32.totalorder 2, %s16
      // Predicated region
      $region77: #{tpu_custom_call.1} parent=5 // pred_check
        %p3416 = pneg %p3415
      $region78: #{tpu_custom_call.1} parent=5 // pred_check_branch
        %3418 = sbr.rel (%p3416) target = $region80
      $region79: #{tpu_custom_call.1} parent=5 // pred_region
        %s3419 = ssub.s32 %s16, 2
        // Predicated region
        $region81: #{tpu_custom_call.1} parent=79 // pred_check
          %p3420 = pneg %p120
        $region82: #{tpu_custom_call.1} parent=79 // pred_check_branch
          %3422 = sbr.rel (%p3420) target = $region84
        $region83: #{tpu_custom_call.1} parent=79 // pred_region
          %p3423 = scmp.lt.s32.totalorder %s29, 7
          %s3424 = scalar_select %p3423, %s29, 7
          %s3425 = scalar_lea.vmem %s2, %s3424
        $region84: #{tpu_custom_call.1} parent=79 // pred_fallthru
          _
        // Predicated region
        $region85: #{tpu_custom_call.1} parent=79 // pred_check
          %p3426 = pneg %p146
        $region86: #{tpu_custom_call.1} parent=79 // pred_check_branch
          %3428 = sbr.rel (%p3426) target = $region88
        $region87: #{tpu_custom_call.1} parent=79 // pred_region
          %p3429 = scmp.lt.s32.totalorder %s29, 7
          %s3430 = scalar_select %p3429, %s29, 7
          %s3431 = scalar_lea.vmem %s3, %s3430
        $region88: #{tpu_custom_call.1} parent=79 // pred_fallthru
          _
      $region80: #{tpu_custom_call.1} parent=5 // pred_fallthru
        _
    $region6: #{tpu_custom_call.1} parent=1 // loop_footer
      %s20 = sadd.s32 1, %s16
    $region7: #{tpu_custom_call.1} parent=1 // loop_footer_branch
      %15 = sbr.rel target = $region3
    $region8: #{tpu_custom_call.1} parent=1 // loop_exit
      _
    %3432 = vsyncpa [#allocation5], 1
    %s3433 = scalar_lea.sflag [#allocation5], 1
    %3434 = vsyncpa %s3433, 1
    %3435 = vsyncpa [#allocation7], 1
    %s3436 = scalar_lea.sflag [#allocation7], 1
    %3437 = vsyncpa %s3436, 1

</llo_original>
